<compile_context>
chip_gen: v5e
topology: v5e:2x2
jax: 0.10.0
libtpu: 0.0.40
codegen_flags: <defaults>
</compile_context>

<pallas_src>
import functools

import jax
import jax.numpy as jnp
from jax.experimental import pallas as pl
from jax.experimental.pallas import tpu as pltpu

D_IN = 180
D_HID = 2 * 180   # 360
D_OUT = 180

TILE_M = 1024     # rows per grid step (HBM-bound sweet spot per tile-scaling data)

_INV_SQRT2 = 0.7071067811865476


def mlp_kernel(x_ref, w1_ref, b1_ref, w2_ref, b2_ref, o_ref):
    # x: (tile_m, 180) f32 -> bf16 in-kernel; w1: (180, 360) bf16;
    # w2: (360, 180) bf16; b1: (1, 360) f32; b2: (1, 180) f32.
    x = x_ref[...].astype(jnp.bfloat16)
    h = jnp.dot(x, w1_ref[...], preferred_element_type=jnp.float32)
    h = h + b1_ref[...]
    # Exact erf-based GELU (matches PyTorch nn.GELU default), in f32.
    h = 0.5 * h * (1.0 + jax.lax.erf(h * _INV_SQRT2))
    y = jnp.dot(h.astype(jnp.bfloat16), w2_ref[...],
                preferred_element_type=jnp.float32)
    y = y + b2_ref[...]
    o_ref[...] = y.astype(o_ref.dtype)


def _round_up(a, b):
    return -(-a // b) * b


@functools.partial(jax.jit, static_argnames=("tile_m",))
def mlp_forward(x, w1, b1, w2, b2, *, tile_m=TILE_M):
    """MLP(180 -> 360 -> GELU -> 180).

    x: (..., 180) float32 (any leading dims, e.g. (B, H, W, 180)).
    w1: (180, 360), b1: (360,), w2: (360, 180), b2: (180,)  (x @ W + b layout,
    i.e. PyTorch's x @ W_pt.T + b).  Returns same leading shape, last dim 180,
    dtype of x.
    """
    orig_shape = x.shape
    out_dtype = x.dtype

    m = 1
    for s in orig_shape[:-1]:
        m *= s
    x2 = x.reshape(m, D_IN)

    # Tile choice: cap at tile_m, but keep >= ~4 grid steps for small inputs
    # so both v7x TensorCores get work and pipelining has something to overlap.
    tile = min(tile_m, max(8, _round_up(pl.cdiv(m, 4), 8)))
    m_pad = pl.cdiv(m, tile) * tile
    if m_pad != m:
        # Cheap token-dim-only pad (feature dim stays 180, no dtype cast).
        x2 = jnp.pad(x2, ((0, m_pad - m), (0, 0)))

    # One-time small casts of the weights (negligible HBM traffic).
    w1b = w1.astype(jnp.bfloat16)
    w2b = w2.astype(jnp.bfloat16)
    b1f = b1.reshape(1, D_HID).astype(jnp.float32)
    b2f = b2.reshape(1, D_OUT).astype(jnp.float32)

    grid = (m_pad // tile,)
    out = pl.pallas_call(
        mlp_kernel,
        out_shape=jax.ShapeDtypeStruct((m_pad, D_OUT), out_dtype),
        grid_spec=pltpu.PrefetchScalarGridSpec(
            num_scalar_prefetch=0,
            grid=grid,
            in_specs=[
                pl.BlockSpec((tile, D_IN), lambda i: (i, 0)),
                pl.BlockSpec((D_IN, D_HID), lambda i: (0, 0)),
                pl.BlockSpec((1, D_HID), lambda i: (0, 0)),
                pl.BlockSpec((D_HID, D_OUT), lambda i: (0, 0)),
                pl.BlockSpec((1, D_OUT), lambda i: (0, 0)),
            ],
            out_specs=pl.BlockSpec((tile, D_OUT), lambda i: (i, 0)),
        ),
        compiler_params=pltpu.CompilerParams(
            dimension_semantics=("parallel",)),
    )(x2, w1b, b1f, w2b, b2f)

    if m_pad != m:
        out = out[:m]
    return out.reshape(orig_shape[:-1] + (D_OUT,))


def init_params(key):
    """Deterministic init mimicking nn.Linear (uniform +/- 1/sqrt(fan_in))."""
    k1, k2, k3, k4 = jax.random.split(key, 4)
    lim1 = 1.0 / jnp.sqrt(jnp.float32(D_IN))
    lim2 = 1.0 / jnp.sqrt(jnp.float32(D_HID))
    # Stored as (in_features, out_features) -> kernel computes x @ W + b,
    # equivalent to PyTorch's x @ W_pt.T + b.
    w1 = jax.random.uniform(k1, (D_IN, D_HID), jnp.float32, -lim1, lim1)
    b1 = jax.random.uniform(k2, (D_HID,), jnp.float32, -lim1, lim1)
    w2 = jax.random.uniform(k3, (D_HID, D_OUT), jnp.float32, -lim2, lim2)
    b2 = jax.random.uniform(k4, (D_OUT,), jnp.float32, -lim2, lim2)
    return w1, b1, w2, b2


if __name__ == "__main__":
    key = jax.random.PRNGKey(0)
    kx, kp = jax.random.split(key)

    # SwinIR's MLP runs on per-pixel token features (B, H, W, 180); small case.
    B, H, W = 2, 16, 16
    x = jax.random.normal(kx, (B, H, W, D_IN), jnp.float32)
    w1, b1, w2, b2 = init_params(kp)

    out = mlp_forward(x, w1, b1, w2, b2)
    out = jax.block_until_ready(out)
    assert out.shape == (B, H, W, D_OUT)
    assert out.dtype == x.dtype

    # Reference with the same bf16 operand rounding, f32 accumulation.
    xb = x.reshape(-1, D_IN).astype(jnp.bfloat16).astype(jnp.float32)
    w1b = w1.astype(jnp.bfloat16).astype(jnp.float32)
    w2b = w2.astype(jnp.bfloat16).astype(jnp.float32)
    h = xb @ w1b + b1
    h = 0.5 * h * (1.0 + jax.lax.erf(h * _INV_SQRT2))
    ref = (h.astype(jnp.bfloat16).astype(jnp.float32) @ w2b + b2)
    ref = ref.reshape(B, H, W, D_OUT)
    assert jnp.allclose(out, ref, atol=1e-2, rtol=1e-2), float(
        jnp.max(jnp.abs(out - ref)))

    # Looser parity check against the full-f32 (PyTorch-equivalent) math.
    hf = x.reshape(-1, D_IN) @ w1 + b1
    hf = 0.5 * hf * (1.0 + jax.lax.erf(hf * _INV_SQRT2))
    reff = (hf @ w2 + b2).reshape(B, H, W, D_OUT)
    # TODO(synk): if SwinIR PSNR requires tighter than ~1e-1 abs error, keep x
    # in f32 inside the matmuls (quantize only the weights) at some MXU cost.
    assert float(jnp.max(jnp.abs(out - reff))) < 0.15

    # Exercise a non-divisible token count to hit the pad/slice path once.
    x_odd = jax.random.normal(kx, (1, 7, 11, D_IN), jnp.float32)
    out_odd = jax.block_until_ready(mlp_forward(x_odd, w1, b1, w2, b2))
    assert out_odd.shape == (1, 7, 11, D_OUT)

    print("KERNEL_OK")
</pallas_src>

<mosaic_0001>
module attributes {stable_mosaic.version = 11 : i64} {
  func.func @mlp_kernel(%arg0: i32, %arg1: memref<128x180xf32, #tpu.memory_space<vmem>>, %arg2: memref<180x360xbf16, #tpu.memory_space<vmem>>, %arg3: memref<1x360xf32, #tpu.memory_space<vmem>>, %arg4: memref<360x180xbf16, #tpu.memory_space<vmem>>, %arg5: memref<1x180xf32, #tpu.memory_space<vmem>>, %arg6: memref<128x180xf32, #tpu.memory_space<vmem>>) attributes {dimension_semantics = [#tpu.dimension_semantics<parallel>], iteration_bounds = array<i64: 4>, scalar_prefetch = 0 : i64, scratch_operands = 0 : i64, tpu.core_type = #tpu.core_type<tc>, window_params = [{transform_indices = @transform_0, window_bounds = array<i64: 128, 180>}, {pipeline_mode = #tpu.pipeline_mode<synchronous>, transform_indices = @transform_1, window_bounds = array<i64: 180, 360>}, {pipeline_mode = #tpu.pipeline_mode<synchronous>, transform_indices = @transform_2, window_bounds = array<i64: 1, 360>}, {pipeline_mode = #tpu.pipeline_mode<synchronous>, transform_indices = @transform_3, window_bounds = array<i64: 360, 180>}, {pipeline_mode = #tpu.pipeline_mode<synchronous>, transform_indices = @transform_4, window_bounds = array<i64: 1, 180>}, {transform_indices = @transform_5, window_bounds = array<i64: 128, 180>}]} {
    %c0 = arith.constant 0 : index
    %c0_0 = arith.constant 0 : index
    %0 = vector.load %arg1[%c0, %c0_0] : memref<128x180xf32, #tpu.memory_space<vmem>>, vector<128x180xf32>
    %1 = arith.truncf %0 : vector<128x180xf32> to vector<128x180xbf16>
    %c0_1 = arith.constant 0 : index
    %c0_2 = arith.constant 0 : index
    %2 = vector.load %arg2[%c0_1, %c0_2] : memref<180x360xbf16, #tpu.memory_space<vmem>>, vector<180x360xbf16>
    %cst = arith.constant dense<0.000000e+00> : vector<128x360xf32>
    %3 = tpu.matmul %1, %2, %cst {dimension_numbers = #tpu.dot_dimension_numbers<[1], [0], [0], [1], [0, 0, 1, 1], [], []>} : vector<128x180xbf16>, vector<180x360xbf16>, vector<128x360xf32> -> vector<128x360xf32>
    %c0_3 = arith.constant 0 : index
    %c0_4 = arith.constant 0 : index
    %4 = vector.load %arg3[%c0_3, %c0_4] : memref<1x360xf32, #tpu.memory_space<vmem>>, vector<1x360xf32>
    %5 = vector.broadcast %4 : vector<1x360xf32> to vector<128x360xf32>
    %6 = arith.addf %3, %5 : vector<128x360xf32>
    %cst_5 = arith.constant 5.000000e-01 : f32
    %7 = vector.broadcast %cst_5 : f32 to vector<128x360xf32>
    %8 = arith.mulf %7, %6 : vector<128x360xf32>
    %cst_6 = arith.constant 0.707106769 : f32
    %9 = vector.broadcast %cst_6 : f32 to vector<128x360xf32>
    %10 = arith.mulf %6, %9 : vector<128x360xf32>
    %11 = math.erf %10 : vector<128x360xf32>
    %cst_7 = arith.constant 1.000000e+00 : f32
    %12 = vector.broadcast %cst_7 : f32 to vector<128x360xf32>
    %13 = arith.addf %12, %11 : vector<128x360xf32>
    %14 = arith.mulf %8, %13 : vector<128x360xf32>
    %15 = arith.truncf %14 : vector<128x360xf32> to vector<128x360xbf16>
    %c0_8 = arith.constant 0 : index
    %c0_9 = arith.constant 0 : index
    %16 = vector.load %arg4[%c0_8, %c0_9] : memref<360x180xbf16, #tpu.memory_space<vmem>>, vector<360x180xbf16>
    %cst_10 = arith.constant dense<0.000000e+00> : vector<128x180xf32>
    %17 = tpu.matmul %15, %16, %cst_10 {dimension_numbers = #tpu.dot_dimension_numbers<[1], [0], [0], [1], [0, 0, 1, 1], [], []>} : vector<128x360xbf16>, vector<360x180xbf16>, vector<128x180xf32> -> vector<128x180xf32>
    %c0_11 = arith.constant 0 : index
    %c0_12 = arith.constant 0 : index
    %18 = vector.load %arg5[%c0_11, %c0_12] : memref<1x180xf32, #tpu.memory_space<vmem>>, vector<1x180xf32>
    %19 = vector.broadcast %18 : vector<1x180xf32> to vector<128x180xf32>
    %20 = arith.addf %17, %19 : vector<128x180xf32>
    %c0_13 = arith.constant 0 : index
    %c0_14 = arith.constant 0 : index
    %21 = vector.load %arg6[%c0_13, %c0_14] : memref<128x180xf32, #tpu.memory_space<vmem>>, vector<128x180xf32>
    tpu.vector_store %arg6[%c0_13, %c0_14], %20 {strides = array<i32>} : memref<128x180xf32, #tpu.memory_space<vmem>>, vector<128x180xf32>,
    return
  }
  func.func @transform_0(%arg0: i32) -> (i32, i32) {
    %c0_i32 = arith.constant 0 : i32
    %c0_i32_0 = arith.constant 0 : i32
    return %arg0, %c0_i32 : i32, i32
  }
  func.func @transform_1(%arg0: i32) -> (i32, i32) {
    %c0_i32 = arith.constant 0 : i32
    %c0_i32_0 = arith.constant 0 : i32
    %c0_i32_1 = arith.constant 0 : i32
    return %c0_i32, %c0_i32_0 : i32, i32
  }
  func.func @transform_2(%arg0: i32) -> (i32, i32) {
    %c0_i32 = arith.constant 0 : i32
    %c0_i32_0 = arith.constant 0 : i32
    %c0_i32_1 = arith.constant 0 : i32
    return %c0_i32, %c0_i32_0 : i32, i32
  }
  func.func @transform_3(%arg0: i32) -> (i32, i32) {
    %c0_i32 = arith.constant 0 : i32
    %c0_i32_0 = arith.constant 0 : i32
    %c0_i32_1 = arith.constant 0 : i32
    return %c0_i32, %c0_i32_0 : i32, i32
  }
  func.func @transform_4(%arg0: i32) -> (i32, i32) {
    %c0_i32 = arith.constant 0 : i32
    %c0_i32_0 = arith.constant 0 : i32
    %c0_i32_1 = arith.constant 0 : i32
    return %c0_i32, %c0_i32_0 : i32, i32
  }
  func.func @transform_5(%arg0: i32) -> (i32, i32) {
    %c0_i32 = arith.constant 0 : i32
    %c0_i32_0 = arith.constant 0 : i32
    return %arg0, %c0_i32 : i32, i32
  }
}

</mosaic_0001>

<llo_original>
// kernel: mlp_forward.1
$region0: #{mlp_forward.1}
  #allocation0 [shape = 'u32[]', space=smem, size = 0x4, offset = 0x4, fixed_abs, tag = 'smem constant byte address 0x4 - core index']
  #allocation1 [shape = 'u32[72,128]{1,0:T(1,128)}', space=vmem, size = 0x9000, scoped, tag = 'internal scratch']
  %s0 = inlined_call_operand.vmem [shape: f32[512,180], index: 0, kind: input, shape index: {}]
  %s1 = inlined_call_operand.vmem [shape: bf16[180,360], index: 1, kind: input, shape index: {}]
  %s2 = inlined_call_operand.vmem [shape: f32[1,360], index: 2, kind: input, shape index: {}]
  %s3 = inlined_call_operand.vmem [shape: bf16[360,180], index: 3, kind: input, shape index: {}]
  %s4 = inlined_call_operand.vmem [shape: f32[1,180], index: 4, kind: input, shape index: {}]
  %s5 = inlined_call_operand.hbm [shape: f32[512,180], index: 5, kind: output, shape index: {}]
  %s6 = sld [smem:[#allocation0]]
  $region53: #{mlp_forward.1} parent=0
    _
  %s8 = ssub.s32 1, %s6
  %s9 = scalar_select 0, %s8, %s6
  $region1: #{mlp_forward.1} parent=0
    #allocation2 [shape = 'u8[262144]{0}', space=vmem, size = 0x40000, scoped, tag = 'output window, operand 0']
    #allocation3 [shape = 's32[2]{0}', space=sflag, size = 0x8, scoped, tag = 'scoped memory for mlp_forward.1']
    %10 = vsyncpa [#allocation3], 0
    %s11 = scalar_lea.sflag [#allocation3], 1
    %12 = vsyncpa %s11, 0
    loop: start=0, step=1, limit=6
    $region2: #{mlp_forward.1} parent=1 // loop_pre_header
      _
    $region3: #{mlp_forward.1} parent=1 // loop_header
      %s14 = sphi 0, %s18
      %p15 = scmp.ge.s32.totalorder %s14, 6
      %s24 = sphi 0, %s26
      %s27 = sphi 0, %s24
      %s28 = sphi 0, %s27
      %s44 = sphi 0, %s28
      %s48 = sphi 0, %s48
      %s50 = sphi 0, %s48
      %s51 = sphi 0, %s50
      %s65 = sphi 0, %s51
      %s69 = sphi 0, %s69
      %s71 = sphi 0, %s69
      %s72 = sphi 0, %s71
      %s86 = sphi 0, %s72
      %s90 = sphi 0, %s90
      %s92 = sphi 0, %s90
      %s93 = sphi 0, %s92
      %s107 = sphi 0, %s93
      %s111 = sphi 0, %s111
      %s113 = sphi 0, %s111
      %s114 = sphi 0, %s113
      %s128 = sphi 0, %s114
      %s134 = sphi 0, %s136
      %s137 = sphi 0, %s134
      %s138 = sphi 0, %s137
      %s154 = sphi 0, %s138
    $region4: #{mlp_forward.1} parent=1 // loop_header_branch
      %17 = sbr.rel (%p15) target = $region8
    $region5: #{mlp_forward.1} parent=1 // loop_body
      %s19 = ssub.s32 %s14, 1
      %s20 = ssub.s32 %s14, 2
      %s21 = sadd.s32 %s14, 1
      %s22 = ssub.s32 %s14, %s21
      %p23 = scmp.eq.s32.totalorder %s22, 0
      %s25 = sadd.s32 %s24, 1
      %s26 = scalar_select %p23, %s24, %s25
      %p29 = pneg %p23
      %p30 = scmp.eq.s32.totalorder %s14, 3
      %p31 = por %p29, %p30
      %p32 = scmp.ne.s32.totalorder %s24, %s27
      %p33 = scmp.eq.s32.totalorder %s14, 0
      %p34 = por %p32, %p33
      %p35 = scmp.ne.s32.totalorder %s24, %s27
      %p36 = scmp.eq.s32.totalorder %s19, 3
      %p37 = por %p35, %p36
      %p38 = scmp.ne.s32.totalorder %s27, %s28
      %p39 = scmp.eq.s32.totalorder %s19, 0
      %p40 = por %p38, %p39
      %p41 = scmp.ne.s32.totalorder %s27, %s28
      %p42 = scmp.eq.s32.totalorder %s20, 3
      %p43 = por %p41, %p42
      %p45 = scmp.ne.s32.totalorder %s28, %s44
      %p46 = scmp.eq.s32.totalorder %s20, 0
      %p47 = por %p45, %p46
      %s49 = sadd.s32 %s48, 1
      %p52 = scmp.eq.s32.totalorder %s14, 3
      %p53 = scmp.ne.s32.totalorder %s48, %s50
      %p54 = scmp.eq.s32.totalorder %s14, 0
      %p55 = por %p53, %p54
      %p56 = scmp.ne.s32.totalorder %s48, %s50
      %p57 = scmp.eq.s32.totalorder %s19, 3
      %p58 = por %p56, %p57
      %p59 = scmp.ne.s32.totalorder %s50, %s51
      %p60 = scmp.eq.s32.totalorder %s19, 0
      %p61 = por %p59, %p60
      %p62 = scmp.ne.s32.totalorder %s50, %s51
      %p63 = scmp.eq.s32.totalorder %s20, 3
      %p64 = por %p62, %p63
      %p66 = scmp.ne.s32.totalorder %s51, %s65
      %p67 = scmp.eq.s32.totalorder %s20, 0
      %p68 = por %p66, %p67
      %s70 = sadd.s32 %s69, 1
      %p73 = scmp.eq.s32.totalorder %s14, 3
      %p74 = scmp.ne.s32.totalorder %s69, %s71
      %p75 = scmp.eq.s32.totalorder %s14, 0
      %p76 = por %p74, %p75
      %p77 = scmp.ne.s32.totalorder %s69, %s71
      %p78 = scmp.eq.s32.totalorder %s19, 3
      %p79 = por %p77, %p78
      %p80 = scmp.ne.s32.totalorder %s71, %s72
      %p81 = scmp.eq.s32.totalorder %s19, 0
      %p82 = por %p80, %p81
      %p83 = scmp.ne.s32.totalorder %s71, %s72
      %p84 = scmp.eq.s32.totalorder %s20, 3
      %p85 = por %p83, %p84
      %p87 = scmp.ne.s32.totalorder %s72, %s86
      %p88 = scmp.eq.s32.totalorder %s20, 0
      %p89 = por %p87, %p88
      %s91 = sadd.s32 %s90, 1
      %p94 = scmp.eq.s32.totalorder %s14, 3
      %p95 = scmp.ne.s32.totalorder %s90, %s92
      %p96 = scmp.eq.s32.totalorder %s14, 0
      %p97 = por %p95, %p96
      %p98 = scmp.ne.s32.totalorder %s90, %s92
      %p99 = scmp.eq.s32.totalorder %s19, 3
      %p100 = por %p98, %p99
      %p101 = scmp.ne.s32.totalorder %s92, %s93
      %p102 = scmp.eq.s32.totalorder %s19, 0
      %p103 = por %p101, %p102
      %p104 = scmp.ne.s32.totalorder %s92, %s93
      %p105 = scmp.eq.s32.totalorder %s20, 3
      %p106 = por %p104, %p105
      %p108 = scmp.ne.s32.totalorder %s93, %s107
      %p109 = scmp.eq.s32.totalorder %s20, 0
      %p110 = por %p108, %p109
      %s112 = sadd.s32 %s111, 1
      %p115 = scmp.eq.s32.totalorder %s14, 3
      %p116 = scmp.ne.s32.totalorder %s111, %s113
      %p117 = scmp.eq.s32.totalorder %s14, 0
      %p118 = por %p116, %p117
      %p119 = scmp.ne.s32.totalorder %s111, %s113
      %p120 = scmp.eq.s32.totalorder %s19, 3
      %p121 = por %p119, %p120
      %p122 = scmp.ne.s32.totalorder %s113, %s114
      %p123 = scmp.eq.s32.totalorder %s19, 0
      %p124 = por %p122, %p123
      %p125 = scmp.ne.s32.totalorder %s113, %s114
      %p126 = scmp.eq.s32.totalorder %s20, 3
      %p127 = por %p125, %p126
      %p129 = scmp.ne.s32.totalorder %s114, %s128
      %p130 = scmp.eq.s32.totalorder %s20, 0
      %p131 = por %p129, %p130
      %s132 = ssub.s32 %s14, %s21
      %p133 = scmp.eq.s32.totalorder %s132, 0
      %s135 = sadd.s32 %s134, 1
      %s136 = scalar_select %p133, %s134, %s135
      %p139 = pneg %p133
      %p140 = scmp.eq.s32.totalorder %s14, 3
      %p141 = por %p139, %p140
      %p142 = scmp.ne.s32.totalorder %s134, %s137
      %p143 = scmp.eq.s32.totalorder %s14, 0
      %p144 = por %p142, %p143
      %p145 = scmp.ne.s32.totalorder %s134, %s137
      %p146 = scmp.eq.s32.totalorder %s19, 3
      %p147 = por %p145, %p146
      %p148 = scmp.ne.s32.totalorder %s137, %s138
      %p149 = scmp.eq.s32.totalorder %s19, 0
      %p150 = por %p148, %p149
      %p151 = scmp.ne.s32.totalorder %s137, %s138
      %p152 = scmp.eq.s32.totalorder %s20, 3
      %p153 = por %p151, %p152
      %p155 = scmp.ne.s32.totalorder %s138, %s154
      %p156 = scmp.eq.s32.totalorder %s20, 0
      %p157 = por %p155, %p156
      %p158 = scmp.le.s32.totalorder 1, %s14
      %p159 = scmp.lt.s32.totalorder %s14, 5
      %p160 = pnand %p158, %p159
      %p161 = pneg %p160
      // Predicated region
      $region9: #{mlp_forward.1} parent=5 // pred_check
        _
      $region10: #{mlp_forward.1} parent=5 // pred_check_branch
        %163 = sbr.rel (%p160) target = $region12
      $region11: #{mlp_forward.1} parent=5 // pred_region
        %s164 = ssub.s32 %s14, 1
        // Predicated region
        $region13: #{mlp_forward.1} parent=11 // pred_check
          %p165 = pneg %p61
        $region14: #{mlp_forward.1} parent=11 // pred_check_branch
          %167 = sbr.rel (%p165) target = $region16
        $region15: #{mlp_forward.1} parent=11 // pred_region
          _
        $region16: #{mlp_forward.1} parent=11 // pred_fallthru
          _
        // Predicated region
        $region17: #{mlp_forward.1} parent=11 // pred_check
          %p168 = pneg %p82
        $region18: #{mlp_forward.1} parent=11 // pred_check_branch
          %170 = sbr.rel (%p168) target = $region20
        $region19: #{mlp_forward.1} parent=11 // pred_region
          _
        $region20: #{mlp_forward.1} parent=11 // pred_fallthru
          _
        // Predicated region
        $region21: #{mlp_forward.1} parent=11 // pred_check
          %p171 = pneg %p103
        $region22: #{mlp_forward.1} parent=11 // pred_check_branch
          %173 = sbr.rel (%p171) target = $region24
        $region23: #{mlp_forward.1} parent=11 // pred_region
          _
        $region24: #{mlp_forward.1} parent=11 // pred_fallthru
          _
        // Predicated region
        $region25: #{mlp_forward.1} parent=11 // pred_check
          %p174 = pneg %p124
        $region26: #{mlp_forward.1} parent=11 // pred_check_branch
          %176 = sbr.rel (%p174) target = $region28
        $region27: #{mlp_forward.1} parent=11 // pred_region
          _
        $region28: #{mlp_forward.1} parent=11 // pred_fallthru
          _
      $region12: #{mlp_forward.1} parent=5 // pred_fallthru
        _
      %p177 = scmp.lt.s32.totalorder %s14, 4
      // Predicated region
      $region29: #{mlp_forward.1} parent=5 // pred_check
        %p178 = pneg %p177
      $region30: #{mlp_forward.1} parent=5 // pred_check_branch
        %180 = sbr.rel (%p178) target = $region32
      $region31: #{mlp_forward.1} parent=5 // pred_region
        // Predicated region
        $region33: #{mlp_forward.1} parent=31 // pred_check
          %p181 = pneg %p34
        $region34: #{mlp_forward.1} parent=31 // pred_check_branch
          %183 = sbr.rel (%p181) target = $region36
        $region35: #{mlp_forward.1} parent=31 // pred_region
          %s184 = smul.u32 16, %s14
          %p185 = scmp.lt.s32.totalorder %s184, 63
          %s186 = scalar_select %p185, %s184, 63
          %s187 = smul.addr %s186, 2
          %s188 = smul.addr %s187, 8
          %s189 = scalar_lea.vmem %s0, %s188
          %s190 = smul.u32 16, %s14
        $region36: #{mlp_forward.1} parent=31 // pred_fallthru
          _
      $region32: #{mlp_forward.1} parent=5 // pred_fallthru
        _
      %p191 = scmp.le.s32.totalorder 1, %s14
      %p192 = scmp.lt.s32.totalorder %s14, 5
      %p193 = pnand %p191, %p192
      %p194 = pneg %p193
      // Predicated region
      $region37: #{mlp_forward.1} parent=5 // pred_check
        _
      $region38: #{mlp_forward.1} parent=5 // pred_check_branch
        %196 = sbr.rel (%p193) target = $region40
      $region39: #{mlp_forward.1} parent=5 // pred_region
        %s197 = ssub.s32 %s14, 1
        %s198 = smul.u32 16, %s19
        %p199 = scmp.lt.s32.totalorder %s198, 63
        %s200 = scalar_select %p199, %s198, 63
        %s201 = smul.addr %s200, 2
        %s202 = smul.addr %s201, 8
        %s203 = scalar_lea.vmem %s0, %s202
        %p204 = pneg %p40
        %p205 = pneg %p37
        %p206 = pneg %p61
        %p207 = pneg %p58
        %p208 = pneg %p82
        %p209 = pneg %p79
        %p210 = pneg %p103
        %p211 = pneg %p100
        %p212 = pneg %p124
        %p213 = pneg %p121
        %p214 = pneg %p150
        %p215 = pneg %p147
        %s216 = sand.u32 %s137, 1
        %s217 = scalar_lea.sflag [#allocation3], %s216
        %s218 = sand.u32 %s137, 1
        %s219 = smul.addr %s218, 256
        %s220 = scalar_lea.vmem [#allocation2], %s219
        %s221 = smul.u32 16, %s19
        %p222 = scmp.lt.s32.totalorder %s221, 63
        %s223 = scalar_select %p222, %s221, 63
        %s224 = smul.addr %s223, 2
        %s225 = smul.addr %s224, 8
        %s226 = scalar_lea.vmem %s0, %s225
        %s227 = smul.u32 16, %s19
        %s228 = smul.u32 16, %s19
        %v230 = vld [vmem:[%s226] sm:$0xff]
        %v231 = vld [vmem:[%s226 + $0x8] sm:$0xff]
        %v232 = vld [vmem:[%s226 + $0x10] sm:$0xff]
        %v233 = vld [vmem:[%s226 + $0x18] sm:$0xff]
        %v234 = vld [vmem:[%s226 + $0x20] sm:$0xff]
        %v235 = vld [vmem:[%s226 + $0x28] sm:$0xff]
        %v236 = vld [vmem:[%s226 + $0x30] sm:$0xff]
        %v237 = vld [vmem:[%s226 + $0x38] sm:$0xff]
        %v238 = vld [vmem:[%s226 + $0x40] sm:$0xff]
        %v239 = vld [vmem:[%s226 + $0x48] sm:$0xff]
        %v240 = vld [vmem:[%s226 + $0x50] sm:$0xff]
        %v241 = vld [vmem:[%s226 + $0x58] sm:$0xff]
        %v242 = vld [vmem:[%s226 + $0x60] sm:$0xff]
        %v243 = vld [vmem:[%s226 + $0x68] sm:$0xff]
        %v244 = vld [vmem:[%s226 + $0x70] sm:$0xff]
        %v245 = vld [vmem:[%s226 + $0x78] sm:$0xff]
        %v246 = vld [vmem:[%s226 + $0x80] sm:$0xff]
        %v247 = vld [vmem:[%s226 + $0x88] sm:$0xff]
        %v248 = vld [vmem:[%s226 + $0x90] sm:$0xff]
        %v249 = vld [vmem:[%s226 + $0x98] sm:$0xff]
        %v250 = vld [vmem:[%s226 + $0xa0] sm:$0xff]
        %v251 = vld [vmem:[%s226 + $0xa8] sm:$0xff]
        %v252 = vld [vmem:[%s226 + $0xb0] sm:$0xff]
        %v253 = vld [vmem:[%s226 + $0xb8] sm:$0xff]
        %v254 = vld [vmem:[%s226 + $0xc0] sm:$0xff]
        %v255 = vld [vmem:[%s226 + $0xc8] sm:$0xff]
        %v256 = vld [vmem:[%s226 + $0xd0] sm:$0xff]
        %v257 = vld [vmem:[%s226 + $0xd8] sm:$0xff]
        %v258 = vld [vmem:[%s226 + $0xe0] sm:$0xff]
        %v259 = vld [vmem:[%s226 + $0xe8] sm:$0xff]
        %v260 = vld [vmem:[%s226 + $0xf0] sm:$0xff]
        %v261 = vld [vmem:[%s226 + $0xf8] sm:$0xff]
        %v262 = vpack.c.bf16 %v232, %v230
        %v263 = vpack.c.bf16 %v233, %v231
        %v264 = vpack.c.bf16 %v236, %v234
        %v265 = vpack.c.bf16 %v237, %v235
        %v266 = vpack.c.bf16 %v240, %v238
        %v267 = vpack.c.bf16 %v241, %v239
        %v268 = vpack.c.bf16 %v244, %v242
        %v269 = vpack.c.bf16 %v245, %v243
        %v270 = vpack.c.bf16 %v248, %v246
        %v271 = vpack.c.bf16 %v249, %v247
        %v272 = vpack.c.bf16 %v252, %v250
        %v273 = vpack.c.bf16 %v253, %v251
        %v274 = vpack.c.bf16 %v256, %v254
        %v275 = vpack.c.bf16 %v257, %v255
        %v276 = vpack.c.bf16 %v260, %v258
        %v277 = vpack.c.bf16 %v261, %v259
        %v278 = vld [vmem:[%s1] sm:$0xff]
        %v279 = vld [vmem:[%s1 + $0x8] sm:$0xf]
        %v280 = vld [vmem:[%s1 + $0xc] sm:$0xff]
        %v281 = vld [vmem:[%s1 + $0x14] sm:$0xf]
        %v282 = vld [vmem:[%s1 + $0x18] sm:$0xff]
        %v283 = vld [vmem:[%s1 + $0x20] sm:$0xf]
        %v284 = vld [vmem:[%s1 + $0x24] sm:$0xff]
        %v285 = vld [vmem:[%s1 + $0x2c] sm:$0xf]
        %v286 = vld [vmem:[%s1 + $0x30] sm:$0xff]
        %v287 = vld [vmem:[%s1 + $0x38] sm:$0xf]
        %v288 = vld [vmem:[%s1 + $0x3c] sm:$0xff]
        %v289 = vld [vmem:[%s1 + $0x44] sm:$0xf]
        %v290 = vld [vmem:[%s1 + $0x48] sm:$0xff]
        %v291 = vld [vmem:[%s1 + $0x50] sm:$0xf]
        %v292 = vld [vmem:[%s1 + $0x54] sm:$0xff]
        %v293 = vld [vmem:[%s1 + $0x5c] sm:$0xf]
        %v294 = vld [vmem:[%s1 + $0x60] sm:$0xff]
        %v295 = vld [vmem:[%s1 + $0x68] sm:$0xf]
        %v296 = vld [vmem:[%s1 + $0x6c] sm:$0xff]
        %v297 = vld [vmem:[%s1 + $0x74] sm:$0xf]
        %v298 = vld [vmem:[%s1 + $0x78] sm:$0xff]
        %v299 = vld [vmem:[%s1 + $0x80] sm:$0xf]
        %v300 = vld [vmem:[%s1 + $0x84] sm:$0xff]
        %v301 = vld [vmem:[%s1 + $0x8c] sm:$0xf]
        %v302 = vld [vmem:[%s1 + $0x90] sm:$0xff]
        %v303 = vld [vmem:[%s1 + $0x98] sm:$0xf]
        %v304 = vld [vmem:[%s1 + $0x9c] sm:$0xff]
        %v305 = vld [vmem:[%s1 + $0xa4] sm:$0xf]
        %v306 = vld [vmem:[%s1 + $0xa8] sm:$0xff]
        %v307 = vld [vmem:[%s1 + $0xb0] sm:$0xf]
        %v308 = vld [vmem:[%s1 + $0xb4] sm:$0xff]
        %v309 = vld [vmem:[%s1 + $0xbc] sm:$0xf]
        %v310 = vld [vmem:[%s1 + $0xc0] sm:$0xff]
        %v311 = vld [vmem:[%s1 + $0xc8] sm:$0xf]
        %v312 = vld [vmem:[%s1 + $0xcc] sm:$0xff]
        %v313 = vld [vmem:[%s1 + $0xd4] sm:$0xf]
        %v314 = vld [vmem:[%s1 + $0xd8] sm:$0xff]
        %v315 = vld [vmem:[%s1 + $0xe0] sm:$0xf]
        %v316 = vld [vmem:[%s1 + $0xe4] sm:$0xff]
        %v317 = vld [vmem:[%s1 + $0xec] sm:$0xf]
        %v318 = vld [vmem:[%s1 + $0xf0] sm:$0xff]
        %v319 = vld [vmem:[%s1 + $0xf8] sm:$0xf]
        %v320 = vld [vmem:[%s1 + $0xfc] sm:$0xff]
        %v321 = vld [vmem:[%s1 + $0x104] sm:$0xf]
        %v322 = vld [vmem:[%s1 + $0x108] sm:$0x33]
        %v323 = vld [vmem:[%s1 + $0x110] sm:$0x3]
        %v324 = vld [vmem:[%s2] sm:$0x7]
        %v326 = vperm.slane %v324, 0
        %v327 = vperm.slane %v324, 1
        %v328 = vperm.slane %v324, 2
        %v378 = vunpack.c.l.b16 %v278
        %v379 = vunpack.c.h.b16 %v278
        %v380 = vunpack.c.l.b16 %v279
        %v381 = vunpack.c.l.b16 %v280
        %v382 = vunpack.c.h.b16 %v280
        %v383 = vunpack.c.l.b16 %v281
        %v384 = vunpack.c.l.b16 %v282
        %v385 = vunpack.c.h.b16 %v282
        %v386 = vunpack.c.l.b16 %v283
        %v387 = vunpack.c.l.b16 %v284
        %v388 = vunpack.c.h.b16 %v284
        %v389 = vunpack.c.l.b16 %v285
        %v390 = vunpack.c.l.b16 %v286
        %v391 = vunpack.c.h.b16 %v286
        %v392 = vunpack.c.l.b16 %v287
        %v393 = vunpack.c.l.b16 %v288
        %v394 = vunpack.c.h.b16 %v288
        %v395 = vunpack.c.l.b16 %v289
        %v396 = vunpack.c.l.b16 %v290
        %v397 = vunpack.c.h.b16 %v290
        %v398 = vunpack.c.l.b16 %v291
        %v399 = vunpack.c.l.b16 %v292
        %v400 = vunpack.c.h.b16 %v292
        %v401 = vunpack.c.l.b16 %v293
        %v402 = vunpack.c.l.b16 %v294
        %v403 = vunpack.c.h.b16 %v294
        %v404 = vunpack.c.l.b16 %v295
        %v405 = vunpack.c.l.b16 %v296
        %v406 = vunpack.c.h.b16 %v296
        %v407 = vunpack.c.l.b16 %v297
        %v408 = vunpack.c.l.b16 %v298
        %v409 = vunpack.c.h.b16 %v298
        %v410 = vunpack.c.l.b16 %v299
        %v411 = vunpack.c.l.b16 %v300
        %v412 = vunpack.c.h.b16 %v300
        %v413 = vunpack.c.l.b16 %v301
        %v414 = vunpack.c.l.b16 %v302
        %v415 = vunpack.c.h.b16 %v302
        %v416 = vunpack.c.l.b16 %v303
        %v417 = vunpack.c.l.b16 %v304
        %v418 = vunpack.c.h.b16 %v304
        %v419 = vunpack.c.l.b16 %v305
        %v420 = vunpack.c.l.b16 %v306
        %v421 = vunpack.c.h.b16 %v306
        %v422 = vunpack.c.l.b16 %v307
        %v423 = vunpack.c.l.b16 %v308
        %v424 = vunpack.c.h.b16 %v308
        %v425 = vunpack.c.l.b16 %v309
        %v426 = vunpack.c.l.b16 %v310
        %v427 = vunpack.c.h.b16 %v310
        %v428 = vunpack.c.l.b16 %v311
        %v429 = vunpack.c.l.b16 %v312
        %v430 = vunpack.c.h.b16 %v312
        %v431 = vunpack.c.l.b16 %v313
        %v432 = vunpack.c.l.b16 %v314
        %v433 = vunpack.c.h.b16 %v314
        %v434 = vunpack.c.l.b16 %v315
        %v435 = vunpack.c.l.b16 %v316
        %v436 = vunpack.c.h.b16 %v316
        %v437 = vunpack.c.l.b16 %v317
        %v438 = vunpack.c.l.b16 %v318
        %v439 = vunpack.c.h.b16 %v318
        %v440 = vunpack.c.l.b16 %v319
        %v441 = vunpack.c.l.b16 %v320
        %v442 = vunpack.c.h.b16 %v320
        %v443 = vunpack.c.l.b16 %v321
        %v444 = vunpack.c.l.b16 %v322
        %v445 = vunpack.c.h.b16 %v322
        %v446 = vunpack.c.l.b16 %v323
        %v447 = vpack.c.b16 %v381, %v378
        %v448 = vpack.c.b16 %v382, %v379
        %v449 = vpack.c.b16 %v383, %v380
        %v450 = vpack.c.b16 %v387, %v384
        %v451 = vpack.c.b16 %v388, %v385
        %v452 = vpack.c.b16 %v389, %v386
        %v453 = vpack.c.b16 %v393, %v390
        %v454 = vpack.c.b16 %v394, %v391
        %v455 = vpack.c.b16 %v395, %v392
        %v456 = vpack.c.b16 %v399, %v396
        %v457 = vpack.c.b16 %v400, %v397
        %v458 = vpack.c.b16 %v401, %v398
        %v459 = vpack.c.b16 %v405, %v402
        %v460 = vpack.c.b16 %v406, %v403
        %v461 = vpack.c.b16 %v407, %v404
        %v462 = vpack.c.b16 %v411, %v408
        %v463 = vpack.c.b16 %v412, %v409
        %v464 = vpack.c.b16 %v413, %v410
        %v465 = vpack.c.b16 %v417, %v414
        %v466 = vpack.c.b16 %v418, %v415
        %v467 = vpack.c.b16 %v419, %v416
        %v468 = vpack.c.b16 %v423, %v420
        %v469 = vpack.c.b16 %v424, %v421
        %v470 = vpack.c.b16 %v425, %v422
        %v471 = vpack.c.b16 %v429, %v426
        %v472 = vpack.c.b16 %v430, %v427
        %v473 = vpack.c.b16 %v431, %v428
        %v474 = vpack.c.b16 %v435, %v432
        %v475 = vpack.c.b16 %v436, %v433
        %v476 = vpack.c.b16 %v437, %v434
        %v477 = vpack.c.b16 %v441, %v438
        %v478 = vpack.c.b16 %v442, %v439
        %v479 = vpack.c.b16 %v443, %v440
        %v480 = vpack.c.b16 %v444, %v444
        %v481 = vpack.c.b16 %v445, %v445
        %v482 = vpack.c.b16 %v446, %v446
        %vm516 = vcmask 424960
        %v518 = vsel %vm516, %v263, 0
        %v521 = vsel %vm516, %v265, 0
        %v524 = vsel %vm516, %v267, 0
        %v527 = vsel %vm516, %v269, 0
        %v530 = vsel %vm516, %v271, 0
        %v533 = vsel %vm516, %v273, 0
        %v536 = vsel %vm516, %v275, 0
        %v539 = vsel %vm516, %v277, 0
        %vm541 = vcmask 1041408
        %v543 = vsel %vm541, %v480, 0
        %v546 = vsel %vm541, %v481, 0
        %v549 = vsel %vm541, %v482, 0
        %551 = vmatpush.bf16.msra.mxu0 %v468
        %552 = vmatpush.bf16.msra.mxu0 %v465
        %553 = vmatpush.bf16.msra.mxu0 %v462
        %554 = vmatpush.bf16.msra.mxu0 %v459
        %555 = vmatpush.bf16.msra.mxu0 %v456
        %556 = vmatpush.bf16.msra.mxu0 %v453
        %557 = vmatpush.bf16.msra.mxu0 %v450
        %558 = vmatpush.bf16.msra.mxu0 %v447
        %559 = vmatmul.bf16.gmra.mxu0 %v262
        %v560 = vpop.f32.mrf.mxu0
        %v561 = vadd.f32 %v326, %v560
        %v562 = vpop.f32.mrf.mxu0
        %v563 = vadd.f32 %v326, %v562
        %564 = vmatmul.bf16.gmra.mxu0 %v264
        %v565 = vpop.f32.mrf.mxu0
        %v566 = vadd.f32 %v326, %v565
        %v567 = vpop.f32.mrf.mxu0
        %v568 = vadd.f32 %v326, %v567
        %569 = vmatmul.bf16.gmra.mxu0 %v266
        %v570 = vpop.f32.mrf.mxu0
        %v571 = vadd.f32 %v326, %v570
        %v572 = vpop.f32.mrf.mxu0
        %v573 = vadd.f32 %v326, %v572
        %574 = vmatmul.bf16.gmra.mxu0 %v268
        %v575 = vpop.f32.mrf.mxu0
        %v576 = vadd.f32 %v326, %v575
        %v577 = vpop.f32.mrf.mxu0
        %v578 = vadd.f32 %v326, %v577
        %579 = vmatmul.bf16.gmra.mxu0 %v270
        %v580 = vpop.f32.mrf.mxu0
        %v581 = vadd.f32 %v326, %v580
        %v582 = vpop.f32.mrf.mxu0
        %v583 = vadd.f32 %v326, %v582
        %584 = vmatmul.bf16.gmra.mxu0 %v272
        %v585 = vpop.f32.mrf.mxu0
        %v586 = vadd.f32 %v326, %v585
        %v587 = vpop.f32.mrf.mxu0
        %v588 = vadd.f32 %v326, %v587
        %589 = vmatmul.bf16.gmra.mxu0 %v274
        %v590 = vpop.f32.mrf.mxu0
        %v591 = vadd.f32 %v326, %v590
        %v592 = vpop.f32.mrf.mxu0
        %v593 = vadd.f32 %v326, %v592
        %594 = vmatmul.bf16.gmra.mxu0 %v276
        %v595 = vpop.f32.mrf.mxu0
        %v596 = vadd.f32 %v326, %v595
        %v597 = vpop.f32.mrf.mxu0
        %v598 = vadd.f32 %v326, %v597
        %599 = vdwg.mxu0
        %600 = vmatpush.bf16.msra.mxu0 0
        %601 = vmatpush.bf16.msra.mxu0 0
        %602 = vmatpush.bf16.msra.mxu0 0
        %603 = vmatpush.bf16.msra.mxu0 0
        %604 = vmatpush.bf16.msra.mxu0 %v543
        %605 = vmatpush.bf16.msra.mxu0 %v477
        %606 = vmatpush.bf16.msra.mxu0 %v474
        %607 = vmatpush.bf16.msra.mxu0 %v471
        %608 = vmatmul.bf16.gmra.mxu0 %v518
        %v609 = vpop.f32.mrf.mxu0
        %v610 = vadd.f32 %v561, %v609
        %v611 = vpop.f32.mrf.mxu0
        %v612 = vadd.f32 %v563, %v611
        %613 = vmatmul.bf16.gmra.mxu0 %v521
        %v614 = vpop.f32.mrf.mxu0
        %v615 = vadd.f32 %v566, %v614
        %v616 = vpop.f32.mrf.mxu0
        %v617 = vadd.f32 %v568, %v616
        %618 = vmatmul.bf16.gmra.mxu0 %v524
        %v619 = vpop.f32.mrf.mxu0
        %v620 = vadd.f32 %v571, %v619
        %v621 = vpop.f32.mrf.mxu0
        %v622 = vadd.f32 %v573, %v621
        %623 = vmatmul.bf16.gmra.mxu0 %v527
        %v624 = vpop.f32.mrf.mxu0
        %v625 = vadd.f32 %v576, %v624
        %v626 = vpop.f32.mrf.mxu0
        %v627 = vadd.f32 %v578, %v626
        %628 = vmatmul.bf16.gmra.mxu0 %v530
        %v629 = vpop.f32.mrf.mxu0
        %v630 = vadd.f32 %v581, %v629
        %v631 = vpop.f32.mrf.mxu0
        %v632 = vadd.f32 %v583, %v631
        %633 = vmatmul.bf16.gmra.mxu0 %v533
        %v634 = vpop.f32.mrf.mxu0
        %v635 = vadd.f32 %v586, %v634
        %v636 = vpop.f32.mrf.mxu0
        %v637 = vadd.f32 %v588, %v636
        %638 = vmatmul.bf16.gmra.mxu0 %v536
        %v639 = vpop.f32.mrf.mxu0
        %v640 = vadd.f32 %v591, %v639
        %v641 = vpop.f32.mrf.mxu0
        %v642 = vadd.f32 %v593, %v641
        %643 = vmatmul.bf16.gmra.mxu0 %v539
        %v644 = vpop.f32.mrf.mxu0
        %v645 = vadd.f32 %v596, %v644
        %v646 = vpop.f32.mrf.mxu0
        %v647 = vadd.f32 %v598, %v646
        %648 = vdwg.mxu0
        %649 = vmatpush.bf16.msra.mxu0 %v469
        %650 = vmatpush.bf16.msra.mxu0 %v466
        %651 = vmatpush.bf16.msra.mxu0 %v463
        %652 = vmatpush.bf16.msra.mxu0 %v460
        %653 = vmatpush.bf16.msra.mxu0 %v457
        %654 = vmatpush.bf16.msra.mxu0 %v454
        %655 = vmatpush.bf16.msra.mxu0 %v451
        %656 = vmatpush.bf16.msra.mxu0 %v448
        %657 = vmatmul.bf16.gmra.mxu0 %v262
        %v658 = vpop.f32.mrf.mxu0
        %v659 = vadd.f32 %v327, %v658
        %v660 = vpop.f32.mrf.mxu0
        %v661 = vadd.f32 %v327, %v660
        %662 = vmatmul.bf16.gmra.mxu0 %v264
        %v663 = vpop.f32.mrf.mxu0
        %v664 = vadd.f32 %v327, %v663
        %v665 = vpop.f32.mrf.mxu0
        %v666 = vadd.f32 %v327, %v665
        %667 = vmatmul.bf16.gmra.mxu0 %v266
        %v668 = vpop.f32.mrf.mxu0
        %v669 = vadd.f32 %v327, %v668
        %v670 = vpop.f32.mrf.mxu0
        %v671 = vadd.f32 %v327, %v670
        %672 = vmatmul.bf16.gmra.mxu0 %v268
        %v673 = vpop.f32.mrf.mxu0
        %v674 = vadd.f32 %v327, %v673
        %v675 = vpop.f32.mrf.mxu0
        %v676 = vadd.f32 %v327, %v675
        %677 = vmatmul.bf16.gmra.mxu0 %v270
        %v678 = vpop.f32.mrf.mxu0
        %v679 = vadd.f32 %v327, %v678
        %v680 = vpop.f32.mrf.mxu0
        %v681 = vadd.f32 %v327, %v680
        %682 = vmatmul.bf16.gmra.mxu0 %v272
        %v683 = vpop.f32.mrf.mxu0
        %v684 = vadd.f32 %v327, %v683
        %v685 = vpop.f32.mrf.mxu0
        %v686 = vadd.f32 %v327, %v685
        %687 = vmatmul.bf16.gmra.mxu0 %v274
        %v688 = vpop.f32.mrf.mxu0
        %v689 = vadd.f32 %v327, %v688
        %v690 = vpop.f32.mrf.mxu0
        %v691 = vadd.f32 %v327, %v690
        %692 = vmatmul.bf16.gmra.mxu0 %v276
        %v693 = vpop.f32.mrf.mxu0
        %v694 = vadd.f32 %v327, %v693
        %v695 = vpop.f32.mrf.mxu0
        %v696 = vadd.f32 %v327, %v695
        %697 = vdwg.mxu0
        %698 = vmatpush.bf16.msra.mxu0 0
        %699 = vmatpush.bf16.msra.mxu0 0
        %700 = vmatpush.bf16.msra.mxu0 0
        %701 = vmatpush.bf16.msra.mxu0 0
        %702 = vmatpush.bf16.msra.mxu0 %v546
        %703 = vmatpush.bf16.msra.mxu0 %v478
        %704 = vmatpush.bf16.msra.mxu0 %v475
        %705 = vmatpush.bf16.msra.mxu0 %v472
        %706 = vmatmul.bf16.gmra.mxu0 %v518
        %v707 = vpop.f32.mrf.mxu0
        %v708 = vadd.f32 %v659, %v707
        %v709 = vpop.f32.mrf.mxu0
        %v710 = vadd.f32 %v661, %v709
        %711 = vmatmul.bf16.gmra.mxu0 %v521
        %v712 = vpop.f32.mrf.mxu0
        %v713 = vadd.f32 %v664, %v712
        %v714 = vpop.f32.mrf.mxu0
        %v715 = vadd.f32 %v666, %v714
        %716 = vmatmul.bf16.gmra.mxu0 %v524
        %v717 = vpop.f32.mrf.mxu0
        %v718 = vadd.f32 %v669, %v717
        %v719 = vpop.f32.mrf.mxu0
        %v720 = vadd.f32 %v671, %v719
        %721 = vmatmul.bf16.gmra.mxu0 %v527
        %v722 = vpop.f32.mrf.mxu0
        %v723 = vadd.f32 %v674, %v722
        %v724 = vpop.f32.mrf.mxu0
        %v725 = vadd.f32 %v676, %v724
        %726 = vmatmul.bf16.gmra.mxu0 %v530
        %v727 = vpop.f32.mrf.mxu0
        %v728 = vadd.f32 %v679, %v727
        %v729 = vpop.f32.mrf.mxu0
        %v730 = vadd.f32 %v681, %v729
        %731 = vmatmul.bf16.gmra.mxu0 %v533
        %v732 = vpop.f32.mrf.mxu0
        %v733 = vadd.f32 %v684, %v732
        %v734 = vpop.f32.mrf.mxu0
        %v735 = vadd.f32 %v686, %v734
        %736 = vmatmul.bf16.gmra.mxu0 %v536
        %v737 = vpop.f32.mrf.mxu0
        %v738 = vadd.f32 %v689, %v737
        %v739 = vpop.f32.mrf.mxu0
        %v740 = vadd.f32 %v691, %v739
        %741 = vmatmul.bf16.gmra.mxu0 %v539
        %v742 = vpop.f32.mrf.mxu0
        %v743 = vadd.f32 %v694, %v742
        %v744 = vpop.f32.mrf.mxu0
        %v745 = vadd.f32 %v696, %v744
        %746 = vdwg.mxu0
        %747 = vmatpush.bf16.msra.mxu0 %v470
        %748 = vmatpush.bf16.msra.mxu0 %v467
        %749 = vmatpush.bf16.msra.mxu0 %v464
        %750 = vmatpush.bf16.msra.mxu0 %v461
        %751 = vmatpush.bf16.msra.mxu0 %v458
        %752 = vmatpush.bf16.msra.mxu0 %v455
        %753 = vmatpush.bf16.msra.mxu0 %v452
        %754 = vmatpush.bf16.msra.mxu0 %v449
        %755 = vmatmul.bf16.gmra.mxu0 %v262
        %v756 = vpop.f32.mrf.mxu0
        %v757 = vadd.f32 %v328, %v756
        %v758 = vpop.f32.mrf.mxu0
        %v759 = vadd.f32 %v328, %v758
        %760 = vmatmul.bf16.gmra.mxu0 %v264
        %v761 = vpop.f32.mrf.mxu0
        %v762 = vadd.f32 %v328, %v761
        %v763 = vpop.f32.mrf.mxu0
        %v764 = vadd.f32 %v328, %v763
        %765 = vmatmul.bf16.gmra.mxu0 %v266
        %v766 = vpop.f32.mrf.mxu0
        %v767 = vadd.f32 %v328, %v766
        %v768 = vpop.f32.mrf.mxu0
        %v769 = vadd.f32 %v328, %v768
        %770 = vmatmul.bf16.gmra.mxu0 %v268
        %v771 = vpop.f32.mrf.mxu0
        %v772 = vadd.f32 %v328, %v771
        %v773 = vpop.f32.mrf.mxu0
        %v774 = vadd.f32 %v328, %v773
        %775 = vmatmul.bf16.gmra.mxu0 %v270
        %v776 = vpop.f32.mrf.mxu0
        %v777 = vadd.f32 %v328, %v776
        %v778 = vpop.f32.mrf.mxu0
        %v779 = vadd.f32 %v328, %v778
        %780 = vmatmul.bf16.gmra.mxu0 %v272
        %v781 = vpop.f32.mrf.mxu0
        %v782 = vadd.f32 %v328, %v781
        %v783 = vpop.f32.mrf.mxu0
        %v784 = vadd.f32 %v328, %v783
        %785 = vmatmul.bf16.gmra.mxu0 %v274
        %v786 = vpop.f32.mrf.mxu0
        %v787 = vadd.f32 %v328, %v786
        %v788 = vpop.f32.mrf.mxu0
        %v789 = vadd.f32 %v328, %v788
        %790 = vmatmul.bf16.gmra.mxu0 %v276
        %v791 = vpop.f32.mrf.mxu0
        %v792 = vadd.f32 %v328, %v791
        %v793 = vpop.f32.mrf.mxu0
        %v794 = vadd.f32 %v328, %v793
        %795 = vdwg.mxu0
        %796 = vmatpush.bf16.msra.mxu0 0
        %797 = vmatpush.bf16.msra.mxu0 0
        %798 = vmatpush.bf16.msra.mxu0 0
        %799 = vmatpush.bf16.msra.mxu0 0
        %800 = vmatpush.bf16.msra.mxu0 %v549
        %801 = vmatpush.bf16.msra.mxu0 %v479
        %802 = vmatpush.bf16.msra.mxu0 %v476
        %803 = vmatpush.bf16.msra.mxu0 %v473
        %804 = vmatmul.bf16.gmra.mxu0 %v518
        %v805 = vpop.f32.mrf.mxu0
        %v806 = vadd.f32 %v757, %v805
        %v807 = vpop.f32.mrf.mxu0
        %v808 = vadd.f32 %v759, %v807
        %809 = vmatmul.bf16.gmra.mxu0 %v521
        %v810 = vpop.f32.mrf.mxu0
        %v811 = vadd.f32 %v762, %v810
        %v812 = vpop.f32.mrf.mxu0
        %v813 = vadd.f32 %v764, %v812
        %814 = vmatmul.bf16.gmra.mxu0 %v524
        %v815 = vpop.f32.mrf.mxu0
        %v816 = vadd.f32 %v767, %v815
        %v817 = vpop.f32.mrf.mxu0
        %v818 = vadd.f32 %v769, %v817
        %819 = vmatmul.bf16.gmra.mxu0 %v527
        %v820 = vpop.f32.mrf.mxu0
        %v821 = vadd.f32 %v772, %v820
        %v822 = vpop.f32.mrf.mxu0
        %v823 = vadd.f32 %v774, %v822
        %824 = vmatmul.bf16.gmra.mxu0 %v530
        %v825 = vpop.f32.mrf.mxu0
        %v826 = vadd.f32 %v777, %v825
        %v827 = vpop.f32.mrf.mxu0
        %v828 = vadd.f32 %v779, %v827
        %829 = vmatmul.bf16.gmra.mxu0 %v533
        %v830 = vpop.f32.mrf.mxu0
        %v831 = vadd.f32 %v782, %v830
        %v832 = vpop.f32.mrf.mxu0
        %v833 = vadd.f32 %v784, %v832
        %834 = vmatmul.bf16.gmra.mxu0 %v536
        %v835 = vpop.f32.mrf.mxu0
        %v836 = vadd.f32 %v787, %v835
        %v837 = vpop.f32.mrf.mxu0
        %v838 = vadd.f32 %v789, %v837
        %839 = vmatmul.bf16.gmra.mxu0 %v539
        %v840 = vpop.f32.mrf.mxu0
        %v841 = vadd.f32 %v792, %v840
        %v842 = vpop.f32.mrf.mxu0
        %v843 = vadd.f32 %v794, %v842
        %844 = vdwg.mxu0
        %v845 = vmul.f32 %v610, 0.5
        %v846 = vmul.f32 %v708, 0.5
        %v847 = vmul.f32 %v806, 0.5
        %v848 = vmul.f32 %v612, 0.5
        %v849 = vmul.f32 %v710, 0.5
        %v850 = vmul.f32 %v808, 0.5
        %v851 = vmul.f32 %v615, 0.5
        %v852 = vmul.f32 %v713, 0.5
        %v853 = vmul.f32 %v811, 0.5
        %v854 = vmul.f32 %v617, 0.5
        %v855 = vmul.f32 %v715, 0.5
        %v856 = vmul.f32 %v813, 0.5
        %v857 = vmul.f32 %v620, 0.5
        %v858 = vmul.f32 %v718, 0.5
        %v859 = vmul.f32 %v816, 0.5
        %v860 = vmul.f32 %v622, 0.5
        %v861 = vmul.f32 %v720, 0.5
        %v862 = vmul.f32 %v818, 0.5
        %v863 = vmul.f32 %v625, 0.5
        %v864 = vmul.f32 %v723, 0.5
        %v865 = vmul.f32 %v821, 0.5
        %v866 = vmul.f32 %v627, 0.5
        %v867 = vmul.f32 %v725, 0.5
        %v868 = vmul.f32 %v823, 0.5
        %v869 = vmul.f32 %v630, 0.5
        %v870 = vmul.f32 %v728, 0.5
        %v871 = vmul.f32 %v826, 0.5
        %v872 = vmul.f32 %v632, 0.5
        %v873 = vmul.f32 %v730, 0.5
        %v874 = vmul.f32 %v828, 0.5
        %v875 = vmul.f32 %v635, 0.5
        %v876 = vmul.f32 %v733, 0.5
        %v877 = vmul.f32 %v831, 0.5
        %v878 = vmul.f32 %v637, 0.5
        %v879 = vmul.f32 %v735, 0.5
        %v880 = vmul.f32 %v833, 0.5
        %v881 = vmul.f32 %v640, 0.5
        %v882 = vmul.f32 %v738, 0.5
        %v883 = vmul.f32 %v836, 0.5
        %v884 = vmul.f32 %v642, 0.5
        %v885 = vmul.f32 %v740, 0.5
        %v886 = vmul.f32 %v838, 0.5
        %v887 = vmul.f32 %v645, 0.5
        %v888 = vmul.f32 %v743, 0.5
        %v889 = vmul.f32 %v841, 0.5
        %v890 = vmul.f32 %v647, 0.5
        %v891 = vmul.f32 %v745, 0.5
        %v892 = vmul.f32 %v843, 0.5
        %v893 = vmul.f32 %v610, 0.70710677
        %v894 = vmul.f32 %v708, 0.70710677
        %v895 = vmul.f32 %v806, 0.70710677
        %v896 = vmul.f32 %v612, 0.70710677
        %v897 = vmul.f32 %v710, 0.70710677
        %v898 = vmul.f32 %v808, 0.70710677
        %v899 = vmul.f32 %v615, 0.70710677
        %v900 = vmul.f32 %v713, 0.70710677
        %v901 = vmul.f32 %v811, 0.70710677
        %v902 = vmul.f32 %v617, 0.70710677
        %v903 = vmul.f32 %v715, 0.70710677
        %v904 = vmul.f32 %v813, 0.70710677
        %v905 = vmul.f32 %v620, 0.70710677
        %v906 = vmul.f32 %v718, 0.70710677
        %v907 = vmul.f32 %v816, 0.70710677
        %v908 = vmul.f32 %v622, 0.70710677
        %v909 = vmul.f32 %v720, 0.70710677
        %v910 = vmul.f32 %v818, 0.70710677
        %v911 = vmul.f32 %v625, 0.70710677
        %v912 = vmul.f32 %v723, 0.70710677
        %v913 = vmul.f32 %v821, 0.70710677
        %v914 = vmul.f32 %v627, 0.70710677
        %v915 = vmul.f32 %v725, 0.70710677
        %v916 = vmul.f32 %v823, 0.70710677
        %v917 = vmul.f32 %v630, 0.70710677
        %v918 = vmul.f32 %v728, 0.70710677
        %v919 = vmul.f32 %v826, 0.70710677
        %v920 = vmul.f32 %v632, 0.70710677
        %v921 = vmul.f32 %v730, 0.70710677
        %v922 = vmul.f32 %v828, 0.70710677
        %v923 = vmul.f32 %v635, 0.70710677
        %v924 = vmul.f32 %v733, 0.70710677
        %v925 = vmul.f32 %v831, 0.70710677
        %v926 = vmul.f32 %v637, 0.70710677
        %v927 = vmul.f32 %v735, 0.70710677
        %v928 = vmul.f32 %v833, 0.70710677
        %v929 = vmul.f32 %v640, 0.70710677
        %v930 = vmul.f32 %v738, 0.70710677
        %v931 = vmul.f32 %v836, 0.70710677
        %v932 = vmul.f32 %v642, 0.70710677
        %v933 = vmul.f32 %v740, 0.70710677
        %v934 = vmul.f32 %v838, 0.70710677
        %v935 = vmul.f32 %v645, 0.70710677
        %v936 = vmul.f32 %v743, 0.70710677
        %v937 = vmul.f32 %v841, 0.70710677
        %v938 = vmul.f32 %v647, 0.70710677
        %v939 = vmul.f32 %v745, 0.70710677
        %v940 = vmul.f32 %v843, 0.70710677
        %v941 = vmul.f32 %v893, %v893
        %v942 = vmin.f32 16.0, %v941
        %v943 = vmul.f32 %v942, 2.1237322e-06
        %v944 = vadd.f32 %v943, 0.00028619796
        %v945 = vmul.f32 %v942, %v944
        %v946 = vadd.f32 %v945, 0.0036580483
        %v947 = vmul.f32 %v942, %v946
        %v948 = vadd.f32 %v947, 0.05243302
        %v949 = vmul.f32 %v942, %v948
        %v950 = vadd.f32 %v949, 0.18741608
        %v951 = vmul.f32 %v942, %v950
        %v952 = vadd.f32 %v951, 1.1283791
        %v953 = vmul.f32 %v893, %v952
        %v954 = vmul.f32 %v942, 3.8918573e-05
        %v955 = vadd.f32 %v954, 0.001143296
        %v956 = vmul.f32 %v942, %v955
        %v957 = vadd.f32 %v956, 0.014752088
        %v958 = vmul.f32 %v942, %v957
        %v959 = vadd.f32 %v958, 0.112945676
        %v960 = vmul.f32 %v942, %v959
        %v961 = vadd.f32 %v960, 0.4994258
        %v962 = vmul.f32 %v942, %v961
        %v963 = vadd.f32 %v962, 1.0
        %v964 = vrcp.pop %v963
        %v965 = vmul.f32 %v963, %v964
        %v966 = vsub.f32 1.0, %v965
        %v967 = vmul.f32 %v964, %v966
        %v968 = vadd.f32 %v964, %v967
        %vm969 = vweird.f32 %v963
        %vm970 = vweird.f32 %v964
        %vm971 = vmor %vm969, %vm970
        %v972 = vsel %vm971, %v964, %v968
        %v973 = vand.u32 2147483647, %v963
        %vm974 = vcmp.eq.f32.partialorder %v973, 8.507059e+37
        %v975 = vand.u32 %v963, 2147483648
        %v976 = vor.u32 1.1754944e-38, %v975
        %v977 = vsel %vm974, %v976, %v972
        %v978 = vmul.f32 %v953, %v977
        %v979 = vmin.f32 %v978, 1.0
        %v980 = vmax.f32 %v979, -1.0
        %v981 = vmul.f32 %v894, %v894
        %v982 = vmin.f32 16.0, %v981
        %v983 = vmul.f32 %v982, 2.1237322e-06
        %v984 = vadd.f32 %v983, 0.00028619796
        %v985 = vmul.f32 %v982, %v984
        %v986 = vadd.f32 %v985, 0.0036580483
        %v987 = vmul.f32 %v982, %v986
        %v988 = vadd.f32 %v987, 0.05243302
        %v989 = vmul.f32 %v982, %v988
        %v990 = vadd.f32 %v989, 0.18741608
        %v991 = vmul.f32 %v982, %v990
        %v992 = vadd.f32 %v991, 1.1283791
        %v993 = vmul.f32 %v894, %v992
        %v994 = vmul.f32 %v982, 3.8918573e-05
        %v995 = vadd.f32 %v994, 0.001143296
        %v996 = vmul.f32 %v982, %v995
        %v997 = vadd.f32 %v996, 0.014752088
        %v998 = vmul.f32 %v982, %v997
        %v999 = vadd.f32 %v998, 0.112945676
        %v1000 = vmul.f32 %v982, %v999
        %v1001 = vadd.f32 %v1000, 0.4994258
        %v1002 = vmul.f32 %v982, %v1001
        %v1003 = vadd.f32 %v1002, 1.0
        %v1004 = vrcp.pop %v1003
        %v1005 = vmul.f32 %v1003, %v1004
        %v1006 = vsub.f32 1.0, %v1005
        %v1007 = vmul.f32 %v1004, %v1006
        %v1008 = vadd.f32 %v1004, %v1007
        %vm1009 = vweird.f32 %v1003
        %vm1010 = vweird.f32 %v1004
        %vm1011 = vmor %vm1009, %vm1010
        %v1012 = vsel %vm1011, %v1004, %v1008
        %v1013 = vand.u32 2147483647, %v1003
        %vm1014 = vcmp.eq.f32.partialorder %v1013, 8.507059e+37
        %v1015 = vand.u32 %v1003, 2147483648
        %v1016 = vor.u32 1.1754944e-38, %v1015
        %v1017 = vsel %vm1014, %v1016, %v1012
        %v1018 = vmul.f32 %v993, %v1017
        %v1019 = vmin.f32 %v1018, 1.0
        %v1020 = vmax.f32 %v1019, -1.0
        %v1021 = vmul.f32 %v895, %v895
        %v1022 = vmin.f32 16.0, %v1021
        %v1023 = vmul.f32 %v1022, 2.1237322e-06
        %v1024 = vadd.f32 %v1023, 0.00028619796
        %v1025 = vmul.f32 %v1022, %v1024
        %v1026 = vadd.f32 %v1025, 0.0036580483
        %v1027 = vmul.f32 %v1022, %v1026
        %v1028 = vadd.f32 %v1027, 0.05243302
        %v1029 = vmul.f32 %v1022, %v1028
        %v1030 = vadd.f32 %v1029, 0.18741608
        %v1031 = vmul.f32 %v1022, %v1030
        %v1032 = vadd.f32 %v1031, 1.1283791
        %v1033 = vmul.f32 %v895, %v1032
        %v1034 = vmul.f32 %v1022, 3.8918573e-05
        %v1035 = vadd.f32 %v1034, 0.001143296
        %v1036 = vmul.f32 %v1022, %v1035
        %v1037 = vadd.f32 %v1036, 0.014752088
        %v1038 = vmul.f32 %v1022, %v1037
        %v1039 = vadd.f32 %v1038, 0.112945676
        %v1040 = vmul.f32 %v1022, %v1039
        %v1041 = vadd.f32 %v1040, 0.4994258
        %v1042 = vmul.f32 %v1022, %v1041
        %v1043 = vadd.f32 %v1042, 1.0
        %v1044 = vrcp.pop %v1043
        %v1045 = vmul.f32 %v1043, %v1044
        %v1046 = vsub.f32 1.0, %v1045
        %v1047 = vmul.f32 %v1044, %v1046
        %v1048 = vadd.f32 %v1044, %v1047
        %vm1049 = vweird.f32 %v1043
        %vm1050 = vweird.f32 %v1044
        %vm1051 = vmor %vm1049, %vm1050
        %v1052 = vsel %vm1051, %v1044, %v1048
        %v1053 = vand.u32 2147483647, %v1043
        %vm1054 = vcmp.eq.f32.partialorder %v1053, 8.507059e+37
        %v1055 = vand.u32 %v1043, 2147483648
        %v1056 = vor.u32 1.1754944e-38, %v1055
        %v1057 = vsel %vm1054, %v1056, %v1052
        %v1058 = vmul.f32 %v1033, %v1057
        %v1059 = vmin.f32 %v1058, 1.0
        %v1060 = vmax.f32 %v1059, -1.0
        %v1061 = vmul.f32 %v896, %v896
        %v1062 = vmin.f32 16.0, %v1061
        %v1063 = vmul.f32 %v1062, 2.1237322e-06
        %v1064 = vadd.f32 %v1063, 0.00028619796
        %v1065 = vmul.f32 %v1062, %v1064
        %v1066 = vadd.f32 %v1065, 0.0036580483
        %v1067 = vmul.f32 %v1062, %v1066
        %v1068 = vadd.f32 %v1067, 0.05243302
        %v1069 = vmul.f32 %v1062, %v1068
        %v1070 = vadd.f32 %v1069, 0.18741608
        %v1071 = vmul.f32 %v1062, %v1070
        %v1072 = vadd.f32 %v1071, 1.1283791
        %v1073 = vmul.f32 %v896, %v1072
        %v1074 = vmul.f32 %v1062, 3.8918573e-05
        %v1075 = vadd.f32 %v1074, 0.001143296
        %v1076 = vmul.f32 %v1062, %v1075
        %v1077 = vadd.f32 %v1076, 0.014752088
        %v1078 = vmul.f32 %v1062, %v1077
        %v1079 = vadd.f32 %v1078, 0.112945676
        %v1080 = vmul.f32 %v1062, %v1079
        %v1081 = vadd.f32 %v1080, 0.4994258
        %v1082 = vmul.f32 %v1062, %v1081
        %v1083 = vadd.f32 %v1082, 1.0
        %v1084 = vrcp.pop %v1083
        %v1085 = vmul.f32 %v1083, %v1084
        %v1086 = vsub.f32 1.0, %v1085
        %v1087 = vmul.f32 %v1084, %v1086
        %v1088 = vadd.f32 %v1084, %v1087
        %vm1089 = vweird.f32 %v1083
        %vm1090 = vweird.f32 %v1084
        %vm1091 = vmor %vm1089, %vm1090
        %v1092 = vsel %vm1091, %v1084, %v1088
        %v1093 = vand.u32 2147483647, %v1083
        %vm1094 = vcmp.eq.f32.partialorder %v1093, 8.507059e+37
        %v1095 = vand.u32 %v1083, 2147483648
        %v1096 = vor.u32 1.1754944e-38, %v1095
        %v1097 = vsel %vm1094, %v1096, %v1092
        %v1098 = vmul.f32 %v1073, %v1097
        %v1099 = vmin.f32 %v1098, 1.0
        %v1100 = vmax.f32 %v1099, -1.0
        %v1101 = vmul.f32 %v897, %v897
        %v1102 = vmin.f32 16.0, %v1101
        %v1103 = vmul.f32 %v1102, 2.1237322e-06
        %v1104 = vadd.f32 %v1103, 0.00028619796
        %v1105 = vmul.f32 %v1102, %v1104
        %v1106 = vadd.f32 %v1105, 0.0036580483
        %v1107 = vmul.f32 %v1102, %v1106
        %v1108 = vadd.f32 %v1107, 0.05243302
        %v1109 = vmul.f32 %v1102, %v1108
        %v1110 = vadd.f32 %v1109, 0.18741608
        %v1111 = vmul.f32 %v1102, %v1110
        %v1112 = vadd.f32 %v1111, 1.1283791
        %v1113 = vmul.f32 %v897, %v1112
        %v1114 = vmul.f32 %v1102, 3.8918573e-05
        %v1115 = vadd.f32 %v1114, 0.001143296
        %v1116 = vmul.f32 %v1102, %v1115
        %v1117 = vadd.f32 %v1116, 0.014752088
        %v1118 = vmul.f32 %v1102, %v1117
        %v1119 = vadd.f32 %v1118, 0.112945676
        %v1120 = vmul.f32 %v1102, %v1119
        %v1121 = vadd.f32 %v1120, 0.4994258
        %v1122 = vmul.f32 %v1102, %v1121
        %v1123 = vadd.f32 %v1122, 1.0
        %v1124 = vrcp.pop %v1123
        %v1125 = vmul.f32 %v1123, %v1124
        %v1126 = vsub.f32 1.0, %v1125
        %v1127 = vmul.f32 %v1124, %v1126
        %v1128 = vadd.f32 %v1124, %v1127
        %vm1129 = vweird.f32 %v1123
        %vm1130 = vweird.f32 %v1124
        %vm1131 = vmor %vm1129, %vm1130
        %v1132 = vsel %vm1131, %v1124, %v1128
        %v1133 = vand.u32 2147483647, %v1123
        %vm1134 = vcmp.eq.f32.partialorder %v1133, 8.507059e+37
        %v1135 = vand.u32 %v1123, 2147483648
        %v1136 = vor.u32 1.1754944e-38, %v1135
        %v1137 = vsel %vm1134, %v1136, %v1132
        %v1138 = vmul.f32 %v1113, %v1137
        %v1139 = vmin.f32 %v1138, 1.0
        %v1140 = vmax.f32 %v1139, -1.0
        %v1141 = vmul.f32 %v898, %v898
        %v1142 = vmin.f32 16.0, %v1141
        %v1143 = vmul.f32 %v1142, 2.1237322e-06
        %v1144 = vadd.f32 %v1143, 0.00028619796
        %v1145 = vmul.f32 %v1142, %v1144
        %v1146 = vadd.f32 %v1145, 0.0036580483
        %v1147 = vmul.f32 %v1142, %v1146
        %v1148 = vadd.f32 %v1147, 0.05243302
        %v1149 = vmul.f32 %v1142, %v1148
        %v1150 = vadd.f32 %v1149, 0.18741608
        %v1151 = vmul.f32 %v1142, %v1150
        %v1152 = vadd.f32 %v1151, 1.1283791
        %v1153 = vmul.f32 %v898, %v1152
        %v1154 = vmul.f32 %v1142, 3.8918573e-05
        %v1155 = vadd.f32 %v1154, 0.001143296
        %v1156 = vmul.f32 %v1142, %v1155
        %v1157 = vadd.f32 %v1156, 0.014752088
        %v1158 = vmul.f32 %v1142, %v1157
        %v1159 = vadd.f32 %v1158, 0.112945676
        %v1160 = vmul.f32 %v1142, %v1159
        %v1161 = vadd.f32 %v1160, 0.4994258
        %v1162 = vmul.f32 %v1142, %v1161
        %v1163 = vadd.f32 %v1162, 1.0
        %v1164 = vrcp.pop %v1163
        %v1165 = vmul.f32 %v1163, %v1164
        %v1166 = vsub.f32 1.0, %v1165
        %v1167 = vmul.f32 %v1164, %v1166
        %v1168 = vadd.f32 %v1164, %v1167
        %vm1169 = vweird.f32 %v1163
        %vm1170 = vweird.f32 %v1164
        %vm1171 = vmor %vm1169, %vm1170
        %v1172 = vsel %vm1171, %v1164, %v1168
        %v1173 = vand.u32 2147483647, %v1163
        %vm1174 = vcmp.eq.f32.partialorder %v1173, 8.507059e+37
        %v1175 = vand.u32 %v1163, 2147483648
        %v1176 = vor.u32 1.1754944e-38, %v1175
        %v1177 = vsel %vm1174, %v1176, %v1172
        %v1178 = vmul.f32 %v1153, %v1177
        %v1179 = vmin.f32 %v1178, 1.0
        %v1180 = vmax.f32 %v1179, -1.0
        %v1181 = vmul.f32 %v899, %v899
        %v1182 = vmin.f32 16.0, %v1181
        %v1183 = vmul.f32 %v1182, 2.1237322e-06
        %v1184 = vadd.f32 %v1183, 0.00028619796
        %v1185 = vmul.f32 %v1182, %v1184
        %v1186 = vadd.f32 %v1185, 0.0036580483
        %v1187 = vmul.f32 %v1182, %v1186
        %v1188 = vadd.f32 %v1187, 0.05243302
        %v1189 = vmul.f32 %v1182, %v1188
        %v1190 = vadd.f32 %v1189, 0.18741608
        %v1191 = vmul.f32 %v1182, %v1190
        %v1192 = vadd.f32 %v1191, 1.1283791
        %v1193 = vmul.f32 %v899, %v1192
        %v1194 = vmul.f32 %v1182, 3.8918573e-05
        %v1195 = vadd.f32 %v1194, 0.001143296
        %v1196 = vmul.f32 %v1182, %v1195
        %v1197 = vadd.f32 %v1196, 0.014752088
        %v1198 = vmul.f32 %v1182, %v1197
        %v1199 = vadd.f32 %v1198, 0.112945676
        %v1200 = vmul.f32 %v1182, %v1199
        %v1201 = vadd.f32 %v1200, 0.4994258
        %v1202 = vmul.f32 %v1182, %v1201
        %v1203 = vadd.f32 %v1202, 1.0
        %v1204 = vrcp.pop %v1203
        %v1205 = vmul.f32 %v1203, %v1204
        %v1206 = vsub.f32 1.0, %v1205
        %v1207 = vmul.f32 %v1204, %v1206
        %v1208 = vadd.f32 %v1204, %v1207
        %vm1209 = vweird.f32 %v1203
        %vm1210 = vweird.f32 %v1204
        %vm1211 = vmor %vm1209, %vm1210
        %v1212 = vsel %vm1211, %v1204, %v1208
        %v1213 = vand.u32 2147483647, %v1203
        %vm1214 = vcmp.eq.f32.partialorder %v1213, 8.507059e+37
        %v1215 = vand.u32 %v1203, 2147483648
        %v1216 = vor.u32 1.1754944e-38, %v1215
        %v1217 = vsel %vm1214, %v1216, %v1212
        %v1218 = vmul.f32 %v1193, %v1217
        %v1219 = vmin.f32 %v1218, 1.0
        %v1220 = vmax.f32 %v1219, -1.0
        %v1221 = vmul.f32 %v900, %v900
        %v1222 = vmin.f32 16.0, %v1221
        %v1223 = vmul.f32 %v1222, 2.1237322e-06
        %v1224 = vadd.f32 %v1223, 0.00028619796
        %v1225 = vmul.f32 %v1222, %v1224
        %v1226 = vadd.f32 %v1225, 0.0036580483
        %v1227 = vmul.f32 %v1222, %v1226
        %v1228 = vadd.f32 %v1227, 0.05243302
        %v1229 = vmul.f32 %v1222, %v1228
        %v1230 = vadd.f32 %v1229, 0.18741608
        %v1231 = vmul.f32 %v1222, %v1230
        %v1232 = vadd.f32 %v1231, 1.1283791
        %v1233 = vmul.f32 %v900, %v1232
        %v1234 = vmul.f32 %v1222, 3.8918573e-05
        %v1235 = vadd.f32 %v1234, 0.001143296
        %v1236 = vmul.f32 %v1222, %v1235
        %v1237 = vadd.f32 %v1236, 0.014752088
        %v1238 = vmul.f32 %v1222, %v1237
        %v1239 = vadd.f32 %v1238, 0.112945676
        %v1240 = vmul.f32 %v1222, %v1239
        %v1241 = vadd.f32 %v1240, 0.4994258
        %v1242 = vmul.f32 %v1222, %v1241
        %v1243 = vadd.f32 %v1242, 1.0
        %v1244 = vrcp.pop %v1243
        %v1245 = vmul.f32 %v1243, %v1244
        %v1246 = vsub.f32 1.0, %v1245
        %v1247 = vmul.f32 %v1244, %v1246
        %v1248 = vadd.f32 %v1244, %v1247
        %vm1249 = vweird.f32 %v1243
        %vm1250 = vweird.f32 %v1244
        %vm1251 = vmor %vm1249, %vm1250
        %v1252 = vsel %vm1251, %v1244, %v1248
        %v1253 = vand.u32 2147483647, %v1243
        %vm1254 = vcmp.eq.f32.partialorder %v1253, 8.507059e+37
        %v1255 = vand.u32 %v1243, 2147483648
        %v1256 = vor.u32 1.1754944e-38, %v1255
        %v1257 = vsel %vm1254, %v1256, %v1252
        %v1258 = vmul.f32 %v1233, %v1257
        %v1259 = vmin.f32 %v1258, 1.0
        %v1260 = vmax.f32 %v1259, -1.0
        %v1261 = vmul.f32 %v901, %v901
        %v1262 = vmin.f32 16.0, %v1261
        %v1263 = vmul.f32 %v1262, 2.1237322e-06
        %v1264 = vadd.f32 %v1263, 0.00028619796
        %v1265 = vmul.f32 %v1262, %v1264
        %v1266 = vadd.f32 %v1265, 0.0036580483
        %v1267 = vmul.f32 %v1262, %v1266
        %v1268 = vadd.f32 %v1267, 0.05243302
        %v1269 = vmul.f32 %v1262, %v1268
        %v1270 = vadd.f32 %v1269, 0.18741608
        %v1271 = vmul.f32 %v1262, %v1270
        %v1272 = vadd.f32 %v1271, 1.1283791
        %v1273 = vmul.f32 %v901, %v1272
        %v1274 = vmul.f32 %v1262, 3.8918573e-05
        %v1275 = vadd.f32 %v1274, 0.001143296
        %v1276 = vmul.f32 %v1262, %v1275
        %v1277 = vadd.f32 %v1276, 0.014752088
        %v1278 = vmul.f32 %v1262, %v1277
        %v1279 = vadd.f32 %v1278, 0.112945676
        %v1280 = vmul.f32 %v1262, %v1279
        %v1281 = vadd.f32 %v1280, 0.4994258
        %v1282 = vmul.f32 %v1262, %v1281
        %v1283 = vadd.f32 %v1282, 1.0
        %v1284 = vrcp.pop %v1283
        %v1285 = vmul.f32 %v1283, %v1284
        %v1286 = vsub.f32 1.0, %v1285
        %v1287 = vmul.f32 %v1284, %v1286
        %v1288 = vadd.f32 %v1284, %v1287
        %vm1289 = vweird.f32 %v1283
        %vm1290 = vweird.f32 %v1284
        %vm1291 = vmor %vm1289, %vm1290
        %v1292 = vsel %vm1291, %v1284, %v1288
        %v1293 = vand.u32 2147483647, %v1283
        %vm1294 = vcmp.eq.f32.partialorder %v1293, 8.507059e+37
        %v1295 = vand.u32 %v1283, 2147483648
        %v1296 = vor.u32 1.1754944e-38, %v1295
        %v1297 = vsel %vm1294, %v1296, %v1292
        %v1298 = vmul.f32 %v1273, %v1297
        %v1299 = vmin.f32 %v1298, 1.0
        %v1300 = vmax.f32 %v1299, -1.0
        %v1301 = vmul.f32 %v902, %v902
        %v1302 = vmin.f32 16.0, %v1301
        %v1303 = vmul.f32 %v1302, 2.1237322e-06
        %v1304 = vadd.f32 %v1303, 0.00028619796
        %v1305 = vmul.f32 %v1302, %v1304
        %v1306 = vadd.f32 %v1305, 0.0036580483
        %v1307 = vmul.f32 %v1302, %v1306
        %v1308 = vadd.f32 %v1307, 0.05243302
        %v1309 = vmul.f32 %v1302, %v1308
        %v1310 = vadd.f32 %v1309, 0.18741608
        %v1311 = vmul.f32 %v1302, %v1310
        %v1312 = vadd.f32 %v1311, 1.1283791
        %v1313 = vmul.f32 %v902, %v1312
        %v1314 = vmul.f32 %v1302, 3.8918573e-05
        %v1315 = vadd.f32 %v1314, 0.001143296
        %v1316 = vmul.f32 %v1302, %v1315
        %v1317 = vadd.f32 %v1316, 0.014752088
        %v1318 = vmul.f32 %v1302, %v1317
        %v1319 = vadd.f32 %v1318, 0.112945676
        %v1320 = vmul.f32 %v1302, %v1319
        %v1321 = vadd.f32 %v1320, 0.4994258
        %v1322 = vmul.f32 %v1302, %v1321
        %v1323 = vadd.f32 %v1322, 1.0
        %v1324 = vrcp.pop %v1323
        %v1325 = vmul.f32 %v1323, %v1324
        %v1326 = vsub.f32 1.0, %v1325
        %v1327 = vmul.f32 %v1324, %v1326
        %v1328 = vadd.f32 %v1324, %v1327
        %vm1329 = vweird.f32 %v1323
        %vm1330 = vweird.f32 %v1324
        %vm1331 = vmor %vm1329, %vm1330
        %v1332 = vsel %vm1331, %v1324, %v1328
        %v1333 = vand.u32 2147483647, %v1323
        %vm1334 = vcmp.eq.f32.partialorder %v1333, 8.507059e+37
        %v1335 = vand.u32 %v1323, 2147483648
        %v1336 = vor.u32 1.1754944e-38, %v1335
        %v1337 = vsel %vm1334, %v1336, %v1332
        %v1338 = vmul.f32 %v1313, %v1337
        %v1339 = vmin.f32 %v1338, 1.0
        %v1340 = vmax.f32 %v1339, -1.0
        %v1341 = vmul.f32 %v903, %v903
        %v1342 = vmin.f32 16.0, %v1341
        %v1343 = vmul.f32 %v1342, 2.1237322e-06
        %v1344 = vadd.f32 %v1343, 0.00028619796
        %v1345 = vmul.f32 %v1342, %v1344
        %v1346 = vadd.f32 %v1345, 0.0036580483
        %v1347 = vmul.f32 %v1342, %v1346
        %v1348 = vadd.f32 %v1347, 0.05243302
        %v1349 = vmul.f32 %v1342, %v1348
        %v1350 = vadd.f32 %v1349, 0.18741608
        %v1351 = vmul.f32 %v1342, %v1350
        %v1352 = vadd.f32 %v1351, 1.1283791
        %v1353 = vmul.f32 %v903, %v1352
        %v1354 = vmul.f32 %v1342, 3.8918573e-05
        %v1355 = vadd.f32 %v1354, 0.001143296
        %v1356 = vmul.f32 %v1342, %v1355
        %v1357 = vadd.f32 %v1356, 0.014752088
        %v1358 = vmul.f32 %v1342, %v1357
        %v1359 = vadd.f32 %v1358, 0.112945676
        %v1360 = vmul.f32 %v1342, %v1359
        %v1361 = vadd.f32 %v1360, 0.4994258
        %v1362 = vmul.f32 %v1342, %v1361
        %v1363 = vadd.f32 %v1362, 1.0
        %v1364 = vrcp.pop %v1363
        %v1365 = vmul.f32 %v1363, %v1364
        %v1366 = vsub.f32 1.0, %v1365
        %v1367 = vmul.f32 %v1364, %v1366
        %v1368 = vadd.f32 %v1364, %v1367
        %vm1369 = vweird.f32 %v1363
        %vm1370 = vweird.f32 %v1364
        %vm1371 = vmor %vm1369, %vm1370
        %v1372 = vsel %vm1371, %v1364, %v1368
        %v1373 = vand.u32 2147483647, %v1363
        %vm1374 = vcmp.eq.f32.partialorder %v1373, 8.507059e+37
        %v1375 = vand.u32 %v1363, 2147483648
        %v1376 = vor.u32 1.1754944e-38, %v1375
        %v1377 = vsel %vm1374, %v1376, %v1372
        %v1378 = vmul.f32 %v1353, %v1377
        %v1379 = vmin.f32 %v1378, 1.0
        %v1380 = vmax.f32 %v1379, -1.0
        %v1381 = vmul.f32 %v904, %v904
        %v1382 = vmin.f32 16.0, %v1381
        %v1383 = vmul.f32 %v1382, 2.1237322e-06
        %v1384 = vadd.f32 %v1383, 0.00028619796
        %v1385 = vmul.f32 %v1382, %v1384
        %v1386 = vadd.f32 %v1385, 0.0036580483
        %v1387 = vmul.f32 %v1382, %v1386
        %v1388 = vadd.f32 %v1387, 0.05243302
        %v1389 = vmul.f32 %v1382, %v1388
        %v1390 = vadd.f32 %v1389, 0.18741608
        %v1391 = vmul.f32 %v1382, %v1390
        %v1392 = vadd.f32 %v1391, 1.1283791
        %v1393 = vmul.f32 %v904, %v1392
        %v1394 = vmul.f32 %v1382, 3.8918573e-05
        %v1395 = vadd.f32 %v1394, 0.001143296
        %v1396 = vmul.f32 %v1382, %v1395
        %v1397 = vadd.f32 %v1396, 0.014752088
        %v1398 = vmul.f32 %v1382, %v1397
        %v1399 = vadd.f32 %v1398, 0.112945676
        %v1400 = vmul.f32 %v1382, %v1399
        %v1401 = vadd.f32 %v1400, 0.4994258
        %v1402 = vmul.f32 %v1382, %v1401
        %v1403 = vadd.f32 %v1402, 1.0
        %v1404 = vrcp.pop %v1403
        %v1405 = vmul.f32 %v1403, %v1404
        %v1406 = vsub.f32 1.0, %v1405
        %v1407 = vmul.f32 %v1404, %v1406
        %v1408 = vadd.f32 %v1404, %v1407
        %vm1409 = vweird.f32 %v1403
        %vm1410 = vweird.f32 %v1404
        %vm1411 = vmor %vm1409, %vm1410
        %v1412 = vsel %vm1411, %v1404, %v1408
        %v1413 = vand.u32 2147483647, %v1403
        %vm1414 = vcmp.eq.f32.partialorder %v1413, 8.507059e+37
        %v1415 = vand.u32 %v1403, 2147483648
        %v1416 = vor.u32 1.1754944e-38, %v1415
        %v1417 = vsel %vm1414, %v1416, %v1412
        %v1418 = vmul.f32 %v1393, %v1417
        %v1419 = vmin.f32 %v1418, 1.0
        %v1420 = vmax.f32 %v1419, -1.0
        %v1421 = vmul.f32 %v905, %v905
        %v1422 = vmin.f32 16.0, %v1421
        %v1423 = vmul.f32 %v1422, 2.1237322e-06
        %v1424 = vadd.f32 %v1423, 0.00028619796
        %v1425 = vmul.f32 %v1422, %v1424
        %v1426 = vadd.f32 %v1425, 0.0036580483
        %v1427 = vmul.f32 %v1422, %v1426
        %v1428 = vadd.f32 %v1427, 0.05243302
        %v1429 = vmul.f32 %v1422, %v1428
        %v1430 = vadd.f32 %v1429, 0.18741608
        %v1431 = vmul.f32 %v1422, %v1430
        %v1432 = vadd.f32 %v1431, 1.1283791
        %v1433 = vmul.f32 %v905, %v1432
        %v1434 = vmul.f32 %v1422, 3.8918573e-05
        %v1435 = vadd.f32 %v1434, 0.001143296
        %v1436 = vmul.f32 %v1422, %v1435
        %v1437 = vadd.f32 %v1436, 0.014752088
        %v1438 = vmul.f32 %v1422, %v1437
        %v1439 = vadd.f32 %v1438, 0.112945676
        %v1440 = vmul.f32 %v1422, %v1439
        %v1441 = vadd.f32 %v1440, 0.4994258
        %v1442 = vmul.f32 %v1422, %v1441
        %v1443 = vadd.f32 %v1442, 1.0
        %v1444 = vrcp.pop %v1443
        %v1445 = vmul.f32 %v1443, %v1444
        %v1446 = vsub.f32 1.0, %v1445
        %v1447 = vmul.f32 %v1444, %v1446
        %v1448 = vadd.f32 %v1444, %v1447
        %vm1449 = vweird.f32 %v1443
        %vm1450 = vweird.f32 %v1444
        %vm1451 = vmor %vm1449, %vm1450
        %v1452 = vsel %vm1451, %v1444, %v1448
        %v1453 = vand.u32 2147483647, %v1443
        %vm1454 = vcmp.eq.f32.partialorder %v1453, 8.507059e+37
        %v1455 = vand.u32 %v1443, 2147483648
        %v1456 = vor.u32 1.1754944e-38, %v1455
        %v1457 = vsel %vm1454, %v1456, %v1452
        %v1458 = vmul.f32 %v1433, %v1457
        %v1459 = vmin.f32 %v1458, 1.0
        %v1460 = vmax.f32 %v1459, -1.0
        %v1461 = vmul.f32 %v906, %v906
        %v1462 = vmin.f32 16.0, %v1461
        %v1463 = vmul.f32 %v1462, 2.1237322e-06
        %v1464 = vadd.f32 %v1463, 0.00028619796
        %v1465 = vmul.f32 %v1462, %v1464
        %v1466 = vadd.f32 %v1465, 0.0036580483
        %v1467 = vmul.f32 %v1462, %v1466
        %v1468 = vadd.f32 %v1467, 0.05243302
        %v1469 = vmul.f32 %v1462, %v1468
        %v1470 = vadd.f32 %v1469, 0.18741608
        %v1471 = vmul.f32 %v1462, %v1470
        %v1472 = vadd.f32 %v1471, 1.1283791
        %v1473 = vmul.f32 %v906, %v1472
        %v1474 = vmul.f32 %v1462, 3.8918573e-05
        %v1475 = vadd.f32 %v1474, 0.001143296
        %v1476 = vmul.f32 %v1462, %v1475
        %v1477 = vadd.f32 %v1476, 0.014752088
        %v1478 = vmul.f32 %v1462, %v1477
        %v1479 = vadd.f32 %v1478, 0.112945676
        %v1480 = vmul.f32 %v1462, %v1479
        %v1481 = vadd.f32 %v1480, 0.4994258
        %v1482 = vmul.f32 %v1462, %v1481
        %v1483 = vadd.f32 %v1482, 1.0
        %v1484 = vrcp.pop %v1483
        %v1485 = vmul.f32 %v1483, %v1484
        %v1486 = vsub.f32 1.0, %v1485
        %v1487 = vmul.f32 %v1484, %v1486
        %v1488 = vadd.f32 %v1484, %v1487
        %vm1489 = vweird.f32 %v1483
        %vm1490 = vweird.f32 %v1484
        %vm1491 = vmor %vm1489, %vm1490
        %v1492 = vsel %vm1491, %v1484, %v1488
        %v1493 = vand.u32 2147483647, %v1483
        %vm1494 = vcmp.eq.f32.partialorder %v1493, 8.507059e+37
        %v1495 = vand.u32 %v1483, 2147483648
        %v1496 = vor.u32 1.1754944e-38, %v1495
        %v1497 = vsel %vm1494, %v1496, %v1492
        %v1498 = vmul.f32 %v1473, %v1497
        %v1499 = vmin.f32 %v1498, 1.0
        %v1500 = vmax.f32 %v1499, -1.0
        %v1501 = vmul.f32 %v907, %v907
        %v1502 = vmin.f32 16.0, %v1501
        %v1503 = vmul.f32 %v1502, 2.1237322e-06
        %v1504 = vadd.f32 %v1503, 0.00028619796
        %v1505 = vmul.f32 %v1502, %v1504
        %v1506 = vadd.f32 %v1505, 0.0036580483
        %v1507 = vmul.f32 %v1502, %v1506
        %v1508 = vadd.f32 %v1507, 0.05243302
        %v1509 = vmul.f32 %v1502, %v1508
        %v1510 = vadd.f32 %v1509, 0.18741608
        %v1511 = vmul.f32 %v1502, %v1510
        %v1512 = vadd.f32 %v1511, 1.1283791
        %v1513 = vmul.f32 %v907, %v1512
        %v1514 = vmul.f32 %v1502, 3.8918573e-05
        %v1515 = vadd.f32 %v1514, 0.001143296
        %v1516 = vmul.f32 %v1502, %v1515
        %v1517 = vadd.f32 %v1516, 0.014752088
        %v1518 = vmul.f32 %v1502, %v1517
        %v1519 = vadd.f32 %v1518, 0.112945676
        %v1520 = vmul.f32 %v1502, %v1519
        %v1521 = vadd.f32 %v1520, 0.4994258
        %v1522 = vmul.f32 %v1502, %v1521
        %v1523 = vadd.f32 %v1522, 1.0
        %v1524 = vrcp.pop %v1523
        %v1525 = vmul.f32 %v1523, %v1524
        %v1526 = vsub.f32 1.0, %v1525
        %v1527 = vmul.f32 %v1524, %v1526
        %v1528 = vadd.f32 %v1524, %v1527
        %vm1529 = vweird.f32 %v1523
        %vm1530 = vweird.f32 %v1524
        %vm1531 = vmor %vm1529, %vm1530
        %v1532 = vsel %vm1531, %v1524, %v1528
        %v1533 = vand.u32 2147483647, %v1523
        %vm1534 = vcmp.eq.f32.partialorder %v1533, 8.507059e+37
        %v1535 = vand.u32 %v1523, 2147483648
        %v1536 = vor.u32 1.1754944e-38, %v1535
        %v1537 = vsel %vm1534, %v1536, %v1532
        %v1538 = vmul.f32 %v1513, %v1537
        %v1539 = vmin.f32 %v1538, 1.0
        %v1540 = vmax.f32 %v1539, -1.0
        %v1541 = vmul.f32 %v908, %v908
        %v1542 = vmin.f32 16.0, %v1541
        %v1543 = vmul.f32 %v1542, 2.1237322e-06
        %v1544 = vadd.f32 %v1543, 0.00028619796
        %v1545 = vmul.f32 %v1542, %v1544
        %v1546 = vadd.f32 %v1545, 0.0036580483
        %v1547 = vmul.f32 %v1542, %v1546
        %v1548 = vadd.f32 %v1547, 0.05243302
        %v1549 = vmul.f32 %v1542, %v1548
        %v1550 = vadd.f32 %v1549, 0.18741608
        %v1551 = vmul.f32 %v1542, %v1550
        %v1552 = vadd.f32 %v1551, 1.1283791
        %v1553 = vmul.f32 %v908, %v1552
        %v1554 = vmul.f32 %v1542, 3.8918573e-05
        %v1555 = vadd.f32 %v1554, 0.001143296
        %v1556 = vmul.f32 %v1542, %v1555
        %v1557 = vadd.f32 %v1556, 0.014752088
        %v1558 = vmul.f32 %v1542, %v1557
        %v1559 = vadd.f32 %v1558, 0.112945676
        %v1560 = vmul.f32 %v1542, %v1559
        %v1561 = vadd.f32 %v1560, 0.4994258
        %v1562 = vmul.f32 %v1542, %v1561
        %v1563 = vadd.f32 %v1562, 1.0
        %v1564 = vrcp.pop %v1563
        %v1565 = vmul.f32 %v1563, %v1564
        %v1566 = vsub.f32 1.0, %v1565
        %v1567 = vmul.f32 %v1564, %v1566
        %v1568 = vadd.f32 %v1564, %v1567
        %vm1569 = vweird.f32 %v1563
        %vm1570 = vweird.f32 %v1564
        %vm1571 = vmor %vm1569, %vm1570
        %v1572 = vsel %vm1571, %v1564, %v1568
        %v1573 = vand.u32 2147483647, %v1563
        %vm1574 = vcmp.eq.f32.partialorder %v1573, 8.507059e+37
        %v1575 = vand.u32 %v1563, 2147483648
        %v1576 = vor.u32 1.1754944e-38, %v1575
        %v1577 = vsel %vm1574, %v1576, %v1572
        %v1578 = vmul.f32 %v1553, %v1577
        %v1579 = vmin.f32 %v1578, 1.0
        %v1580 = vmax.f32 %v1579, -1.0
        %v1581 = vmul.f32 %v909, %v909
        %v1582 = vmin.f32 16.0, %v1581
        %v1583 = vmul.f32 %v1582, 2.1237322e-06
        %v1584 = vadd.f32 %v1583, 0.00028619796
        %v1585 = vmul.f32 %v1582, %v1584
        %v1586 = vadd.f32 %v1585, 0.0036580483
        %v1587 = vmul.f32 %v1582, %v1586
        %v1588 = vadd.f32 %v1587, 0.05243302
        %v1589 = vmul.f32 %v1582, %v1588
        %v1590 = vadd.f32 %v1589, 0.18741608
        %v1591 = vmul.f32 %v1582, %v1590
        %v1592 = vadd.f32 %v1591, 1.1283791
        %v1593 = vmul.f32 %v909, %v1592
        %v1594 = vmul.f32 %v1582, 3.8918573e-05
        %v1595 = vadd.f32 %v1594, 0.001143296
        %v1596 = vmul.f32 %v1582, %v1595
        %v1597 = vadd.f32 %v1596, 0.014752088
        %v1598 = vmul.f32 %v1582, %v1597
        %v1599 = vadd.f32 %v1598, 0.112945676
        %v1600 = vmul.f32 %v1582, %v1599
        %v1601 = vadd.f32 %v1600, 0.4994258
        %v1602 = vmul.f32 %v1582, %v1601
        %v1603 = vadd.f32 %v1602, 1.0
        %v1604 = vrcp.pop %v1603
        %v1605 = vmul.f32 %v1603, %v1604
        %v1606 = vsub.f32 1.0, %v1605
        %v1607 = vmul.f32 %v1604, %v1606
        %v1608 = vadd.f32 %v1604, %v1607
        %vm1609 = vweird.f32 %v1603
        %vm1610 = vweird.f32 %v1604
        %vm1611 = vmor %vm1609, %vm1610
        %v1612 = vsel %vm1611, %v1604, %v1608
        %v1613 = vand.u32 2147483647, %v1603
        %vm1614 = vcmp.eq.f32.partialorder %v1613, 8.507059e+37
        %v1615 = vand.u32 %v1603, 2147483648
        %v1616 = vor.u32 1.1754944e-38, %v1615
        %v1617 = vsel %vm1614, %v1616, %v1612
        %v1618 = vmul.f32 %v1593, %v1617
        %v1619 = vmin.f32 %v1618, 1.0
        %v1620 = vmax.f32 %v1619, -1.0
        %v1621 = vmul.f32 %v910, %v910
        %v1622 = vmin.f32 16.0, %v1621
        %v1623 = vmul.f32 %v1622, 2.1237322e-06
        %v1624 = vadd.f32 %v1623, 0.00028619796
        %v1625 = vmul.f32 %v1622, %v1624
        %v1626 = vadd.f32 %v1625, 0.0036580483
        %v1627 = vmul.f32 %v1622, %v1626
        %v1628 = vadd.f32 %v1627, 0.05243302
        %v1629 = vmul.f32 %v1622, %v1628
        %v1630 = vadd.f32 %v1629, 0.18741608
        %v1631 = vmul.f32 %v1622, %v1630
        %v1632 = vadd.f32 %v1631, 1.1283791
        %v1633 = vmul.f32 %v910, %v1632
        %v1634 = vmul.f32 %v1622, 3.8918573e-05
        %v1635 = vadd.f32 %v1634, 0.001143296
        %v1636 = vmul.f32 %v1622, %v1635
        %v1637 = vadd.f32 %v1636, 0.014752088
        %v1638 = vmul.f32 %v1622, %v1637
        %v1639 = vadd.f32 %v1638, 0.112945676
        %v1640 = vmul.f32 %v1622, %v1639
        %v1641 = vadd.f32 %v1640, 0.4994258
        %v1642 = vmul.f32 %v1622, %v1641
        %v1643 = vadd.f32 %v1642, 1.0
        %v1644 = vrcp.pop %v1643
        %v1645 = vmul.f32 %v1643, %v1644
        %v1646 = vsub.f32 1.0, %v1645
        %v1647 = vmul.f32 %v1644, %v1646
        %v1648 = vadd.f32 %v1644, %v1647
        %vm1649 = vweird.f32 %v1643
        %vm1650 = vweird.f32 %v1644
        %vm1651 = vmor %vm1649, %vm1650
        %v1652 = vsel %vm1651, %v1644, %v1648
        %v1653 = vand.u32 2147483647, %v1643
        %vm1654 = vcmp.eq.f32.partialorder %v1653, 8.507059e+37
        %v1655 = vand.u32 %v1643, 2147483648
        %v1656 = vor.u32 1.1754944e-38, %v1655
        %v1657 = vsel %vm1654, %v1656, %v1652
        %v1658 = vmul.f32 %v1633, %v1657
        %v1659 = vmin.f32 %v1658, 1.0
        %v1660 = vmax.f32 %v1659, -1.0
        %v1661 = vmul.f32 %v911, %v911
        %v1662 = vmin.f32 16.0, %v1661
        %v1663 = vmul.f32 %v1662, 2.1237322e-06
        %v1664 = vadd.f32 %v1663, 0.00028619796
        %v1665 = vmul.f32 %v1662, %v1664
        %v1666 = vadd.f32 %v1665, 0.0036580483
        %v1667 = vmul.f32 %v1662, %v1666
        %v1668 = vadd.f32 %v1667, 0.05243302
        %v1669 = vmul.f32 %v1662, %v1668
        %v1670 = vadd.f32 %v1669, 0.18741608
        %v1671 = vmul.f32 %v1662, %v1670
        %v1672 = vadd.f32 %v1671, 1.1283791
        %v1673 = vmul.f32 %v911, %v1672
        %v1674 = vmul.f32 %v1662, 3.8918573e-05
        %v1675 = vadd.f32 %v1674, 0.001143296
        %v1676 = vmul.f32 %v1662, %v1675
        %v1677 = vadd.f32 %v1676, 0.014752088
        %v1678 = vmul.f32 %v1662, %v1677
        %v1679 = vadd.f32 %v1678, 0.112945676
        %v1680 = vmul.f32 %v1662, %v1679
        %v1681 = vadd.f32 %v1680, 0.4994258
        %v1682 = vmul.f32 %v1662, %v1681
        %v1683 = vadd.f32 %v1682, 1.0
        %v1684 = vrcp.pop %v1683
        %v1685 = vmul.f32 %v1683, %v1684
        %v1686 = vsub.f32 1.0, %v1685
        %v1687 = vmul.f32 %v1684, %v1686
        %v1688 = vadd.f32 %v1684, %v1687
        %vm1689 = vweird.f32 %v1683
        %vm1690 = vweird.f32 %v1684
        %vm1691 = vmor %vm1689, %vm1690
        %v1692 = vsel %vm1691, %v1684, %v1688
        %v1693 = vand.u32 2147483647, %v1683
        %vm1694 = vcmp.eq.f32.partialorder %v1693, 8.507059e+37
        %v1695 = vand.u32 %v1683, 2147483648
        %v1696 = vor.u32 1.1754944e-38, %v1695
        %v1697 = vsel %vm1694, %v1696, %v1692
        %v1698 = vmul.f32 %v1673, %v1697
        %v1699 = vmin.f32 %v1698, 1.0
        %v1700 = vmax.f32 %v1699, -1.0
        %v1701 = vmul.f32 %v912, %v912
        %v1702 = vmin.f32 16.0, %v1701
        %v1703 = vmul.f32 %v1702, 2.1237322e-06
        %v1704 = vadd.f32 %v1703, 0.00028619796
        %v1705 = vmul.f32 %v1702, %v1704
        %v1706 = vadd.f32 %v1705, 0.0036580483
        %v1707 = vmul.f32 %v1702, %v1706
        %v1708 = vadd.f32 %v1707, 0.05243302
        %v1709 = vmul.f32 %v1702, %v1708
        %v1710 = vadd.f32 %v1709, 0.18741608
        %v1711 = vmul.f32 %v1702, %v1710
        %v1712 = vadd.f32 %v1711, 1.1283791
        %v1713 = vmul.f32 %v912, %v1712
        %v1714 = vmul.f32 %v1702, 3.8918573e-05
        %v1715 = vadd.f32 %v1714, 0.001143296
        %v1716 = vmul.f32 %v1702, %v1715
        %v1717 = vadd.f32 %v1716, 0.014752088
        %v1718 = vmul.f32 %v1702, %v1717
        %v1719 = vadd.f32 %v1718, 0.112945676
        %v1720 = vmul.f32 %v1702, %v1719
        %v1721 = vadd.f32 %v1720, 0.4994258
        %v1722 = vmul.f32 %v1702, %v1721
        %v1723 = vadd.f32 %v1722, 1.0
        %v1724 = vrcp.pop %v1723
        %v1725 = vmul.f32 %v1723, %v1724
        %v1726 = vsub.f32 1.0, %v1725
        %v1727 = vmul.f32 %v1724, %v1726
        %v1728 = vadd.f32 %v1724, %v1727
        %vm1729 = vweird.f32 %v1723
        %vm1730 = vweird.f32 %v1724
        %vm1731 = vmor %vm1729, %vm1730
        %v1732 = vsel %vm1731, %v1724, %v1728
        %v1733 = vand.u32 2147483647, %v1723
        %vm1734 = vcmp.eq.f32.partialorder %v1733, 8.507059e+37
        %v1735 = vand.u32 %v1723, 2147483648
        %v1736 = vor.u32 1.1754944e-38, %v1735
        %v1737 = vsel %vm1734, %v1736, %v1732
        %v1738 = vmul.f32 %v1713, %v1737
        %v1739 = vmin.f32 %v1738, 1.0
        %v1740 = vmax.f32 %v1739, -1.0
        %v1741 = vmul.f32 %v913, %v913
        %v1742 = vmin.f32 16.0, %v1741
        %v1743 = vmul.f32 %v1742, 2.1237322e-06
        %v1744 = vadd.f32 %v1743, 0.00028619796
        %v1745 = vmul.f32 %v1742, %v1744
        %v1746 = vadd.f32 %v1745, 0.0036580483
        %v1747 = vmul.f32 %v1742, %v1746
        %v1748 = vadd.f32 %v1747, 0.05243302
        %v1749 = vmul.f32 %v1742, %v1748
        %v1750 = vadd.f32 %v1749, 0.18741608
        %v1751 = vmul.f32 %v1742, %v1750
        %v1752 = vadd.f32 %v1751, 1.1283791
        %v1753 = vmul.f32 %v913, %v1752
        %v1754 = vmul.f32 %v1742, 3.8918573e-05
        %v1755 = vadd.f32 %v1754, 0.001143296
        %v1756 = vmul.f32 %v1742, %v1755
        %v1757 = vadd.f32 %v1756, 0.014752088
        %v1758 = vmul.f32 %v1742, %v1757
        %v1759 = vadd.f32 %v1758, 0.112945676
        %v1760 = vmul.f32 %v1742, %v1759
        %v1761 = vadd.f32 %v1760, 0.4994258
        %v1762 = vmul.f32 %v1742, %v1761
        %v1763 = vadd.f32 %v1762, 1.0
        %v1764 = vrcp.pop %v1763
        %v1765 = vmul.f32 %v1763, %v1764
        %v1766 = vsub.f32 1.0, %v1765
        %v1767 = vmul.f32 %v1764, %v1766
        %v1768 = vadd.f32 %v1764, %v1767
        %vm1769 = vweird.f32 %v1763
        %vm1770 = vweird.f32 %v1764
        %vm1771 = vmor %vm1769, %vm1770
        %v1772 = vsel %vm1771, %v1764, %v1768
        %v1773 = vand.u32 2147483647, %v1763
        %vm1774 = vcmp.eq.f32.partialorder %v1773, 8.507059e+37
        %v1775 = vand.u32 %v1763, 2147483648
        %v1776 = vor.u32 1.1754944e-38, %v1775
        %v1777 = vsel %vm1774, %v1776, %v1772
        %v1778 = vmul.f32 %v1753, %v1777
        %v1779 = vmin.f32 %v1778, 1.0
        %v1780 = vmax.f32 %v1779, -1.0
        %v1781 = vmul.f32 %v914, %v914
        %v1782 = vmin.f32 16.0, %v1781
        %v1783 = vmul.f32 %v1782, 2.1237322e-06
        %v1784 = vadd.f32 %v1783, 0.00028619796
        %v1785 = vmul.f32 %v1782, %v1784
        %v1786 = vadd.f32 %v1785, 0.0036580483
        %v1787 = vmul.f32 %v1782, %v1786
        %v1788 = vadd.f32 %v1787, 0.05243302
        %v1789 = vmul.f32 %v1782, %v1788
        %v1790 = vadd.f32 %v1789, 0.18741608
        %v1791 = vmul.f32 %v1782, %v1790
        %v1792 = vadd.f32 %v1791, 1.1283791
        %v1793 = vmul.f32 %v914, %v1792
        %v1794 = vmul.f32 %v1782, 3.8918573e-05
        %v1795 = vadd.f32 %v1794, 0.001143296
        %v1796 = vmul.f32 %v1782, %v1795
        %v1797 = vadd.f32 %v1796, 0.014752088
        %v1798 = vmul.f32 %v1782, %v1797
        %v1799 = vadd.f32 %v1798, 0.112945676
        %v1800 = vmul.f32 %v1782, %v1799
        %v1801 = vadd.f32 %v1800, 0.4994258
        %v1802 = vmul.f32 %v1782, %v1801
        %v1803 = vadd.f32 %v1802, 1.0
        %v1804 = vrcp.pop %v1803
        %v1805 = vmul.f32 %v1803, %v1804
        %v1806 = vsub.f32 1.0, %v1805
        %v1807 = vmul.f32 %v1804, %v1806
        %v1808 = vadd.f32 %v1804, %v1807
        %vm1809 = vweird.f32 %v1803
        %vm1810 = vweird.f32 %v1804
        %vm1811 = vmor %vm1809, %vm1810
        %v1812 = vsel %vm1811, %v1804, %v1808
        %v1813 = vand.u32 2147483647, %v1803
        %vm1814 = vcmp.eq.f32.partialorder %v1813, 8.507059e+37
        %v1815 = vand.u32 %v1803, 2147483648
        %v1816 = vor.u32 1.1754944e-38, %v1815
        %v1817 = vsel %vm1814, %v1816, %v1812
        %v1818 = vmul.f32 %v1793, %v1817
        %v1819 = vmin.f32 %v1818, 1.0
        %v1820 = vmax.f32 %v1819, -1.0
        %v1821 = vmul.f32 %v915, %v915
        %v1822 = vmin.f32 16.0, %v1821
        %v1823 = vmul.f32 %v1822, 2.1237322e-06
        %v1824 = vadd.f32 %v1823, 0.00028619796
        %v1825 = vmul.f32 %v1822, %v1824
        %v1826 = vadd.f32 %v1825, 0.0036580483
        %v1827 = vmul.f32 %v1822, %v1826
        %v1828 = vadd.f32 %v1827, 0.05243302
        %v1829 = vmul.f32 %v1822, %v1828
        %v1830 = vadd.f32 %v1829, 0.18741608
        %v1831 = vmul.f32 %v1822, %v1830
        %v1832 = vadd.f32 %v1831, 1.1283791
        %v1833 = vmul.f32 %v915, %v1832
        %v1834 = vmul.f32 %v1822, 3.8918573e-05
        %v1835 = vadd.f32 %v1834, 0.001143296
        %v1836 = vmul.f32 %v1822, %v1835
        %v1837 = vadd.f32 %v1836, 0.014752088
        %v1838 = vmul.f32 %v1822, %v1837
        %v1839 = vadd.f32 %v1838, 0.112945676
        %v1840 = vmul.f32 %v1822, %v1839
        %v1841 = vadd.f32 %v1840, 0.4994258
        %v1842 = vmul.f32 %v1822, %v1841
        %v1843 = vadd.f32 %v1842, 1.0
        %v1844 = vrcp.pop %v1843
        %v1845 = vmul.f32 %v1843, %v1844
        %v1846 = vsub.f32 1.0, %v1845
        %v1847 = vmul.f32 %v1844, %v1846
        %v1848 = vadd.f32 %v1844, %v1847
        %vm1849 = vweird.f32 %v1843
        %vm1850 = vweird.f32 %v1844
        %vm1851 = vmor %vm1849, %vm1850
        %v1852 = vsel %vm1851, %v1844, %v1848
        %v1853 = vand.u32 2147483647, %v1843
        %vm1854 = vcmp.eq.f32.partialorder %v1853, 8.507059e+37
        %v1855 = vand.u32 %v1843, 2147483648
        %v1856 = vor.u32 1.1754944e-38, %v1855
        %v1857 = vsel %vm1854, %v1856, %v1852
        %v1858 = vmul.f32 %v1833, %v1857
        %v1859 = vmin.f32 %v1858, 1.0
        %v1860 = vmax.f32 %v1859, -1.0
        %v1861 = vmul.f32 %v916, %v916
        %v1862 = vmin.f32 16.0, %v1861
        %v1863 = vmul.f32 %v1862, 2.1237322e-06
        %v1864 = vadd.f32 %v1863, 0.00028619796
        %v1865 = vmul.f32 %v1862, %v1864
        %v1866 = vadd.f32 %v1865, 0.0036580483
        %v1867 = vmul.f32 %v1862, %v1866
        %v1868 = vadd.f32 %v1867, 0.05243302
        %v1869 = vmul.f32 %v1862, %v1868
        %v1870 = vadd.f32 %v1869, 0.18741608
        %v1871 = vmul.f32 %v1862, %v1870
        %v1872 = vadd.f32 %v1871, 1.1283791
        %v1873 = vmul.f32 %v916, %v1872
        %v1874 = vmul.f32 %v1862, 3.8918573e-05
        %v1875 = vadd.f32 %v1874, 0.001143296
        %v1876 = vmul.f32 %v1862, %v1875
        %v1877 = vadd.f32 %v1876, 0.014752088
        %v1878 = vmul.f32 %v1862, %v1877
        %v1879 = vadd.f32 %v1878, 0.112945676
        %v1880 = vmul.f32 %v1862, %v1879
        %v1881 = vadd.f32 %v1880, 0.4994258
        %v1882 = vmul.f32 %v1862, %v1881
        %v1883 = vadd.f32 %v1882, 1.0
        %v1884 = vrcp.pop %v1883
        %v1885 = vmul.f32 %v1883, %v1884
        %v1886 = vsub.f32 1.0, %v1885
        %v1887 = vmul.f32 %v1884, %v1886
        %v1888 = vadd.f32 %v1884, %v1887
        %vm1889 = vweird.f32 %v1883
        %vm1890 = vweird.f32 %v1884
        %vm1891 = vmor %vm1889, %vm1890
        %v1892 = vsel %vm1891, %v1884, %v1888
        %v1893 = vand.u32 2147483647, %v1883
        %vm1894 = vcmp.eq.f32.partialorder %v1893, 8.507059e+37
        %v1895 = vand.u32 %v1883, 2147483648
        %v1896 = vor.u32 1.1754944e-38, %v1895
        %v1897 = vsel %vm1894, %v1896, %v1892
        %v1898 = vmul.f32 %v1873, %v1897
        %v1899 = vmin.f32 %v1898, 1.0
        %v1900 = vmax.f32 %v1899, -1.0
        %v1901 = vmul.f32 %v917, %v917
        %v1902 = vmin.f32 16.0, %v1901
        %v1903 = vmul.f32 %v1902, 2.1237322e-06
        %v1904 = vadd.f32 %v1903, 0.00028619796
        %v1905 = vmul.f32 %v1902, %v1904
        %v1906 = vadd.f32 %v1905, 0.0036580483
        %v1907 = vmul.f32 %v1902, %v1906
        %v1908 = vadd.f32 %v1907, 0.05243302
        %v1909 = vmul.f32 %v1902, %v1908
        %v1910 = vadd.f32 %v1909, 0.18741608
        %v1911 = vmul.f32 %v1902, %v1910
        %v1912 = vadd.f32 %v1911, 1.1283791
        %v1913 = vmul.f32 %v917, %v1912
        %v1914 = vmul.f32 %v1902, 3.8918573e-05
        %v1915 = vadd.f32 %v1914, 0.001143296
        %v1916 = vmul.f32 %v1902, %v1915
        %v1917 = vadd.f32 %v1916, 0.014752088
        %v1918 = vmul.f32 %v1902, %v1917
        %v1919 = vadd.f32 %v1918, 0.112945676
        %v1920 = vmul.f32 %v1902, %v1919
        %v1921 = vadd.f32 %v1920, 0.4994258
        %v1922 = vmul.f32 %v1902, %v1921
        %v1923 = vadd.f32 %v1922, 1.0
        %v1924 = vrcp.pop %v1923
        %v1925 = vmul.f32 %v1923, %v1924
        %v1926 = vsub.f32 1.0, %v1925
        %v1927 = vmul.f32 %v1924, %v1926
        %v1928 = vadd.f32 %v1924, %v1927
        %vm1929 = vweird.f32 %v1923
        %vm1930 = vweird.f32 %v1924
        %vm1931 = vmor %vm1929, %vm1930
        %v1932 = vsel %vm1931, %v1924, %v1928
        %v1933 = vand.u32 2147483647, %v1923
        %vm1934 = vcmp.eq.f32.partialorder %v1933, 8.507059e+37
        %v1935 = vand.u32 %v1923, 2147483648
        %v1936 = vor.u32 1.1754944e-38, %v1935
        %v1937 = vsel %vm1934, %v1936, %v1932
        %v1938 = vmul.f32 %v1913, %v1937
        %v1939 = vmin.f32 %v1938, 1.0
        %v1940 = vmax.f32 %v1939, -1.0
        %v1941 = vmul.f32 %v918, %v918
        %v1942 = vmin.f32 16.0, %v1941
        %v1943 = vmul.f32 %v1942, 2.1237322e-06
        %v1944 = vadd.f32 %v1943, 0.00028619796
        %v1945 = vmul.f32 %v1942, %v1944
        %v1946 = vadd.f32 %v1945, 0.0036580483
        %v1947 = vmul.f32 %v1942, %v1946
        %v1948 = vadd.f32 %v1947, 0.05243302
        %v1949 = vmul.f32 %v1942, %v1948
        %v1950 = vadd.f32 %v1949, 0.18741608
        %v1951 = vmul.f32 %v1942, %v1950
        %v1952 = vadd.f32 %v1951, 1.1283791
        %v1953 = vmul.f32 %v918, %v1952
        %v1954 = vmul.f32 %v1942, 3.8918573e-05
        %v1955 = vadd.f32 %v1954, 0.001143296
        %v1956 = vmul.f32 %v1942, %v1955
        %v1957 = vadd.f32 %v1956, 0.014752088
        %v1958 = vmul.f32 %v1942, %v1957
        %v1959 = vadd.f32 %v1958, 0.112945676
        %v1960 = vmul.f32 %v1942, %v1959
        %v1961 = vadd.f32 %v1960, 0.4994258
        %v1962 = vmul.f32 %v1942, %v1961
        %v1963 = vadd.f32 %v1962, 1.0
        %v1964 = vrcp.pop %v1963
        %v1965 = vmul.f32 %v1963, %v1964
        %v1966 = vsub.f32 1.0, %v1965
        %v1967 = vmul.f32 %v1964, %v1966
        %v1968 = vadd.f32 %v1964, %v1967
        %vm1969 = vweird.f32 %v1963
        %vm1970 = vweird.f32 %v1964
        %vm1971 = vmor %vm1969, %vm1970
        %v1972 = vsel %vm1971, %v1964, %v1968
        %v1973 = vand.u32 2147483647, %v1963
        %vm1974 = vcmp.eq.f32.partialorder %v1973, 8.507059e+37
        %v1975 = vand.u32 %v1963, 2147483648
        %v1976 = vor.u32 1.1754944e-38, %v1975
        %v1977 = vsel %vm1974, %v1976, %v1972
        %v1978 = vmul.f32 %v1953, %v1977
        %v1979 = vmin.f32 %v1978, 1.0
        %v1980 = vmax.f32 %v1979, -1.0
        %v1981 = vmul.f32 %v919, %v919
        %v1982 = vmin.f32 16.0, %v1981
        %v1983 = vmul.f32 %v1982, 2.1237322e-06
        %v1984 = vadd.f32 %v1983, 0.00028619796
        %v1985 = vmul.f32 %v1982, %v1984
        %v1986 = vadd.f32 %v1985, 0.0036580483
        %v1987 = vmul.f32 %v1982, %v1986
        %v1988 = vadd.f32 %v1987, 0.05243302
        %v1989 = vmul.f32 %v1982, %v1988
        %v1990 = vadd.f32 %v1989, 0.18741608
        %v1991 = vmul.f32 %v1982, %v1990
        %v1992 = vadd.f32 %v1991, 1.1283791
        %v1993 = vmul.f32 %v919, %v1992
        %v1994 = vmul.f32 %v1982, 3.8918573e-05
        %v1995 = vadd.f32 %v1994, 0.001143296
        %v1996 = vmul.f32 %v1982, %v1995
        %v1997 = vadd.f32 %v1996, 0.014752088
        %v1998 = vmul.f32 %v1982, %v1997
        %v1999 = vadd.f32 %v1998, 0.112945676
        %v2000 = vmul.f32 %v1982, %v1999
        %v2001 = vadd.f32 %v2000, 0.4994258
        %v2002 = vmul.f32 %v1982, %v2001
        %v2003 = vadd.f32 %v2002, 1.0
        %v2004 = vrcp.pop %v2003
        %v2005 = vmul.f32 %v2003, %v2004
        %v2006 = vsub.f32 1.0, %v2005
        %v2007 = vmul.f32 %v2004, %v2006
        %v2008 = vadd.f32 %v2004, %v2007
        %vm2009 = vweird.f32 %v2003
        %vm2010 = vweird.f32 %v2004
        %vm2011 = vmor %vm2009, %vm2010
        %v2012 = vsel %vm2011, %v2004, %v2008
        %v2013 = vand.u32 2147483647, %v2003
        %vm2014 = vcmp.eq.f32.partialorder %v2013, 8.507059e+37
        %v2015 = vand.u32 %v2003, 2147483648
        %v2016 = vor.u32 1.1754944e-38, %v2015
        %v2017 = vsel %vm2014, %v2016, %v2012
        %v2018 = vmul.f32 %v1993, %v2017
        %v2019 = vmin.f32 %v2018, 1.0
        %v2020 = vmax.f32 %v2019, -1.0
        %v2021 = vmul.f32 %v920, %v920
        %v2022 = vmin.f32 16.0, %v2021
        %v2023 = vmul.f32 %v2022, 2.1237322e-06
        %v2024 = vadd.f32 %v2023, 0.00028619796
        %v2025 = vmul.f32 %v2022, %v2024
        %v2026 = vadd.f32 %v2025, 0.0036580483
        %v2027 = vmul.f32 %v2022, %v2026
        %v2028 = vadd.f32 %v2027, 0.05243302
        %v2029 = vmul.f32 %v2022, %v2028
        %v2030 = vadd.f32 %v2029, 0.18741608
        %v2031 = vmul.f32 %v2022, %v2030
        %v2032 = vadd.f32 %v2031, 1.1283791
        %v2033 = vmul.f32 %v920, %v2032
        %v2034 = vmul.f32 %v2022, 3.8918573e-05
        %v2035 = vadd.f32 %v2034, 0.001143296
        %v2036 = vmul.f32 %v2022, %v2035
        %v2037 = vadd.f32 %v2036, 0.014752088
        %v2038 = vmul.f32 %v2022, %v2037
        %v2039 = vadd.f32 %v2038, 0.112945676
        %v2040 = vmul.f32 %v2022, %v2039
        %v2041 = vadd.f32 %v2040, 0.4994258
        %v2042 = vmul.f32 %v2022, %v2041
        %v2043 = vadd.f32 %v2042, 1.0
        %v2044 = vrcp.pop %v2043
        %v2045 = vmul.f32 %v2043, %v2044
        %v2046 = vsub.f32 1.0, %v2045
        %v2047 = vmul.f32 %v2044, %v2046
        %v2048 = vadd.f32 %v2044, %v2047
        %vm2049 = vweird.f32 %v2043
        %vm2050 = vweird.f32 %v2044
        %vm2051 = vmor %vm2049, %vm2050
        %v2052 = vsel %vm2051, %v2044, %v2048
        %v2053 = vand.u32 2147483647, %v2043
        %vm2054 = vcmp.eq.f32.partialorder %v2053, 8.507059e+37
        %v2055 = vand.u32 %v2043, 2147483648
        %v2056 = vor.u32 1.1754944e-38, %v2055
        %v2057 = vsel %vm2054, %v2056, %v2052
        %v2058 = vmul.f32 %v2033, %v2057
        %v2059 = vmin.f32 %v2058, 1.0
        %v2060 = vmax.f32 %v2059, -1.0
        %v2061 = vmul.f32 %v921, %v921
        %v2062 = vmin.f32 16.0, %v2061
        %v2063 = vmul.f32 %v2062, 2.1237322e-06
        %v2064 = vadd.f32 %v2063, 0.00028619796
        %v2065 = vmul.f32 %v2062, %v2064
        %v2066 = vadd.f32 %v2065, 0.0036580483
        %v2067 = vmul.f32 %v2062, %v2066
        %v2068 = vadd.f32 %v2067, 0.05243302
        %v2069 = vmul.f32 %v2062, %v2068
        %v2070 = vadd.f32 %v2069, 0.18741608
        %v2071 = vmul.f32 %v2062, %v2070
        %v2072 = vadd.f32 %v2071, 1.1283791
        %v2073 = vmul.f32 %v921, %v2072
        %v2074 = vmul.f32 %v2062, 3.8918573e-05
        %v2075 = vadd.f32 %v2074, 0.001143296
        %v2076 = vmul.f32 %v2062, %v2075
        %v2077 = vadd.f32 %v2076, 0.014752088
        %v2078 = vmul.f32 %v2062, %v2077
        %v2079 = vadd.f32 %v2078, 0.112945676
        %v2080 = vmul.f32 %v2062, %v2079
        %v2081 = vadd.f32 %v2080, 0.4994258
        %v2082 = vmul.f32 %v2062, %v2081
        %v2083 = vadd.f32 %v2082, 1.0
        %v2084 = vrcp.pop %v2083
        %v2085 = vmul.f32 %v2083, %v2084
        %v2086 = vsub.f32 1.0, %v2085
        %v2087 = vmul.f32 %v2084, %v2086
        %v2088 = vadd.f32 %v2084, %v2087
        %vm2089 = vweird.f32 %v2083
        %vm2090 = vweird.f32 %v2084
        %vm2091 = vmor %vm2089, %vm2090
        %v2092 = vsel %vm2091, %v2084, %v2088
        %v2093 = vand.u32 2147483647, %v2083
        %vm2094 = vcmp.eq.f32.partialorder %v2093, 8.507059e+37
        %v2095 = vand.u32 %v2083, 2147483648
        %v2096 = vor.u32 1.1754944e-38, %v2095
        %v2097 = vsel %vm2094, %v2096, %v2092
        %v2098 = vmul.f32 %v2073, %v2097
        %v2099 = vmin.f32 %v2098, 1.0
        %v2100 = vmax.f32 %v2099, -1.0
        %v2101 = vmul.f32 %v922, %v922
        %v2102 = vmin.f32 16.0, %v2101
        %v2103 = vmul.f32 %v2102, 2.1237322e-06
        %v2104 = vadd.f32 %v2103, 0.00028619796
        %v2105 = vmul.f32 %v2102, %v2104
        %v2106 = vadd.f32 %v2105, 0.0036580483
        %v2107 = vmul.f32 %v2102, %v2106
        %v2108 = vadd.f32 %v2107, 0.05243302
        %v2109 = vmul.f32 %v2102, %v2108
        %v2110 = vadd.f32 %v2109, 0.18741608
        %v2111 = vmul.f32 %v2102, %v2110
        %v2112 = vadd.f32 %v2111, 1.1283791
        %v2113 = vmul.f32 %v922, %v2112
        %v2114 = vmul.f32 %v2102, 3.8918573e-05
        %v2115 = vadd.f32 %v2114, 0.001143296
        %v2116 = vmul.f32 %v2102, %v2115
        %v2117 = vadd.f32 %v2116, 0.014752088
        %v2118 = vmul.f32 %v2102, %v2117
        %v2119 = vadd.f32 %v2118, 0.112945676
        %v2120 = vmul.f32 %v2102, %v2119
        %v2121 = vadd.f32 %v2120, 0.4994258
        %v2122 = vmul.f32 %v2102, %v2121
        %v2123 = vadd.f32 %v2122, 1.0
        %v2124 = vrcp.pop %v2123
        %v2125 = vmul.f32 %v2123, %v2124
        %v2126 = vsub.f32 1.0, %v2125
        %v2127 = vmul.f32 %v2124, %v2126
        %v2128 = vadd.f32 %v2124, %v2127
        %vm2129 = vweird.f32 %v2123
        %vm2130 = vweird.f32 %v2124
        %vm2131 = vmor %vm2129, %vm2130
        %v2132 = vsel %vm2131, %v2124, %v2128
        %v2133 = vand.u32 2147483647, %v2123
        %vm2134 = vcmp.eq.f32.partialorder %v2133, 8.507059e+37
        %v2135 = vand.u32 %v2123, 2147483648
        %v2136 = vor.u32 1.1754944e-38, %v2135
        %v2137 = vsel %vm2134, %v2136, %v2132
        %v2138 = vmul.f32 %v2113, %v2137
        %v2139 = vmin.f32 %v2138, 1.0
        %v2140 = vmax.f32 %v2139, -1.0
        %v2141 = vmul.f32 %v923, %v923
        %v2142 = vmin.f32 16.0, %v2141
        %v2143 = vmul.f32 %v2142, 2.1237322e-06
        %v2144 = vadd.f32 %v2143, 0.00028619796
        %v2145 = vmul.f32 %v2142, %v2144
        %v2146 = vadd.f32 %v2145, 0.0036580483
        %v2147 = vmul.f32 %v2142, %v2146
        %v2148 = vadd.f32 %v2147, 0.05243302
        %v2149 = vmul.f32 %v2142, %v2148
        %v2150 = vadd.f32 %v2149, 0.18741608
        %v2151 = vmul.f32 %v2142, %v2150
        %v2152 = vadd.f32 %v2151, 1.1283791
        %v2153 = vmul.f32 %v923, %v2152
        %v2154 = vmul.f32 %v2142, 3.8918573e-05
        %v2155 = vadd.f32 %v2154, 0.001143296
        %v2156 = vmul.f32 %v2142, %v2155
        %v2157 = vadd.f32 %v2156, 0.014752088
        %v2158 = vmul.f32 %v2142, %v2157
        %v2159 = vadd.f32 %v2158, 0.112945676
        %v2160 = vmul.f32 %v2142, %v2159
        %v2161 = vadd.f32 %v2160, 0.4994258
        %v2162 = vmul.f32 %v2142, %v2161
        %v2163 = vadd.f32 %v2162, 1.0
        %v2164 = vrcp.pop %v2163
        %v2165 = vmul.f32 %v2163, %v2164
        %v2166 = vsub.f32 1.0, %v2165
        %v2167 = vmul.f32 %v2164, %v2166
        %v2168 = vadd.f32 %v2164, %v2167
        %vm2169 = vweird.f32 %v2163
        %vm2170 = vweird.f32 %v2164
        %vm2171 = vmor %vm2169, %vm2170
        %v2172 = vsel %vm2171, %v2164, %v2168
        %v2173 = vand.u32 2147483647, %v2163
        %vm2174 = vcmp.eq.f32.partialorder %v2173, 8.507059e+37
        %v2175 = vand.u32 %v2163, 2147483648
        %v2176 = vor.u32 1.1754944e-38, %v2175
        %v2177 = vsel %vm2174, %v2176, %v2172
        %v2178 = vmul.f32 %v2153, %v2177
        %v2179 = vmin.f32 %v2178, 1.0
        %v2180 = vmax.f32 %v2179, -1.0
        %v2181 = vmul.f32 %v924, %v924
        %v2182 = vmin.f32 16.0, %v2181
        %v2183 = vmul.f32 %v2182, 2.1237322e-06
        %v2184 = vadd.f32 %v2183, 0.00028619796
        %v2185 = vmul.f32 %v2182, %v2184
        %v2186 = vadd.f32 %v2185, 0.0036580483
        %v2187 = vmul.f32 %v2182, %v2186
        %v2188 = vadd.f32 %v2187, 0.05243302
        %v2189 = vmul.f32 %v2182, %v2188
        %v2190 = vadd.f32 %v2189, 0.18741608
        %v2191 = vmul.f32 %v2182, %v2190
        %v2192 = vadd.f32 %v2191, 1.1283791
        %v2193 = vmul.f32 %v924, %v2192
        %v2194 = vmul.f32 %v2182, 3.8918573e-05
        %v2195 = vadd.f32 %v2194, 0.001143296
        %v2196 = vmul.f32 %v2182, %v2195
        %v2197 = vadd.f32 %v2196, 0.014752088
        %v2198 = vmul.f32 %v2182, %v2197
        %v2199 = vadd.f32 %v2198, 0.112945676
        %v2200 = vmul.f32 %v2182, %v2199
        %v2201 = vadd.f32 %v2200, 0.4994258
        %v2202 = vmul.f32 %v2182, %v2201
        %v2203 = vadd.f32 %v2202, 1.0
        %v2204 = vrcp.pop %v2203
        %v2205 = vmul.f32 %v2203, %v2204
        %v2206 = vsub.f32 1.0, %v2205
        %v2207 = vmul.f32 %v2204, %v2206
        %v2208 = vadd.f32 %v2204, %v2207
        %vm2209 = vweird.f32 %v2203
        %vm2210 = vweird.f32 %v2204
        %vm2211 = vmor %vm2209, %vm2210
        %v2212 = vsel %vm2211, %v2204, %v2208
        %v2213 = vand.u32 2147483647, %v2203
        %vm2214 = vcmp.eq.f32.partialorder %v2213, 8.507059e+37
        %v2215 = vand.u32 %v2203, 2147483648
        %v2216 = vor.u32 1.1754944e-38, %v2215
        %v2217 = vsel %vm2214, %v2216, %v2212
        %v2218 = vmul.f32 %v2193, %v2217
        %v2219 = vmin.f32 %v2218, 1.0
        %v2220 = vmax.f32 %v2219, -1.0
        %v2221 = vmul.f32 %v925, %v925
        %v2222 = vmin.f32 16.0, %v2221
        %v2223 = vmul.f32 %v2222, 2.1237322e-06
        %v2224 = vadd.f32 %v2223, 0.00028619796
        %v2225 = vmul.f32 %v2222, %v2224
        %v2226 = vadd.f32 %v2225, 0.0036580483
        %v2227 = vmul.f32 %v2222, %v2226
        %v2228 = vadd.f32 %v2227, 0.05243302
        %v2229 = vmul.f32 %v2222, %v2228
        %v2230 = vadd.f32 %v2229, 0.18741608
        %v2231 = vmul.f32 %v2222, %v2230
        %v2232 = vadd.f32 %v2231, 1.1283791
        %v2233 = vmul.f32 %v925, %v2232
        %v2234 = vmul.f32 %v2222, 3.8918573e-05
        %v2235 = vadd.f32 %v2234, 0.001143296
        %v2236 = vmul.f32 %v2222, %v2235
        %v2237 = vadd.f32 %v2236, 0.014752088
        %v2238 = vmul.f32 %v2222, %v2237
        %v2239 = vadd.f32 %v2238, 0.112945676
        %v2240 = vmul.f32 %v2222, %v2239
        %v2241 = vadd.f32 %v2240, 0.4994258
        %v2242 = vmul.f32 %v2222, %v2241
        %v2243 = vadd.f32 %v2242, 1.0
        %v2244 = vrcp.pop %v2243
        %v2245 = vmul.f32 %v2243, %v2244
        %v2246 = vsub.f32 1.0, %v2245
        %v2247 = vmul.f32 %v2244, %v2246
        %v2248 = vadd.f32 %v2244, %v2247
        %vm2249 = vweird.f32 %v2243
        %vm2250 = vweird.f32 %v2244
        %vm2251 = vmor %vm2249, %vm2250
        %v2252 = vsel %vm2251, %v2244, %v2248
        %v2253 = vand.u32 2147483647, %v2243
        %vm2254 = vcmp.eq.f32.partialorder %v2253, 8.507059e+37
        %v2255 = vand.u32 %v2243, 2147483648
        %v2256 = vor.u32 1.1754944e-38, %v2255
        %v2257 = vsel %vm2254, %v2256, %v2252
        %v2258 = vmul.f32 %v2233, %v2257
        %v2259 = vmin.f32 %v2258, 1.0
        %v2260 = vmax.f32 %v2259, -1.0
        %v2261 = vmul.f32 %v926, %v926
        %v2262 = vmin.f32 16.0, %v2261
        %v2263 = vmul.f32 %v2262, 2.1237322e-06
        %v2264 = vadd.f32 %v2263, 0.00028619796
        %v2265 = vmul.f32 %v2262, %v2264
        %v2266 = vadd.f32 %v2265, 0.0036580483
        %v2267 = vmul.f32 %v2262, %v2266
        %v2268 = vadd.f32 %v2267, 0.05243302
        %v2269 = vmul.f32 %v2262, %v2268
        %v2270 = vadd.f32 %v2269, 0.18741608
        %v2271 = vmul.f32 %v2262, %v2270
        %v2272 = vadd.f32 %v2271, 1.1283791
        %v2273 = vmul.f32 %v926, %v2272
        %v2274 = vmul.f32 %v2262, 3.8918573e-05
        %v2275 = vadd.f32 %v2274, 0.001143296
        %v2276 = vmul.f32 %v2262, %v2275
        %v2277 = vadd.f32 %v2276, 0.014752088
        %v2278 = vmul.f32 %v2262, %v2277
        %v2279 = vadd.f32 %v2278, 0.112945676
        %v2280 = vmul.f32 %v2262, %v2279
        %v2281 = vadd.f32 %v2280, 0.4994258
        %v2282 = vmul.f32 %v2262, %v2281
        %v2283 = vadd.f32 %v2282, 1.0
        %v2284 = vrcp.pop %v2283
        %v2285 = vmul.f32 %v2283, %v2284
        %v2286 = vsub.f32 1.0, %v2285
        %v2287 = vmul.f32 %v2284, %v2286
        %v2288 = vadd.f32 %v2284, %v2287
        %vm2289 = vweird.f32 %v2283
        %vm2290 = vweird.f32 %v2284
        %vm2291 = vmor %vm2289, %vm2290
        %v2292 = vsel %vm2291, %v2284, %v2288
        %v2293 = vand.u32 2147483647, %v2283
        %vm2294 = vcmp.eq.f32.partialorder %v2293, 8.507059e+37
        %v2295 = vand.u32 %v2283, 2147483648
        %v2296 = vor.u32 1.1754944e-38, %v2295
        %v2297 = vsel %vm2294, %v2296, %v2292
        %v2298 = vmul.f32 %v2273, %v2297
        %v2299 = vmin.f32 %v2298, 1.0
        %v2300 = vmax.f32 %v2299, -1.0
        %v2301 = vmul.f32 %v927, %v927
        %v2302 = vmin.f32 16.0, %v2301
        %v2303 = vmul.f32 %v2302, 2.1237322e-06
        %v2304 = vadd.f32 %v2303, 0.00028619796
        %v2305 = vmul.f32 %v2302, %v2304
        %v2306 = vadd.f32 %v2305, 0.0036580483
        %v2307 = vmul.f32 %v2302, %v2306
        %v2308 = vadd.f32 %v2307, 0.05243302
        %v2309 = vmul.f32 %v2302, %v2308
        %v2310 = vadd.f32 %v2309, 0.18741608
        %v2311 = vmul.f32 %v2302, %v2310
        %v2312 = vadd.f32 %v2311, 1.1283791
        %v2313 = vmul.f32 %v927, %v2312
        %v2314 = vmul.f32 %v2302, 3.8918573e-05
        %v2315 = vadd.f32 %v2314, 0.001143296
        %v2316 = vmul.f32 %v2302, %v2315
        %v2317 = vadd.f32 %v2316, 0.014752088
        %v2318 = vmul.f32 %v2302, %v2317
        %v2319 = vadd.f32 %v2318, 0.112945676
        %v2320 = vmul.f32 %v2302, %v2319
        %v2321 = vadd.f32 %v2320, 0.4994258
        %v2322 = vmul.f32 %v2302, %v2321
        %v2323 = vadd.f32 %v2322, 1.0
        %v2324 = vrcp.pop %v2323
        %v2325 = vmul.f32 %v2323, %v2324
        %v2326 = vsub.f32 1.0, %v2325
        %v2327 = vmul.f32 %v2324, %v2326
        %v2328 = vadd.f32 %v2324, %v2327
        %vm2329 = vweird.f32 %v2323
        %vm2330 = vweird.f32 %v2324
        %vm2331 = vmor %vm2329, %vm2330
        %v2332 = vsel %vm2331, %v2324, %v2328
        %v2333 = vand.u32 2147483647, %v2323
        %vm2334 = vcmp.eq.f32.partialorder %v2333, 8.507059e+37
        %v2335 = vand.u32 %v2323, 2147483648
        %v2336 = vor.u32 1.1754944e-38, %v2335
        %v2337 = vsel %vm2334, %v2336, %v2332
        %v2338 = vmul.f32 %v2313, %v2337
        %v2339 = vmin.f32 %v2338, 1.0
        %v2340 = vmax.f32 %v2339, -1.0
        %v2341 = vmul.f32 %v928, %v928
        %v2342 = vmin.f32 16.0, %v2341
        %v2343 = vmul.f32 %v2342, 2.1237322e-06
        %v2344 = vadd.f32 %v2343, 0.00028619796
        %v2345 = vmul.f32 %v2342, %v2344
        %v2346 = vadd.f32 %v2345, 0.0036580483
        %v2347 = vmul.f32 %v2342, %v2346
        %v2348 = vadd.f32 %v2347, 0.05243302
        %v2349 = vmul.f32 %v2342, %v2348
        %v2350 = vadd.f32 %v2349, 0.18741608
        %v2351 = vmul.f32 %v2342, %v2350
        %v2352 = vadd.f32 %v2351, 1.1283791
        %v2353 = vmul.f32 %v928, %v2352
        %v2354 = vmul.f32 %v2342, 3.8918573e-05
        %v2355 = vadd.f32 %v2354, 0.001143296
        %v2356 = vmul.f32 %v2342, %v2355
        %v2357 = vadd.f32 %v2356, 0.014752088
        %v2358 = vmul.f32 %v2342, %v2357
        %v2359 = vadd.f32 %v2358, 0.112945676
        %v2360 = vmul.f32 %v2342, %v2359
        %v2361 = vadd.f32 %v2360, 0.4994258
        %v2362 = vmul.f32 %v2342, %v2361
        %v2363 = vadd.f32 %v2362, 1.0
        %v2364 = vrcp.pop %v2363
        %v2365 = vmul.f32 %v2363, %v2364
        %v2366 = vsub.f32 1.0, %v2365
        %v2367 = vmul.f32 %v2364, %v2366
        %v2368 = vadd.f32 %v2364, %v2367
        %vm2369 = vweird.f32 %v2363
        %vm2370 = vweird.f32 %v2364
        %vm2371 = vmor %vm2369, %vm2370
        %v2372 = vsel %vm2371, %v2364, %v2368
        %v2373 = vand.u32 2147483647, %v2363
        %vm2374 = vcmp.eq.f32.partialorder %v2373, 8.507059e+37
        %v2375 = vand.u32 %v2363, 2147483648
        %v2376 = vor.u32 1.1754944e-38, %v2375
        %v2377 = vsel %vm2374, %v2376, %v2372
        %v2378 = vmul.f32 %v2353, %v2377
        %v2379 = vmin.f32 %v2378, 1.0
        %v2380 = vmax.f32 %v2379, -1.0
        %v2381 = vmul.f32 %v929, %v929
        %v2382 = vmin.f32 16.0, %v2381
        %v2383 = vmul.f32 %v2382, 2.1237322e-06
        %v2384 = vadd.f32 %v2383, 0.00028619796
        %v2385 = vmul.f32 %v2382, %v2384
        %v2386 = vadd.f32 %v2385, 0.0036580483
        %v2387 = vmul.f32 %v2382, %v2386
        %v2388 = vadd.f32 %v2387, 0.05243302
        %v2389 = vmul.f32 %v2382, %v2388
        %v2390 = vadd.f32 %v2389, 0.18741608
        %v2391 = vmul.f32 %v2382, %v2390
        %v2392 = vadd.f32 %v2391, 1.1283791
        %v2393 = vmul.f32 %v929, %v2392
        %v2394 = vmul.f32 %v2382, 3.8918573e-05
        %v2395 = vadd.f32 %v2394, 0.001143296
        %v2396 = vmul.f32 %v2382, %v2395
        %v2397 = vadd.f32 %v2396, 0.014752088
        %v2398 = vmul.f32 %v2382, %v2397
        %v2399 = vadd.f32 %v2398, 0.112945676
        %v2400 = vmul.f32 %v2382, %v2399
        %v2401 = vadd.f32 %v2400, 0.4994258
        %v2402 = vmul.f32 %v2382, %v2401
        %v2403 = vadd.f32 %v2402, 1.0
        %v2404 = vrcp.pop %v2403
        %v2405 = vmul.f32 %v2403, %v2404
        %v2406 = vsub.f32 1.0, %v2405
        %v2407 = vmul.f32 %v2404, %v2406
        %v2408 = vadd.f32 %v2404, %v2407
        %vm2409 = vweird.f32 %v2403
        %vm2410 = vweird.f32 %v2404
        %vm2411 = vmor %vm2409, %vm2410
        %v2412 = vsel %vm2411, %v2404, %v2408
        %v2413 = vand.u32 2147483647, %v2403
        %vm2414 = vcmp.eq.f32.partialorder %v2413, 8.507059e+37
        %v2415 = vand.u32 %v2403, 2147483648
        %v2416 = vor.u32 1.1754944e-38, %v2415
        %v2417 = vsel %vm2414, %v2416, %v2412
        %v2418 = vmul.f32 %v2393, %v2417
        %v2419 = vmin.f32 %v2418, 1.0
        %v2420 = vmax.f32 %v2419, -1.0
        %v2421 = vmul.f32 %v930, %v930
        %v2422 = vmin.f32 16.0, %v2421
        %v2423 = vmul.f32 %v2422, 2.1237322e-06
        %v2424 = vadd.f32 %v2423, 0.00028619796
        %v2425 = vmul.f32 %v2422, %v2424
        %v2426 = vadd.f32 %v2425, 0.0036580483
        %v2427 = vmul.f32 %v2422, %v2426
        %v2428 = vadd.f32 %v2427, 0.05243302
        %v2429 = vmul.f32 %v2422, %v2428
        %v2430 = vadd.f32 %v2429, 0.18741608
        %v2431 = vmul.f32 %v2422, %v2430
        %v2432 = vadd.f32 %v2431, 1.1283791
        %v2433 = vmul.f32 %v930, %v2432
        %v2434 = vmul.f32 %v2422, 3.8918573e-05
        %v2435 = vadd.f32 %v2434, 0.001143296
        %v2436 = vmul.f32 %v2422, %v2435
        %v2437 = vadd.f32 %v2436, 0.014752088
        %v2438 = vmul.f32 %v2422, %v2437
        %v2439 = vadd.f32 %v2438, 0.112945676
        %v2440 = vmul.f32 %v2422, %v2439
        %v2441 = vadd.f32 %v2440, 0.4994258
        %v2442 = vmul.f32 %v2422, %v2441
        %v2443 = vadd.f32 %v2442, 1.0
        %v2444 = vrcp.pop %v2443
        %v2445 = vmul.f32 %v2443, %v2444
        %v2446 = vsub.f32 1.0, %v2445
        %v2447 = vmul.f32 %v2444, %v2446
        %v2448 = vadd.f32 %v2444, %v2447
        %vm2449 = vweird.f32 %v2443
        %vm2450 = vweird.f32 %v2444
        %vm2451 = vmor %vm2449, %vm2450
        %v2452 = vsel %vm2451, %v2444, %v2448
        %v2453 = vand.u32 2147483647, %v2443
        %vm2454 = vcmp.eq.f32.partialorder %v2453, 8.507059e+37
        %v2455 = vand.u32 %v2443, 2147483648
        %v2456 = vor.u32 1.1754944e-38, %v2455
        %v2457 = vsel %vm2454, %v2456, %v2452
        %v2458 = vmul.f32 %v2433, %v2457
        %v2459 = vmin.f32 %v2458, 1.0
        %v2460 = vmax.f32 %v2459, -1.0
        %v2461 = vmul.f32 %v931, %v931
        %v2462 = vmin.f32 16.0, %v2461
        %v2463 = vmul.f32 %v2462, 2.1237322e-06
        %v2464 = vadd.f32 %v2463, 0.00028619796
        %v2465 = vmul.f32 %v2462, %v2464
        %v2466 = vadd.f32 %v2465, 0.0036580483
        %v2467 = vmul.f32 %v2462, %v2466
        %v2468 = vadd.f32 %v2467, 0.05243302
        %v2469 = vmul.f32 %v2462, %v2468
        %v2470 = vadd.f32 %v2469, 0.18741608
        %v2471 = vmul.f32 %v2462, %v2470
        %v2472 = vadd.f32 %v2471, 1.1283791
        %v2473 = vmul.f32 %v931, %v2472
        %v2474 = vmul.f32 %v2462, 3.8918573e-05
        %v2475 = vadd.f32 %v2474, 0.001143296
        %v2476 = vmul.f32 %v2462, %v2475
        %v2477 = vadd.f32 %v2476, 0.014752088
        %v2478 = vmul.f32 %v2462, %v2477
        %v2479 = vadd.f32 %v2478, 0.112945676
        %v2480 = vmul.f32 %v2462, %v2479
        %v2481 = vadd.f32 %v2480, 0.4994258
        %v2482 = vmul.f32 %v2462, %v2481
        %v2483 = vadd.f32 %v2482, 1.0
        %v2484 = vrcp.pop %v2483
        %v2485 = vmul.f32 %v2483, %v2484
        %v2486 = vsub.f32 1.0, %v2485
        %v2487 = vmul.f32 %v2484, %v2486
        %v2488 = vadd.f32 %v2484, %v2487
        %vm2489 = vweird.f32 %v2483
        %vm2490 = vweird.f32 %v2484
        %vm2491 = vmor %vm2489, %vm2490
        %v2492 = vsel %vm2491, %v2484, %v2488
        %v2493 = vand.u32 2147483647, %v2483
        %vm2494 = vcmp.eq.f32.partialorder %v2493, 8.507059e+37
        %v2495 = vand.u32 %v2483, 2147483648
        %v2496 = vor.u32 1.1754944e-38, %v2495
        %v2497 = vsel %vm2494, %v2496, %v2492
        %v2498 = vmul.f32 %v2473, %v2497
        %v2499 = vmin.f32 %v2498, 1.0
        %v2500 = vmax.f32 %v2499, -1.0
        %v2501 = vmul.f32 %v932, %v932
        %v2502 = vmin.f32 16.0, %v2501
        %v2503 = vmul.f32 %v2502, 2.1237322e-06
        %v2504 = vadd.f32 %v2503, 0.00028619796
        %v2505 = vmul.f32 %v2502, %v2504
        %v2506 = vadd.f32 %v2505, 0.0036580483
        %v2507 = vmul.f32 %v2502, %v2506
        %v2508 = vadd.f32 %v2507, 0.05243302
        %v2509 = vmul.f32 %v2502, %v2508
        %v2510 = vadd.f32 %v2509, 0.18741608
        %v2511 = vmul.f32 %v2502, %v2510
        %v2512 = vadd.f32 %v2511, 1.1283791
        %v2513 = vmul.f32 %v932, %v2512
        %v2514 = vmul.f32 %v2502, 3.8918573e-05
        %v2515 = vadd.f32 %v2514, 0.001143296
        %v2516 = vmul.f32 %v2502, %v2515
        %v2517 = vadd.f32 %v2516, 0.014752088
        %v2518 = vmul.f32 %v2502, %v2517
        %v2519 = vadd.f32 %v2518, 0.112945676
        %v2520 = vmul.f32 %v2502, %v2519
        %v2521 = vadd.f32 %v2520, 0.4994258
        %v2522 = vmul.f32 %v2502, %v2521
        %v2523 = vadd.f32 %v2522, 1.0
        %v2524 = vrcp.pop %v2523
        %v2525 = vmul.f32 %v2523, %v2524
        %v2526 = vsub.f32 1.0, %v2525
        %v2527 = vmul.f32 %v2524, %v2526
        %v2528 = vadd.f32 %v2524, %v2527
        %vm2529 = vweird.f32 %v2523
        %vm2530 = vweird.f32 %v2524
        %vm2531 = vmor %vm2529, %vm2530
        %v2532 = vsel %vm2531, %v2524, %v2528
        %v2533 = vand.u32 2147483647, %v2523
        %vm2534 = vcmp.eq.f32.partialorder %v2533, 8.507059e+37
        %v2535 = vand.u32 %v2523, 2147483648
        %v2536 = vor.u32 1.1754944e-38, %v2535
        %v2537 = vsel %vm2534, %v2536, %v2532
        %v2538 = vmul.f32 %v2513, %v2537
        %v2539 = vmin.f32 %v2538, 1.0
        %v2540 = vmax.f32 %v2539, -1.0
        %v2541 = vmul.f32 %v933, %v933
        %v2542 = vmin.f32 16.0, %v2541
        %v2543 = vmul.f32 %v2542, 2.1237322e-06
        %v2544 = vadd.f32 %v2543, 0.00028619796
        %v2545 = vmul.f32 %v2542, %v2544
        %v2546 = vadd.f32 %v2545, 0.0036580483
        %v2547 = vmul.f32 %v2542, %v2546
        %v2548 = vadd.f32 %v2547, 0.05243302
        %v2549 = vmul.f32 %v2542, %v2548
        %v2550 = vadd.f32 %v2549, 0.18741608
        %v2551 = vmul.f32 %v2542, %v2550
        %v2552 = vadd.f32 %v2551, 1.1283791
        %v2553 = vmul.f32 %v933, %v2552
        %v2554 = vmul.f32 %v2542, 3.8918573e-05
        %v2555 = vadd.f32 %v2554, 0.001143296
        %v2556 = vmul.f32 %v2542, %v2555
        %v2557 = vadd.f32 %v2556, 0.014752088
        %v2558 = vmul.f32 %v2542, %v2557
        %v2559 = vadd.f32 %v2558, 0.112945676
        %v2560 = vmul.f32 %v2542, %v2559
        %v2561 = vadd.f32 %v2560, 0.4994258
        %v2562 = vmul.f32 %v2542, %v2561
        %v2563 = vadd.f32 %v2562, 1.0
        %v2564 = vrcp.pop %v2563
        %v2565 = vmul.f32 %v2563, %v2564
        %v2566 = vsub.f32 1.0, %v2565
        %v2567 = vmul.f32 %v2564, %v2566
        %v2568 = vadd.f32 %v2564, %v2567
        %vm2569 = vweird.f32 %v2563
        %vm2570 = vweird.f32 %v2564
        %vm2571 = vmor %vm2569, %vm2570
        %v2572 = vsel %vm2571, %v2564, %v2568
        %v2573 = vand.u32 2147483647, %v2563
        %vm2574 = vcmp.eq.f32.partialorder %v2573, 8.507059e+37
        %v2575 = vand.u32 %v2563, 2147483648
        %v2576 = vor.u32 1.1754944e-38, %v2575
        %v2577 = vsel %vm2574, %v2576, %v2572
        %v2578 = vmul.f32 %v2553, %v2577
        %v2579 = vmin.f32 %v2578, 1.0
        %v2580 = vmax.f32 %v2579, -1.0
        %v2581 = vmul.f32 %v934, %v934
        %v2582 = vmin.f32 16.0, %v2581
        %v2583 = vmul.f32 %v2582, 2.1237322e-06
        %v2584 = vadd.f32 %v2583, 0.00028619796
        %v2585 = vmul.f32 %v2582, %v2584
        %v2586 = vadd.f32 %v2585, 0.0036580483
        %v2587 = vmul.f32 %v2582, %v2586
        %v2588 = vadd.f32 %v2587, 0.05243302
        %v2589 = vmul.f32 %v2582, %v2588
        %v2590 = vadd.f32 %v2589, 0.18741608
        %v2591 = vmul.f32 %v2582, %v2590
        %v2592 = vadd.f32 %v2591, 1.1283791
        %v2593 = vmul.f32 %v934, %v2592
        %v2594 = vmul.f32 %v2582, 3.8918573e-05
        %v2595 = vadd.f32 %v2594, 0.001143296
        %v2596 = vmul.f32 %v2582, %v2595
        %v2597 = vadd.f32 %v2596, 0.014752088
        %v2598 = vmul.f32 %v2582, %v2597
        %v2599 = vadd.f32 %v2598, 0.112945676
        %v2600 = vmul.f32 %v2582, %v2599
        %v2601 = vadd.f32 %v2600, 0.4994258
        %v2602 = vmul.f32 %v2582, %v2601
        %v2603 = vadd.f32 %v2602, 1.0
        %v2604 = vrcp.pop %v2603
        %v2605 = vmul.f32 %v2603, %v2604
        %v2606 = vsub.f32 1.0, %v2605
        %v2607 = vmul.f32 %v2604, %v2606
        %v2608 = vadd.f32 %v2604, %v2607
        %vm2609 = vweird.f32 %v2603
        %vm2610 = vweird.f32 %v2604
        %vm2611 = vmor %vm2609, %vm2610
        %v2612 = vsel %vm2611, %v2604, %v2608
        %v2613 = vand.u32 2147483647, %v2603
        %vm2614 = vcmp.eq.f32.partialorder %v2613, 8.507059e+37
        %v2615 = vand.u32 %v2603, 2147483648
        %v2616 = vor.u32 1.1754944e-38, %v2615
        %v2617 = vsel %vm2614, %v2616, %v2612
        %v2618 = vmul.f32 %v2593, %v2617
        %v2619 = vmin.f32 %v2618, 1.0
        %v2620 = vmax.f32 %v2619, -1.0
        %v2621 = vmul.f32 %v935, %v935
        %v2622 = vmin.f32 16.0, %v2621
        %v2623 = vmul.f32 %v2622, 2.1237322e-06
        %v2624 = vadd.f32 %v2623, 0.00028619796
        %v2625 = vmul.f32 %v2622, %v2624
        %v2626 = vadd.f32 %v2625, 0.0036580483
        %v2627 = vmul.f32 %v2622, %v2626
        %v2628 = vadd.f32 %v2627, 0.05243302
        %v2629 = vmul.f32 %v2622, %v2628
        %v2630 = vadd.f32 %v2629, 0.18741608
        %v2631 = vmul.f32 %v2622, %v2630
        %v2632 = vadd.f32 %v2631, 1.1283791
        %v2633 = vmul.f32 %v935, %v2632
        %v2634 = vmul.f32 %v2622, 3.8918573e-05
        %v2635 = vadd.f32 %v2634, 0.001143296
        %v2636 = vmul.f32 %v2622, %v2635
        %v2637 = vadd.f32 %v2636, 0.014752088
        %v2638 = vmul.f32 %v2622, %v2637
        %v2639 = vadd.f32 %v2638, 0.112945676
        %v2640 = vmul.f32 %v2622, %v2639
        %v2641 = vadd.f32 %v2640, 0.4994258
        %v2642 = vmul.f32 %v2622, %v2641
        %v2643 = vadd.f32 %v2642, 1.0
        %v2644 = vrcp.pop %v2643
        %v2645 = vmul.f32 %v2643, %v2644
        %v2646 = vsub.f32 1.0, %v2645
        %v2647 = vmul.f32 %v2644, %v2646
        %v2648 = vadd.f32 %v2644, %v2647
        %vm2649 = vweird.f32 %v2643
        %vm2650 = vweird.f32 %v2644
        %vm2651 = vmor %vm2649, %vm2650
        %v2652 = vsel %vm2651, %v2644, %v2648
        %v2653 = vand.u32 2147483647, %v2643
        %vm2654 = vcmp.eq.f32.partialorder %v2653, 8.507059e+37
        %v2655 = vand.u32 %v2643, 2147483648
        %v2656 = vor.u32 1.1754944e-38, %v2655
        %v2657 = vsel %vm2654, %v2656, %v2652
        %v2658 = vmul.f32 %v2633, %v2657
        %v2659 = vmin.f32 %v2658, 1.0
        %v2660 = vmax.f32 %v2659, -1.0
        %v2661 = vmul.f32 %v936, %v936
        %v2662 = vmin.f32 16.0, %v2661
        %v2663 = vmul.f32 %v2662, 2.1237322e-06
        %v2664 = vadd.f32 %v2663, 0.00028619796
        %v2665 = vmul.f32 %v2662, %v2664
        %v2666 = vadd.f32 %v2665, 0.0036580483
        %v2667 = vmul.f32 %v2662, %v2666
        %v2668 = vadd.f32 %v2667, 0.05243302
        %v2669 = vmul.f32 %v2662, %v2668
        %v2670 = vadd.f32 %v2669, 0.18741608
        %v2671 = vmul.f32 %v2662, %v2670
        %v2672 = vadd.f32 %v2671, 1.1283791
        %v2673 = vmul.f32 %v936, %v2672
        %v2674 = vmul.f32 %v2662, 3.8918573e-05
        %v2675 = vadd.f32 %v2674, 0.001143296
        %v2676 = vmul.f32 %v2662, %v2675
        %v2677 = vadd.f32 %v2676, 0.014752088
        %v2678 = vmul.f32 %v2662, %v2677
        %v2679 = vadd.f32 %v2678, 0.112945676
        %v2680 = vmul.f32 %v2662, %v2679
        %v2681 = vadd.f32 %v2680, 0.4994258
        %v2682 = vmul.f32 %v2662, %v2681
        %v2683 = vadd.f32 %v2682, 1.0
        %v2684 = vrcp.pop %v2683
        %v2685 = vmul.f32 %v2683, %v2684
        %v2686 = vsub.f32 1.0, %v2685
        %v2687 = vmul.f32 %v2684, %v2686
        %v2688 = vadd.f32 %v2684, %v2687
        %vm2689 = vweird.f32 %v2683
        %vm2690 = vweird.f32 %v2684
        %vm2691 = vmor %vm2689, %vm2690
        %v2692 = vsel %vm2691, %v2684, %v2688
        %v2693 = vand.u32 2147483647, %v2683
        %vm2694 = vcmp.eq.f32.partialorder %v2693, 8.507059e+37
        %v2695 = vand.u32 %v2683, 2147483648
        %v2696 = vor.u32 1.1754944e-38, %v2695
        %v2697 = vsel %vm2694, %v2696, %v2692
        %v2698 = vmul.f32 %v2673, %v2697
        %v2699 = vmin.f32 %v2698, 1.0
        %v2700 = vmax.f32 %v2699, -1.0
        %v2701 = vmul.f32 %v937, %v937
        %v2702 = vmin.f32 16.0, %v2701
        %v2703 = vmul.f32 %v2702, 2.1237322e-06
        %v2704 = vadd.f32 %v2703, 0.00028619796
        %v2705 = vmul.f32 %v2702, %v2704
        %v2706 = vadd.f32 %v2705, 0.0036580483
        %v2707 = vmul.f32 %v2702, %v2706
        %v2708 = vadd.f32 %v2707, 0.05243302
        %v2709 = vmul.f32 %v2702, %v2708
        %v2710 = vadd.f32 %v2709, 0.18741608
        %v2711 = vmul.f32 %v2702, %v2710
        %v2712 = vadd.f32 %v2711, 1.1283791
        %v2713 = vmul.f32 %v937, %v2712
        %v2714 = vmul.f32 %v2702, 3.8918573e-05
        %v2715 = vadd.f32 %v2714, 0.001143296
        %v2716 = vmul.f32 %v2702, %v2715
        %v2717 = vadd.f32 %v2716, 0.014752088
        %v2718 = vmul.f32 %v2702, %v2717
        %v2719 = vadd.f32 %v2718, 0.112945676
        %v2720 = vmul.f32 %v2702, %v2719
        %v2721 = vadd.f32 %v2720, 0.4994258
        %v2722 = vmul.f32 %v2702, %v2721
        %v2723 = vadd.f32 %v2722, 1.0
        %v2724 = vrcp.pop %v2723
        %v2725 = vmul.f32 %v2723, %v2724
        %v2726 = vsub.f32 1.0, %v2725
        %v2727 = vmul.f32 %v2724, %v2726
        %v2728 = vadd.f32 %v2724, %v2727
        %vm2729 = vweird.f32 %v2723
        %vm2730 = vweird.f32 %v2724
        %vm2731 = vmor %vm2729, %vm2730
        %v2732 = vsel %vm2731, %v2724, %v2728
        %v2733 = vand.u32 2147483647, %v2723
        %vm2734 = vcmp.eq.f32.partialorder %v2733, 8.507059e+37
        %v2735 = vand.u32 %v2723, 2147483648
        %v2736 = vor.u32 1.1754944e-38, %v2735
        %v2737 = vsel %vm2734, %v2736, %v2732
        %v2738 = vmul.f32 %v2713, %v2737
        %v2739 = vmin.f32 %v2738, 1.0
        %v2740 = vmax.f32 %v2739, -1.0
        %v2741 = vmul.f32 %v938, %v938
        %v2742 = vmin.f32 16.0, %v2741
        %v2743 = vmul.f32 %v2742, 2.1237322e-06
        %v2744 = vadd.f32 %v2743, 0.00028619796
        %v2745 = vmul.f32 %v2742, %v2744
        %v2746 = vadd.f32 %v2745, 0.0036580483
        %v2747 = vmul.f32 %v2742, %v2746
        %v2748 = vadd.f32 %v2747, 0.05243302
        %v2749 = vmul.f32 %v2742, %v2748
        %v2750 = vadd.f32 %v2749, 0.18741608
        %v2751 = vmul.f32 %v2742, %v2750
        %v2752 = vadd.f32 %v2751, 1.1283791
        %v2753 = vmul.f32 %v938, %v2752
        %v2754 = vmul.f32 %v2742, 3.8918573e-05
        %v2755 = vadd.f32 %v2754, 0.001143296
        %v2756 = vmul.f32 %v2742, %v2755
        %v2757 = vadd.f32 %v2756, 0.014752088
        %v2758 = vmul.f32 %v2742, %v2757
        %v2759 = vadd.f32 %v2758, 0.112945676
        %v2760 = vmul.f32 %v2742, %v2759
        %v2761 = vadd.f32 %v2760, 0.4994258
        %v2762 = vmul.f32 %v2742, %v2761
        %v2763 = vadd.f32 %v2762, 1.0
        %v2764 = vrcp.pop %v2763
        %v2765 = vmul.f32 %v2763, %v2764
        %v2766 = vsub.f32 1.0, %v2765
        %v2767 = vmul.f32 %v2764, %v2766
        %v2768 = vadd.f32 %v2764, %v2767
        %vm2769 = vweird.f32 %v2763
        %vm2770 = vweird.f32 %v2764
        %vm2771 = vmor %vm2769, %vm2770
        %v2772 = vsel %vm2771, %v2764, %v2768
        %v2773 = vand.u32 2147483647, %v2763
        %vm2774 = vcmp.eq.f32.partialorder %v2773, 8.507059e+37
        %v2775 = vand.u32 %v2763, 2147483648
        %v2776 = vor.u32 1.1754944e-38, %v2775
        %v2777 = vsel %vm2774, %v2776, %v2772
        %v2778 = vmul.f32 %v2753, %v2777
        %v2779 = vmin.f32 %v2778, 1.0
        %v2780 = vmax.f32 %v2779, -1.0
        %v2781 = vmul.f32 %v939, %v939
        %v2782 = vmin.f32 16.0, %v2781
        %v2783 = vmul.f32 %v2782, 2.1237322e-06
        %v2784 = vadd.f32 %v2783, 0.00028619796
        %v2785 = vmul.f32 %v2782, %v2784
        %v2786 = vadd.f32 %v2785, 0.0036580483
        %v2787 = vmul.f32 %v2782, %v2786
        %v2788 = vadd.f32 %v2787, 0.05243302
        %v2789 = vmul.f32 %v2782, %v2788
        %v2790 = vadd.f32 %v2789, 0.18741608
        %v2791 = vmul.f32 %v2782, %v2790
        %v2792 = vadd.f32 %v2791, 1.1283791
        %v2793 = vmul.f32 %v939, %v2792
        %v2794 = vmul.f32 %v2782, 3.8918573e-05
        %v2795 = vadd.f32 %v2794, 0.001143296
        %v2796 = vmul.f32 %v2782, %v2795
        %v2797 = vadd.f32 %v2796, 0.014752088
        %v2798 = vmul.f32 %v2782, %v2797
        %v2799 = vadd.f32 %v2798, 0.112945676
        %v2800 = vmul.f32 %v2782, %v2799
        %v2801 = vadd.f32 %v2800, 0.4994258
        %v2802 = vmul.f32 %v2782, %v2801
        %v2803 = vadd.f32 %v2802, 1.0
        %v2804 = vrcp.pop %v2803
        %v2805 = vmul.f32 %v2803, %v2804
        %v2806 = vsub.f32 1.0, %v2805
        %v2807 = vmul.f32 %v2804, %v2806
        %v2808 = vadd.f32 %v2804, %v2807
        %vm2809 = vweird.f32 %v2803
        %vm2810 = vweird.f32 %v2804
        %vm2811 = vmor %vm2809, %vm2810
        %v2812 = vsel %vm2811, %v2804, %v2808
        %v2813 = vand.u32 2147483647, %v2803
        %vm2814 = vcmp.eq.f32.partialorder %v2813, 8.507059e+37
        %v2815 = vand.u32 %v2803, 2147483648
        %v2816 = vor.u32 1.1754944e-38, %v2815
        %v2817 = vsel %vm2814, %v2816, %v2812
        %v2818 = vmul.f32 %v2793, %v2817
        %v2819 = vmin.f32 %v2818, 1.0
        %v2820 = vmax.f32 %v2819, -1.0
        %v2821 = vmul.f32 %v940, %v940
        %v2822 = vmin.f32 16.0, %v2821
        %v2823 = vmul.f32 %v2822, 2.1237322e-06
        %v2824 = vadd.f32 %v2823, 0.00028619796
        %v2825 = vmul.f32 %v2822, %v2824
        %v2826 = vadd.f32 %v2825, 0.0036580483
        %v2827 = vmul.f32 %v2822, %v2826
        %v2828 = vadd.f32 %v2827, 0.05243302
        %v2829 = vmul.f32 %v2822, %v2828
        %v2830 = vadd.f32 %v2829, 0.18741608
        %v2831 = vmul.f32 %v2822, %v2830
        %v2832 = vadd.f32 %v2831, 1.1283791
        %v2833 = vmul.f32 %v940, %v2832
        %v2834 = vmul.f32 %v2822, 3.8918573e-05
        %v2835 = vadd.f32 %v2834, 0.001143296
        %v2836 = vmul.f32 %v2822, %v2835
        %v2837 = vadd.f32 %v2836, 0.014752088
        %v2838 = vmul.f32 %v2822, %v2837
        %v2839 = vadd.f32 %v2838, 0.112945676
        %v2840 = vmul.f32 %v2822, %v2839
        %v2841 = vadd.f32 %v2840, 0.4994258
        %v2842 = vmul.f32 %v2822, %v2841
        %v2843 = vadd.f32 %v2842, 1.0
        %v2844 = vrcp.pop %v2843
        %v2845 = vmul.f32 %v2843, %v2844
        %v2846 = vsub.f32 1.0, %v2845
        %v2847 = vmul.f32 %v2844, %v2846
        %v2848 = vadd.f32 %v2844, %v2847
        %vm2849 = vweird.f32 %v2843
        %vm2850 = vweird.f32 %v2844
        %vm2851 = vmor %vm2849, %vm2850
        %v2852 = vsel %vm2851, %v2844, %v2848
        %v2853 = vand.u32 2147483647, %v2843
        %vm2854 = vcmp.eq.f32.partialorder %v2853, 8.507059e+37
        %v2855 = vand.u32 %v2843, 2147483648
        %v2856 = vor.u32 1.1754944e-38, %v2855
        %v2857 = vsel %vm2854, %v2856, %v2852
        %v2858 = vmul.f32 %v2833, %v2857
        %v2859 = vmin.f32 %v2858, 1.0
        %v2860 = vmax.f32 %v2859, -1.0
        %v2861 = vadd.f32 %v980, 1.0
        %v2862 = vadd.f32 %v1020, 1.0
        %v2863 = vadd.f32 %v1060, 1.0
        %v2864 = vadd.f32 %v1100, 1.0
        %v2865 = vadd.f32 %v1140, 1.0
        %v2866 = vadd.f32 %v1180, 1.0
        %v2867 = vadd.f32 %v1220, 1.0
        %v2868 = vadd.f32 %v1260, 1.0
        %v2869 = vadd.f32 %v1300, 1.0
        %v2870 = vadd.f32 %v1340, 1.0
        %v2871 = vadd.f32 %v1380, 1.0
        %v2872 = vadd.f32 %v1420, 1.0
        %v2873 = vadd.f32 %v1460, 1.0
        %v2874 = vadd.f32 %v1500, 1.0
        %v2875 = vadd.f32 %v1540, 1.0
        %v2876 = vadd.f32 %v1580, 1.0
        %v2877 = vadd.f32 %v1620, 1.0
        %v2878 = vadd.f32 %v1660, 1.0
        %v2879 = vadd.f32 %v1700, 1.0
        %v2880 = vadd.f32 %v1740, 1.0
        %v2881 = vadd.f32 %v1780, 1.0
        %v2882 = vadd.f32 %v1820, 1.0
        %v2883 = vadd.f32 %v1860, 1.0
        %v2884 = vadd.f32 %v1900, 1.0
        %v2885 = vadd.f32 %v1940, 1.0
        %v2886 = vadd.f32 %v1980, 1.0
        %v2887 = vadd.f32 %v2020, 1.0
        %v2888 = vadd.f32 %v2060, 1.0
        %v2889 = vadd.f32 %v2100, 1.0
        %v2890 = vadd.f32 %v2140, 1.0
        %v2891 = vadd.f32 %v2180, 1.0
        %v2892 = vadd.f32 %v2220, 1.0
        %v2893 = vadd.f32 %v2260, 1.0
        %v2894 = vadd.f32 %v2300, 1.0
        %v2895 = vadd.f32 %v2340, 1.0
        %v2896 = vadd.f32 %v2380, 1.0
        %v2897 = vadd.f32 %v2420, 1.0
        %v2898 = vadd.f32 %v2460, 1.0
        %v2899 = vadd.f32 %v2500, 1.0
        %v2900 = vadd.f32 %v2540, 1.0
        %v2901 = vadd.f32 %v2580, 1.0
        %v2902 = vadd.f32 %v2620, 1.0
        %v2903 = vadd.f32 %v2660, 1.0
        %v2904 = vadd.f32 %v2700, 1.0
        %v2905 = vadd.f32 %v2740, 1.0
        %v2906 = vadd.f32 %v2780, 1.0
        %v2907 = vadd.f32 %v2820, 1.0
        %v2908 = vadd.f32 %v2860, 1.0
        %v2909 = vmul.f32 %v845, %v2861
        %v2910 = vmul.f32 %v846, %v2862
        %v2911 = vmul.f32 %v847, %v2863
        %v2912 = vmul.f32 %v848, %v2864
        %v2913 = vmul.f32 %v849, %v2865
        %v2914 = vmul.f32 %v850, %v2866
        %v2915 = vmul.f32 %v851, %v2867
        %v2916 = vmul.f32 %v852, %v2868
        %v2917 = vmul.f32 %v853, %v2869
        %v2918 = vmul.f32 %v854, %v2870
        %v2919 = vmul.f32 %v855, %v2871
        %v2920 = vmul.f32 %v856, %v2872
        %v2921 = vmul.f32 %v857, %v2873
        %v2922 = vmul.f32 %v858, %v2874
        %v2923 = vmul.f32 %v859, %v2875
        %v2924 = vmul.f32 %v860, %v2876
        %v2925 = vmul.f32 %v861, %v2877
        %v2926 = vmul.f32 %v862, %v2878
        %v2927 = vmul.f32 %v863, %v2879
        %v2928 = vmul.f32 %v864, %v2880
        %v2929 = vmul.f32 %v865, %v2881
        %v2930 = vmul.f32 %v866, %v2882
        %v2931 = vmul.f32 %v867, %v2883
        %v2932 = vmul.f32 %v868, %v2884
        %v2933 = vmul.f32 %v869, %v2885
        %v2934 = vmul.f32 %v870, %v2886
        %v2935 = vmul.f32 %v871, %v2887
        %v2936 = vmul.f32 %v872, %v2888
        %v2937 = vmul.f32 %v873, %v2889
        %v2938 = vmul.f32 %v874, %v2890
        %v2939 = vmul.f32 %v875, %v2891
        %v2940 = vmul.f32 %v876, %v2892
        %v2941 = vmul.f32 %v877, %v2893
        %v2942 = vmul.f32 %v878, %v2894
        %v2943 = vmul.f32 %v879, %v2895
        %v2944 = vmul.f32 %v880, %v2896
        %v2945 = vmul.f32 %v881, %v2897
        %v2946 = vmul.f32 %v882, %v2898
        %v2947 = vmul.f32 %v883, %v2899
        %v2948 = vmul.f32 %v884, %v2900
        %v2949 = vmul.f32 %v885, %v2901
        %v2950 = vmul.f32 %v886, %v2902
        %v2951 = vmul.f32 %v887, %v2903
        %v2952 = vmul.f32 %v888, %v2904
        %v2953 = vmul.f32 %v889, %v2905
        %v2954 = vmul.f32 %v890, %v2906
        %v2955 = vmul.f32 %v891, %v2907
        %v2956 = vmul.f32 %v892, %v2908
        %v2957 = vpack.c.bf16 %v2912, %v2909
        %v2958 = vpack.c.bf16 %v2913, %v2910
        %v2959 = vpack.c.bf16 %v2914, %v2911
        %v2960 = vpack.c.bf16 %v2918, %v2915
        %v2961 = vpack.c.bf16 %v2919, %v2916
        %v2962 = vpack.c.bf16 %v2920, %v2917
        %v2963 = vpack.c.bf16 %v2924, %v2921
        %v2964 = vpack.c.bf16 %v2925, %v2922
        %v2965 = vpack.c.bf16 %v2926, %v2923
        %v2966 = vpack.c.bf16 %v2930, %v2927
        %v2967 = vpack.c.bf16 %v2931, %v2928
        %v2968 = vpack.c.bf16 %v2932, %v2929
        %v2969 = vpack.c.bf16 %v2936, %v2933
        %v2970 = vpack.c.bf16 %v2937, %v2934
        %v2971 = vpack.c.bf16 %v2938, %v2935
        %v2972 = vpack.c.bf16 %v2942, %v2939
        %v2973 = vpack.c.bf16 %v2943, %v2940
        %v2974 = vpack.c.bf16 %v2944, %v2941
        %v2975 = vpack.c.bf16 %v2948, %v2945
        %v2976 = vpack.c.bf16 %v2949, %v2946
        %v2977 = vpack.c.bf16 %v2950, %v2947
        %v2978 = vpack.c.bf16 %v2954, %v2951
        %v2979 = vpack.c.bf16 %v2955, %v2952
        %v2980 = vpack.c.bf16 %v2956, %v2953
        %v2981 = vld [vmem:[%s3] sm:$0xff]
        %v2982 = vld [vmem:[%s3 + $0x8] sm:$0xff]
        %v2983 = vld [vmem:[%s3 + $0x10] sm:$0xff]
        %v2984 = vld [vmem:[%s3 + $0x18] sm:$0xff]
        %v2985 = vld [vmem:[%s3 + $0x20] sm:$0xff]
        %v2986 = vld [vmem:[%s3 + $0x28] sm:$0xff]
        %v2987 = vld [vmem:[%s3 + $0x30] sm:$0xff]
        %v2988 = vld [vmem:[%s3 + $0x38] sm:$0xff]
        %v2989 = vld [vmem:[%s3 + $0x40] sm:$0xff]
        %v2990 = vld [vmem:[%s3 + $0x48] sm:$0xff]
        %v2991 = vld [vmem:[%s3 + $0x50] sm:$0xff]
        %v2992 = vld [vmem:[%s3 + $0x58] sm:$0xff]
        %v2993 = vld [vmem:[%s3 + $0x60] sm:$0xff]
        %v2994 = vld [vmem:[%s3 + $0x68] sm:$0xff]
        %v2995 = vld [vmem:[%s3 + $0x70] sm:$0xff]
        %v2996 = vld [vmem:[%s3 + $0x78] sm:$0xff]
        %v2997 = vld [vmem:[%s3 + $0x80] sm:$0xff]
        %v2998 = vld [vmem:[%s3 + $0x88] sm:$0xff]
        %v2999 = vld [vmem:[%s3 + $0x90] sm:$0xff]
        %v3000 = vld [vmem:[%s3 + $0x98] sm:$0xff]
        %v3001 = vld [vmem:[%s3 + $0xa0] sm:$0xff]
        %v3002 = vld [vmem:[%s3 + $0xa8] sm:$0xff]
        %v3003 = vld [vmem:[%s3 + $0xb0] sm:$0xff]
        %v3004 = vld [vmem:[%s3 + $0xb8] sm:$0xff]
        %v3005 = vld [vmem:[%s3 + $0xc0] sm:$0xff]
        %v3006 = vld [vmem:[%s3 + $0xc8] sm:$0xff]
        %v3007 = vld [vmem:[%s3 + $0xd0] sm:$0xff]
        %v3008 = vld [vmem:[%s3 + $0xd8] sm:$0xff]
        %v3009 = vld [vmem:[%s3 + $0xe0] sm:$0xff]
        %v3010 = vld [vmem:[%s3 + $0xe8] sm:$0xff]
        %v3011 = vld [vmem:[%s3 + $0xf0] sm:$0xff]
        %v3012 = vld [vmem:[%s3 + $0xf8] sm:$0xff]
        %v3013 = vld [vmem:[%s3 + $0x100] sm:$0xff]
        %v3014 = vld [vmem:[%s3 + $0x108] sm:$0xff]
        %v3015 = vld [vmem:[%s3 + $0x110] sm:$0xff]
        %v3016 = vld [vmem:[%s3 + $0x118] sm:$0xff]
        %v3017 = vld [vmem:[%s3 + $0x120] sm:$0xff]
        %v3018 = vld [vmem:[%s3 + $0x128] sm:$0xff]
        %v3019 = vld [vmem:[%s3 + $0x130] sm:$0xff]
        %v3020 = vld [vmem:[%s3 + $0x138] sm:$0xff]
        %v3021 = vld [vmem:[%s3 + $0x140] sm:$0xff]
        %v3022 = vld [vmem:[%s3 + $0x148] sm:$0xff]
        %v3023 = vld [vmem:[%s3 + $0x150] sm:$0xff]
        %v3024 = vld [vmem:[%s3 + $0x158] sm:$0xff]
        %v3025 = vld [vmem:[%s3 + $0x160] sm:$0xff]
        %v3026 = vld [vmem:[%s4] sm:$0x3]
        %v3028 = vperm.slane %v3026, 0
        %v3029 = vperm.slane %v3026, 1
        %v3077 = vunpack.c.l.b16 %v2981
        %v3078 = vunpack.c.h.b16 %v2981
        %v3079 = vunpack.c.l.b16 %v2982
        %v3080 = vunpack.c.h.b16 %v2982
        %v3081 = vunpack.c.l.b16 %v2983
        %v3082 = vunpack.c.h.b16 %v2983
        %v3083 = vunpack.c.l.b16 %v2984
        %v3084 = vunpack.c.h.b16 %v2984
        %v3085 = vunpack.c.l.b16 %v2985
        %v3086 = vunpack.c.h.b16 %v2985
        %v3087 = vunpack.c.l.b16 %v2986
        %v3088 = vunpack.c.h.b16 %v2986
        %v3089 = vunpack.c.l.b16 %v2987
        %v3090 = vunpack.c.h.b16 %v2987
        %v3091 = vunpack.c.l.b16 %v2988
        %v3092 = vunpack.c.h.b16 %v2988
        %v3093 = vunpack.c.l.b16 %v2989
        %v3094 = vunpack.c.h.b16 %v2989
        %v3095 = vunpack.c.l.b16 %v2990
        %v3096 = vunpack.c.h.b16 %v2990
        %v3097 = vunpack.c.l.b16 %v2991
        %v3098 = vunpack.c.h.b16 %v2991
        %v3099 = vunpack.c.l.b16 %v2992
        %v3100 = vunpack.c.h.b16 %v2992
        %v3101 = vunpack.c.l.b16 %v2993
        %v3102 = vunpack.c.h.b16 %v2993
        %v3103 = vunpack.c.l.b16 %v2994
        %v3104 = vunpack.c.h.b16 %v2994
        %v3105 = vunpack.c.l.b16 %v2995
        %v3106 = vunpack.c.h.b16 %v2995
        %v3107 = vunpack.c.l.b16 %v2996
        %v3108 = vunpack.c.h.b16 %v2996
        %v3109 = vunpack.c.l.b16 %v2997
        %v3110 = vunpack.c.h.b16 %v2997
        %v3111 = vunpack.c.l.b16 %v2998
        %v3112 = vunpack.c.h.b16 %v2998
        %v3113 = vunpack.c.l.b16 %v2999
        %v3114 = vunpack.c.h.b16 %v2999
        %v3115 = vunpack.c.l.b16 %v3000
        %v3116 = vunpack.c.h.b16 %v3000
        %v3117 = vunpack.c.l.b16 %v3001
        %v3118 = vunpack.c.h.b16 %v3001
        %v3119 = vunpack.c.l.b16 %v3002
        %v3120 = vunpack.c.h.b16 %v3002
        %v3121 = vunpack.c.l.b16 %v3003
        %v3122 = vunpack.c.h.b16 %v3003
        %v3123 = vunpack.c.l.b16 %v3004
        %v3124 = vunpack.c.h.b16 %v3004
        %v3125 = vunpack.c.l.b16 %v3005
        %v3126 = vunpack.c.h.b16 %v3005
        %v3127 = vunpack.c.l.b16 %v3006
        %v3128 = vunpack.c.h.b16 %v3006
        %v3129 = vunpack.c.l.b16 %v3007
        %v3130 = vunpack.c.h.b16 %v3007
        %v3131 = vunpack.c.l.b16 %v3008
        %v3132 = vunpack.c.h.b16 %v3008
        %v3133 = vunpack.c.l.b16 %v3009
        %v3134 = vunpack.c.h.b16 %v3009
        %v3135 = vunpack.c.l.b16 %v3010
        %v3136 = vunpack.c.h.b16 %v3010
        %v3137 = vunpack.c.l.b16 %v3011
        %v3138 = vunpack.c.h.b16 %v3011
        %v3139 = vunpack.c.l.b16 %v3012
        %v3140 = vunpack.c.h.b16 %v3012
        %v3141 = vunpack.c.l.b16 %v3013
        %v3142 = vunpack.c.h.b16 %v3013
        %v3143 = vunpack.c.l.b16 %v3014
        %v3144 = vunpack.c.h.b16 %v3014
        %v3145 = vunpack.c.l.b16 %v3015
        %v3146 = vunpack.c.h.b16 %v3015
        %v3147 = vunpack.c.l.b16 %v3016
        %v3148 = vunpack.c.h.b16 %v3016
        %v3149 = vunpack.c.l.b16 %v3017
        %v3150 = vunpack.c.h.b16 %v3017
        %v3151 = vunpack.c.l.b16 %v3018
        %v3152 = vunpack.c.h.b16 %v3018
        %v3153 = vunpack.c.l.b16 %v3019
        %v3154 = vunpack.c.h.b16 %v3019
        %v3155 = vunpack.c.l.b16 %v3020
        %v3156 = vunpack.c.h.b16 %v3020
        %v3157 = vunpack.c.l.b16 %v3021
        %v3158 = vunpack.c.h.b16 %v3021
        %v3159 = vunpack.c.l.b16 %v3022
        %v3160 = vunpack.c.h.b16 %v3022
        %v3161 = vunpack.c.l.b16 %v3023
        %v3162 = vunpack.c.h.b16 %v3023
        %v3163 = vunpack.c.l.b16 %v3024
        %v3164 = vunpack.c.h.b16 %v3024
        %v3165 = vunpack.c.l.b16 %v3025
        %v3166 = vunpack.c.h.b16 %v3025
        %v3167 = vpack.c.b16 %v3079, %v3077
        %v3168 = vpack.c.b16 %v3080, %v3078
        %v3169 = vpack.c.b16 %v3083, %v3081
        %v3170 = vpack.c.b16 %v3084, %v3082
        %v3171 = vpack.c.b16 %v3087, %v3085
        %v3172 = vpack.c.b16 %v3088, %v3086
        %v3173 = vpack.c.b16 %v3091, %v3089
        %v3174 = vpack.c.b16 %v3092, %v3090
        %v3175 = vpack.c.b16 %v3095, %v3093
        %v3176 = vpack.c.b16 %v3096, %v3094
        %v3177 = vpack.c.b16 %v3099, %v3097
        %v3178 = vpack.c.b16 %v3100, %v3098
        %v3179 = vpack.c.b16 %v3103, %v3101
        %v3180 = vpack.c.b16 %v3104, %v3102
        %v3181 = vpack.c.b16 %v3107, %v3105
        %v3182 = vpack.c.b16 %v3108, %v3106
        %v3183 = vpack.c.b16 %v3111, %v3109
        %v3184 = vpack.c.b16 %v3112, %v3110
        %v3185 = vpack.c.b16 %v3115, %v3113
        %v3186 = vpack.c.b16 %v3116, %v3114
        %v3187 = vpack.c.b16 %v3119, %v3117
        %v3188 = vpack.c.b16 %v3120, %v3118
        %v3189 = vpack.c.b16 %v3123, %v3121
        %v3190 = vpack.c.b16 %v3124, %v3122
        %v3191 = vpack.c.b16 %v3127, %v3125
        %v3192 = vpack.c.b16 %v3128, %v3126
        %v3193 = vpack.c.b16 %v3131, %v3129
        %v3194 = vpack.c.b16 %v3132, %v3130
        %v3195 = vpack.c.b16 %v3135, %v3133
        %v3196 = vpack.c.b16 %v3136, %v3134
        %v3197 = vpack.c.b16 %v3139, %v3137
        %v3198 = vpack.c.b16 %v3140, %v3138
        %v3199 = vpack.c.b16 %v3143, %v3141
        %v3200 = vpack.c.b16 %v3144, %v3142
        %v3201 = vpack.c.b16 %v3147, %v3145
        %v3202 = vpack.c.b16 %v3148, %v3146
        %v3203 = vpack.c.b16 %v3151, %v3149
        %v3204 = vpack.c.b16 %v3152, %v3150
        %v3205 = vpack.c.b16 %v3155, %v3153
        %v3206 = vpack.c.b16 %v3156, %v3154
        %v3207 = vpack.c.b16 %v3159, %v3157
        %v3208 = vpack.c.b16 %v3160, %v3158
        %v3209 = vpack.c.b16 %v3163, %v3161
        %v3210 = vpack.c.b16 %v3164, %v3162
        %v3211 = vpack.c.b16 %v3165, %v3165
        %v3212 = vpack.c.b16 %v3166, %v3166
        %vm3257 = vcmask 850944
        %v3259 = vsel %vm3257, %v2959, 0
        %v3262 = vsel %vm3257, %v2962, 0
        %v3265 = vsel %vm3257, %v2965, 0
        %v3268 = vsel %vm3257, %v2968, 0
        %v3271 = vsel %vm3257, %v2971, 0
        %v3274 = vsel %vm3257, %v2974, 0
        %v3277 = vsel %vm3257, %v2977, 0
        %v3280 = vsel %vm3257, %v2980, 0
        %vm3282 = vcmask 1043456
        %v3284 = vsel %vm3282, %v3211, 0
        %v3287 = vsel %vm3282, %v3212, 0
        %3289 = vmatpush.bf16.msra.mxu0 %v3181
        %3290 = vmatpush.bf16.msra.mxu0 %v3179
        %3291 = vmatpush.bf16.msra.mxu0 %v3177
        %3292 = vmatpush.bf16.msra.mxu0 %v3175
        %3293 = vmatpush.bf16.msra.mxu0 %v3173
        %3294 = vmatpush.bf16.msra.mxu0 %v3171
        %3295 = vmatpush.bf16.msra.mxu0 %v3169
        %3296 = vmatpush.bf16.msra.mxu0 %v3167
        %3297 = vmatmul.bf16.gmra.mxu0 %v2957
        %v3298 = vpop.f32.mrf.mxu0
        %v3299 = vadd.f32 %v3028, %v3298
        %v3300 = vpop.f32.mrf.mxu0
        %v3301 = vadd.f32 %v3028, %v3300
        %3302 = vmatmul.bf16.gmra.mxu0 %v2960
        %v3303 = vpop.f32.mrf.mxu0
        %v3304 = vadd.f32 %v3028, %v3303
        %v3305 = vpop.f32.mrf.mxu0
        %v3306 = vadd.f32 %v3028, %v3305
        %3307 = vmatmul.bf16.gmra.mxu0 %v2963
        %v3308 = vpop.f32.mrf.mxu0
        %v3309 = vadd.f32 %v3028, %v3308
        %v3310 = vpop.f32.mrf.mxu0
        %v3311 = vadd.f32 %v3028, %v3310
        %3312 = vmatmul.bf16.gmra.mxu0 %v2966
        %v3313 = vpop.f32.mrf.mxu0
        %v3314 = vadd.f32 %v3028, %v3313
        %v3315 = vpop.f32.mrf.mxu0
        %v3316 = vadd.f32 %v3028, %v3315
        %3317 = vmatmul.bf16.gmra.mxu0 %v2969
        %v3318 = vpop.f32.mrf.mxu0
        %v3319 = vadd.f32 %v3028, %v3318
        %v3320 = vpop.f32.mrf.mxu0
        %v3321 = vadd.f32 %v3028, %v3320
        %3322 = vmatmul.bf16.gmra.mxu0 %v2972
        %v3323 = vpop.f32.mrf.mxu0
        %v3324 = vadd.f32 %v3028, %v3323
        %v3325 = vpop.f32.mrf.mxu0
        %v3326 = vadd.f32 %v3028, %v3325
        %3327 = vmatmul.bf16.gmra.mxu0 %v2975
        %v3328 = vpop.f32.mrf.mxu0
        %v3329 = vadd.f32 %v3028, %v3328
        %v3330 = vpop.f32.mrf.mxu0
        %v3331 = vadd.f32 %v3028, %v3330
        %3332 = vmatmul.bf16.gmra.mxu0 %v2978
        %v3333 = vpop.f32.mrf.mxu0
        %v3334 = vadd.f32 %v3028, %v3333
        %v3335 = vpop.f32.mrf.mxu0
        %v3336 = vadd.f32 %v3028, %v3335
        %3337 = vdwg.mxu0
        %3338 = vmatpush.bf16.msra.mxu0 %v3197
        %3339 = vmatpush.bf16.msra.mxu0 %v3195
        %3340 = vmatpush.bf16.msra.mxu0 %v3193
        %3341 = vmatpush.bf16.msra.mxu0 %v3191
        %3342 = vmatpush.bf16.msra.mxu0 %v3189
        %3343 = vmatpush.bf16.msra.mxu0 %v3187
        %3344 = vmatpush.bf16.msra.mxu0 %v3185
        %3345 = vmatpush.bf16.msra.mxu0 %v3183
        %3346 = vmatmul.bf16.gmra.mxu0 %v2958
        %v3347 = vpop.f32.mrf.mxu0
        %v3348 = vadd.f32 %v3299, %v3347
        %v3349 = vpop.f32.mrf.mxu0
        %v3350 = vadd.f32 %v3301, %v3349
        %3351 = vmatmul.bf16.gmra.mxu0 %v2961
        %v3352 = vpop.f32.mrf.mxu0
        %v3353 = vadd.f32 %v3304, %v3352
        %v3354 = vpop.f32.mrf.mxu0
        %v3355 = vadd.f32 %v3306, %v3354
        %3356 = vmatmul.bf16.gmra.mxu0 %v2964
        %v3357 = vpop.f32.mrf.mxu0
        %v3358 = vadd.f32 %v3309, %v3357
        %v3359 = vpop.f32.mrf.mxu0
        %v3360 = vadd.f32 %v3311, %v3359
        %3361 = vmatmul.bf16.gmra.mxu0 %v2967
        %v3362 = vpop.f32.mrf.mxu0
        %v3363 = vadd.f32 %v3314, %v3362
        %v3364 = vpop.f32.mrf.mxu0
        %v3365 = vadd.f32 %v3316, %v3364
        %3366 = vmatmul.bf16.gmra.mxu0 %v2970
        %v3367 = vpop.f32.mrf.mxu0
        %v3368 = vadd.f32 %v3319, %v3367
        %v3369 = vpop.f32.mrf.mxu0
        %v3370 = vadd.f32 %v3321, %v3369
        %3371 = vmatmul.bf16.gmra.mxu0 %v2973
        %v3372 = vpop.f32.mrf.mxu0
        %v3373 = vadd.f32 %v3324, %v3372
        %v3374 = vpop.f32.mrf.mxu0
        %v3375 = vadd.f32 %v3326, %v3374
        %3376 = vmatmul.bf16.gmra.mxu0 %v2976
        %v3377 = vpop.f32.mrf.mxu0
        %v3378 = vadd.f32 %v3329, %v3377
        %v3379 = vpop.f32.mrf.mxu0
        %v3380 = vadd.f32 %v3331, %v3379
        %3381 = vmatmul.bf16.gmra.mxu0 %v2979
        %v3382 = vpop.f32.mrf.mxu0
        %v3383 = vadd.f32 %v3334, %v3382
        %v3384 = vpop.f32.mrf.mxu0
        %v3385 = vadd.f32 %v3336, %v3384
        %3386 = vdwg.mxu0
        %3387 = vmatpush.bf16.msra.mxu0 0
        %3388 = vmatpush.bf16.msra.mxu0 %v3284
        %3389 = vmatpush.bf16.msra.mxu0 %v3209
        %3390 = vmatpush.bf16.msra.mxu0 %v3207
        %3391 = vmatpush.bf16.msra.mxu0 %v3205
        %3392 = vmatpush.bf16.msra.mxu0 %v3203
        %3393 = vmatpush.bf16.msra.mxu0 %v3201
        %3394 = vmatpush.bf16.msra.mxu0 %v3199
        %3395 = vmatmul.bf16.gmra.mxu0 %v3259
        %v3396 = vpop.f32.mrf.mxu0
        %v3397 = vadd.f32 %v3348, %v3396
        %v3398 = vpop.f32.mrf.mxu0
        %v3399 = vadd.f32 %v3350, %v3398
        %3400 = vmatmul.bf16.gmra.mxu0 %v3262
        %v3401 = vpop.f32.mrf.mxu0
        %v3402 = vadd.f32 %v3353, %v3401
        %v3403 = vpop.f32.mrf.mxu0
        %v3404 = vadd.f32 %v3355, %v3403
        %3405 = vmatmul.bf16.gmra.mxu0 %v3265
        %v3406 = vpop.f32.mrf.mxu0
        %v3407 = vadd.f32 %v3358, %v3406
        %v3408 = vpop.f32.mrf.mxu0
        %v3409 = vadd.f32 %v3360, %v3408
        %3410 = vmatmul.bf16.gmra.mxu0 %v3268
        %v3411 = vpop.f32.mrf.mxu0
        %v3412 = vadd.f32 %v3363, %v3411
        %v3413 = vpop.f32.mrf.mxu0
        %v3414 = vadd.f32 %v3365, %v3413
        %3415 = vmatmul.bf16.gmra.mxu0 %v3271
        %v3416 = vpop.f32.mrf.mxu0
        %v3417 = vadd.f32 %v3368, %v3416
        %v3418 = vpop.f32.mrf.mxu0
        %v3419 = vadd.f32 %v3370, %v3418
        %3420 = vmatmul.bf16.gmra.mxu0 %v3274
        %v3421 = vpop.f32.mrf.mxu0
        %v3422 = vadd.f32 %v3373, %v3421
        %v3423 = vpop.f32.mrf.mxu0
        %v3424 = vadd.f32 %v3375, %v3423
        %3425 = vmatmul.bf16.gmra.mxu0 %v3277
        %v3426 = vpop.f32.mrf.mxu0
        %v3427 = vadd.f32 %v3378, %v3426
        %v3428 = vpop.f32.mrf.mxu0
        %v3429 = vadd.f32 %v3380, %v3428
        %3430 = vmatmul.bf16.gmra.mxu0 %v3280
        %v3431 = vpop.f32.mrf.mxu0
        %v3432 = vadd.f32 %v3383, %v3431
        %v3433 = vpop.f32.mrf.mxu0
        %v3434 = vadd.f32 %v3385, %v3433
        %3435 = vdwg.mxu0
        %3436 = vmatpush.bf16.msra.mxu0 %v3182
        %3437 = vmatpush.bf16.msra.mxu0 %v3180
        %3438 = vmatpush.bf16.msra.mxu0 %v3178
        %3439 = vmatpush.bf16.msra.mxu0 %v3176
        %3440 = vmatpush.bf16.msra.mxu0 %v3174
        %3441 = vmatpush.bf16.msra.mxu0 %v3172
        %3442 = vmatpush.bf16.msra.mxu0 %v3170
        %3443 = vmatpush.bf16.msra.mxu0 %v3168
        %3444 = vmatmul.bf16.gmra.mxu0 %v2957
        %v3445 = vpop.f32.mrf.mxu0
        %v3446 = vadd.f32 %v3029, %v3445
        %v3447 = vpop.f32.mrf.mxu0
        %v3448 = vadd.f32 %v3029, %v3447
        %3449 = vmatmul.bf16.gmra.mxu0 %v2960
        %v3450 = vpop.f32.mrf.mxu0
        %v3451 = vadd.f32 %v3029, %v3450
        %v3452 = vpop.f32.mrf.mxu0
        %v3453 = vadd.f32 %v3029, %v3452
        %3454 = vmatmul.bf16.gmra.mxu0 %v2963
        %v3455 = vpop.f32.mrf.mxu0
        %v3456 = vadd.f32 %v3029, %v3455
        %v3457 = vpop.f32.mrf.mxu0
        %v3458 = vadd.f32 %v3029, %v3457
        %3459 = vmatmul.bf16.gmra.mxu0 %v2966
        %v3460 = vpop.f32.mrf.mxu0
        %v3461 = vadd.f32 %v3029, %v3460
        %v3462 = vpop.f32.mrf.mxu0
        %v3463 = vadd.f32 %v3029, %v3462
        %3464 = vmatmul.bf16.gmra.mxu0 %v2969
        %v3465 = vpop.f32.mrf.mxu0
        %v3466 = vadd.f32 %v3029, %v3465
        %v3467 = vpop.f32.mrf.mxu0
        %v3468 = vadd.f32 %v3029, %v3467
        %3469 = vmatmul.bf16.gmra.mxu0 %v2972
        %v3470 = vpop.f32.mrf.mxu0
        %v3471 = vadd.f32 %v3029, %v3470
        %v3472 = vpop.f32.mrf.mxu0
        %v3473 = vadd.f32 %v3029, %v3472
        %3474 = vmatmul.bf16.gmra.mxu0 %v2975
        %v3475 = vpop.f32.mrf.mxu0
        %v3476 = vadd.f32 %v3029, %v3475
        %v3477 = vpop.f32.mrf.mxu0
        %v3478 = vadd.f32 %v3029, %v3477
        %3479 = vmatmul.bf16.gmra.mxu0 %v2978
        %v3480 = vpop.f32.mrf.mxu0
        %v3481 = vadd.f32 %v3029, %v3480
        %v3482 = vpop.f32.mrf.mxu0
        %v3483 = vadd.f32 %v3029, %v3482
        %3484 = vdwg.mxu0
        %3485 = vmatpush.bf16.msra.mxu0 %v3198
        %3486 = vmatpush.bf16.msra.mxu0 %v3196
        %3487 = vmatpush.bf16.msra.mxu0 %v3194
        %3488 = vmatpush.bf16.msra.mxu0 %v3192
        %3489 = vmatpush.bf16.msra.mxu0 %v3190
        %3490 = vmatpush.bf16.msra.mxu0 %v3188
        %3491 = vmatpush.bf16.msra.mxu0 %v3186
        %3492 = vmatpush.bf16.msra.mxu0 %v3184
        %3493 = vmatmul.bf16.gmra.mxu0 %v2958
        %v3494 = vpop.f32.mrf.mxu0
        %v3495 = vadd.f32 %v3446, %v3494
        %v3496 = vpop.f32.mrf.mxu0
        %v3497 = vadd.f32 %v3448, %v3496
        %3498 = vmatmul.bf16.gmra.mxu0 %v2961
        %v3499 = vpop.f32.mrf.mxu0
        %v3500 = vadd.f32 %v3451, %v3499
        %v3501 = vpop.f32.mrf.mxu0
        %v3502 = vadd.f32 %v3453, %v3501
        %3503 = vmatmul.bf16.gmra.mxu0 %v2964
        %v3504 = vpop.f32.mrf.mxu0
        %v3505 = vadd.f32 %v3456, %v3504
        %v3506 = vpop.f32.mrf.mxu0
        %v3507 = vadd.f32 %v3458, %v3506
        %3508 = vmatmul.bf16.gmra.mxu0 %v2967
        %v3509 = vpop.f32.mrf.mxu0
        %v3510 = vadd.f32 %v3461, %v3509
        %v3511 = vpop.f32.mrf.mxu0
        %v3512 = vadd.f32 %v3463, %v3511
        %3513 = vmatmul.bf16.gmra.mxu0 %v2970
        %v3514 = vpop.f32.mrf.mxu0
        %v3515 = vadd.f32 %v3466, %v3514
        %v3516 = vpop.f32.mrf.mxu0
        %v3517 = vadd.f32 %v3468, %v3516
        %3518 = vmatmul.bf16.gmra.mxu0 %v2973
        %v3519 = vpop.f32.mrf.mxu0
        %v3520 = vadd.f32 %v3471, %v3519
        %v3521 = vpop.f32.mrf.mxu0
        %v3522 = vadd.f32 %v3473, %v3521
        %3523 = vmatmul.bf16.gmra.mxu0 %v2976
        %v3524 = vpop.f32.mrf.mxu0
        %v3525 = vadd.f32 %v3476, %v3524
        %v3526 = vpop.f32.mrf.mxu0
        %v3527 = vadd.f32 %v3478, %v3526
        %3528 = vmatmul.bf16.gmra.mxu0 %v2979
        %v3529 = vpop.f32.mrf.mxu0
        %v3530 = vadd.f32 %v3481, %v3529
        %v3531 = vpop.f32.mrf.mxu0
        %v3532 = vadd.f32 %v3483, %v3531
        %3533 = vdwg.mxu0
        %3534 = vmatpush.bf16.msra.mxu0 0
        %3535 = vmatpush.bf16.msra.mxu0 %v3287
        %3536 = vmatpush.bf16.msra.mxu0 %v3210
        %3537 = vmatpush.bf16.msra.mxu0 %v3208
        %3538 = vmatpush.bf16.msra.mxu0 %v3206
        %3539 = vmatpush.bf16.msra.mxu0 %v3204
        %3540 = vmatpush.bf16.msra.mxu0 %v3202
        %3541 = vmatpush.bf16.msra.mxu0 %v3200
        %3542 = vmatmul.bf16.gmra.mxu0 %v3259
        %v3543 = vpop.f32.mrf.mxu0
        %v3544 = vadd.f32 %v3495, %v3543
        %v3545 = vpop.f32.mrf.mxu0
        %v3546 = vadd.f32 %v3497, %v3545
        %3547 = vmatmul.bf16.gmra.mxu0 %v3262
        %v3548 = vpop.f32.mrf.mxu0
        %v3549 = vadd.f32 %v3500, %v3548
        %v3550 = vpop.f32.mrf.mxu0
        %v3551 = vadd.f32 %v3502, %v3550
        %3552 = vmatmul.bf16.gmra.mxu0 %v3265
        %v3553 = vpop.f32.mrf.mxu0
        %v3554 = vadd.f32 %v3505, %v3553
        %v3555 = vpop.f32.mrf.mxu0
        %v3556 = vadd.f32 %v3507, %v3555
        %3557 = vmatmul.bf16.gmra.mxu0 %v3268
        %v3558 = vpop.f32.mrf.mxu0
        %v3559 = vadd.f32 %v3510, %v3558
        %v3560 = vpop.f32.mrf.mxu0
        %v3561 = vadd.f32 %v3512, %v3560
        %3562 = vmatmul.bf16.gmra.mxu0 %v3271
        %v3563 = vpop.f32.mrf.mxu0
        %v3564 = vadd.f32 %v3515, %v3563
        %v3565 = vpop.f32.mrf.mxu0
        %v3566 = vadd.f32 %v3517, %v3565
        %3567 = vmatmul.bf16.gmra.mxu0 %v3274
        %v3568 = vpop.f32.mrf.mxu0
        %v3569 = vadd.f32 %v3520, %v3568
        %v3570 = vpop.f32.mrf.mxu0
        %v3571 = vadd.f32 %v3522, %v3570
        %3572 = vmatmul.bf16.gmra.mxu0 %v3277
        %v3573 = vpop.f32.mrf.mxu0
        %v3574 = vadd.f32 %v3525, %v3573
        %v3575 = vpop.f32.mrf.mxu0
        %v3576 = vadd.f32 %v3527, %v3575
        %3577 = vmatmul.bf16.gmra.mxu0 %v3280
        %v3578 = vpop.f32.mrf.mxu0
        %v3579 = vadd.f32 %v3530, %v3578
        %v3580 = vpop.f32.mrf.mxu0
        %v3581 = vadd.f32 %v3532, %v3580
        %3582 = vdwg.mxu0
        %3583 = vst [vmem:[%s220] sm:$0xff] %v3397
        %3584 = vst.msk [vmem:[%s220 + $0x8] sm:$0xff] %vm516, %v3544
        %3585 = vst [vmem:[%s220 + $0x10] sm:$0xff] %v3399
        %3586 = vst.msk [vmem:[%s220 + $0x18] sm:$0xff] %vm516, %v3546
        %3587 = vst [vmem:[%s220 + $0x20] sm:$0xff] %v3402
        %3588 = vst.msk [vmem:[%s220 + $0x28] sm:$0xff] %vm516, %v3549
        %3589 = vst [vmem:[%s220 + $0x30] sm:$0xff] %v3404
        %3590 = vst.msk [vmem:[%s220 + $0x38] sm:$0xff] %vm516, %v3551
        %3591 = vst [vmem:[%s220 + $0x40] sm:$0xff] %v3407
        %3592 = vst.msk [vmem:[%s220 + $0x48] sm:$0xff] %vm516, %v3554
        %3593 = vst [vmem:[%s220 + $0x50] sm:$0xff] %v3409
        %3594 = vst.msk [vmem:[%s220 + $0x58] sm:$0xff] %vm516, %v3556
        %3595 = vst [vmem:[%s220 + $0x60] sm:$0xff] %v3412
        %3596 = vst.msk [vmem:[%s220 + $0x68] sm:$0xff] %vm516, %v3559
        %3597 = vst [vmem:[%s220 + $0x70] sm:$0xff] %v3414
        %3598 = vst.msk [vmem:[%s220 + $0x78] sm:$0xff] %vm516, %v3561
        %3599 = vst [vmem:[%s220 + $0x80] sm:$0xff] %v3417
        %3600 = vst.msk [vmem:[%s220 + $0x88] sm:$0xff] %vm516, %v3564
        %3601 = vst [vmem:[%s220 + $0x90] sm:$0xff] %v3419
        %3602 = vst.msk [vmem:[%s220 + $0x98] sm:$0xff] %vm516, %v3566
        %3603 = vst [vmem:[%s220 + $0xa0] sm:$0xff] %v3422
        %3604 = vst.msk [vmem:[%s220 + $0xa8] sm:$0xff] %vm516, %v3569
        %3605 = vst [vmem:[%s220 + $0xb0] sm:$0xff] %v3424
        %3606 = vst.msk [vmem:[%s220 + $0xb8] sm:$0xff] %vm516, %v3571
        %3607 = vst [vmem:[%s220 + $0xc0] sm:$0xff] %v3427
        %3608 = vst.msk [vmem:[%s220 + $0xc8] sm:$0xff] %vm516, %v3574
        %3609 = vst [vmem:[%s220 + $0xd0] sm:$0xff] %v3429
        %3610 = vst.msk [vmem:[%s220 + $0xd8] sm:$0xff] %vm516, %v3576
        %3611 = vst [vmem:[%s220 + $0xe0] sm:$0xff] %v3432
        %3612 = vst.msk [vmem:[%s220 + $0xe8] sm:$0xff] %vm516, %v3579
        %3613 = vst [vmem:[%s220 + $0xf0] sm:$0xff] %v3434
        %3614 = vst.msk [vmem:[%s220 + $0xf8] sm:$0xff] %vm516, %v3581
        %s3615 = sand.u32 %s137, 1
        %s3616 = scalar_lea.sflag [#allocation3], %s3615
        %s3617 = sand.u32 %s137, 1
        %s3618 = smul.addr %s3617, 256
        %s3619 = scalar_lea.vmem [#allocation2], %s3618
        // Predicated region
        $region41: #{mlp_forward.1} parent=39 // pred_check
          %p3620 = pneg %p147
        $region42: #{mlp_forward.1} parent=39 // pred_check_branch
          %3622 = sbr.rel (%p3620) target = $region44
        $region43: #{mlp_forward.1} parent=39 // pred_region
          %s3623 = smul.u32 16, %s19
          %3625 = vsyncadd %s3616, 0
          %s3626 = smul.addr %s3623, 2
          %s3627 = smul.addr %s3626, 8
          %s3628 = scalar_lea.hbm %s5, %s3627
          %s3629 = sshll.u32 %s3619, 4
          %s3630 = int_to_ptr.vmem [resolvable:$true] %s3629
          %s3631 = sshll.u32 %s3628, 4
          %s3632 = int_to_ptr.hbm [resolvable:$true] %s3631
          %3637 = dma.vmem_to_hbm [thread:$0]  %s3630, 4096, %s3632, %s3616, 256, 256, 16
        $region44: #{mlp_forward.1} parent=39 // pred_fallthru
          _
      $region40: #{mlp_forward.1} parent=5 // pred_fallthru
        _
      %p3638 = scmp.le.s32.totalorder 2, %s14
      // Predicated region
      $region45: #{mlp_forward.1} parent=5 // pred_check
        %p3639 = pneg %p3638
      $region46: #{mlp_forward.1} parent=5 // pred_check_branch
        %3641 = sbr.rel (%p3639) target = $region48
      $region47: #{mlp_forward.1} parent=5 // pred_region
        %s3642 = ssub.s32 %s14, 2
        // Predicated region
        $region49: #{mlp_forward.1} parent=47 // pred_check
          %p3643 = pneg %p153
        $region50: #{mlp_forward.1} parent=47 // pred_check_branch
          %3645 = sbr.rel (%p3643) target = $region52
        $region51: #{mlp_forward.1} parent=47 // pred_region
          %s3646 = sand.u32 %s138, 1
          %s3647 = scalar_lea.sflag [#allocation3], %s3646
          %s3648 = sand.u32 %s138, 1
          %s3649 = smul.addr %s3648, 256
          %s3650 = scalar_lea.vmem [#allocation2], %s3649
          %3652 = dma.done %s3647, 4096
        $region52: #{mlp_forward.1} parent=47 // pred_fallthru
          _
      $region48: #{mlp_forward.1} parent=5 // pred_fallthru
        _
    $region6: #{mlp_forward.1} parent=1 // loop_footer
      %s18 = sadd.s32 1, %s14
    $region7: #{mlp_forward.1} parent=1 // loop_footer_branch
      %13 = sbr.rel target = $region3
    $region8: #{mlp_forward.1} parent=1 // loop_exit
      _
    %3653 = vsyncpa [#allocation3], 1
    %s3654 = scalar_lea.sflag [#allocation3], 1
    %3655 = vsyncpa %s3654, 1

</llo_original>
